<compile_context>
chip_gen: v7x
topology: tpu7x:2x2x1
jax: 0.10.0
libtpu: 0.0.40
codegen_flags: <defaults>
</compile_context>

<pallas_src>
import functools

import jax
import jax.numpy as jnp
from jax.experimental import pallas as pl
from jax.experimental.pallas import tpu as pltpu


def _ffwd_kernel(x_ref, w1_ref, b1_ref, w2_ref, b2_ref, o_ref, acc_ref):
    # x_ref:  (bm, C)   bf16 row tile of flattened input (resident across k)
    # w1_ref: (C, tH)   bf16 column tile of first linear weight
    # b1_ref: (1, tH)   f32
    # w2_ref: (tH, C)   bf16 row tile of second linear weight
    # b2_ref: (1, C)    f32 (resident)
    # o_ref:  (bm, C)   output dtype (bf16 when x is bf16)
    # acc_ref:(bm, C)   f32 accumulator over the hidden-dim grid axis
    k = pl.program_id(1)

    @pl.when(k == 0)
    def _():
        acc_ref[...] = jnp.zeros_like(acc_ref)

    h = jnp.dot(x_ref[...], w1_ref[...], preferred_element_type=jnp.float32)
    h = jnp.maximum(h + b1_ref[...], 0.0)                             # bias + ReLU (f32, VPU)
    acc_ref[...] += jnp.dot(h.astype(w2_ref.dtype), w2_ref[...],      # back to bf16 for MXU
                            preferred_element_type=jnp.float32)

    @pl.when(k == pl.num_programs(1) - 1)
    def _():
        # Dropout in eval/inference mode == identity.
        o_ref[...] = (acc_ref[...] + b2_ref[...]).astype(o_ref.dtype)


def _round_up(x, m):
    return (x + m - 1) // m * m


def _vmem_limits():
    """(compiler vmem limit, planning budget) derived from the chip's VMEM capacity."""
    try:
        cap = int(pltpu.get_tpu_info().vmem_capacity_bytes)
    except Exception:
        cap = 64 * 1024 * 1024          # conservative fallback (v7x per-TC size)
    limit = min(cap - 8 * 1024 * 1024, cap * 7 // 8)   # headroom for compiler scratch
    return limit, limit - 4 * 1024 * 1024


def _plan_tiles(M, C, H, block_m, out_bytes, budget):
    """Pick (row tile bm, hidden tile tH) that fit the VMEM budget."""
    bm = min(block_m, _round_up(M, 8))
    if pl.cdiv(M, bm) == 1 and M >= 32:
        # Split the single row tile so both v7x TensorCores get work ("parallel" axis).
        bm = _round_up(pl.cdiv(M, 2), 16)

    def usage(bm_, tH_):
        nh = H // tH_
        wbufs = 1 if nh == 1 else 2          # resident vs. double-buffered weight tiles
        return (wbufs * 4 * C * tH_          # W1 + W2 tiles (bf16)
                + wbufs * 4 * tH_ + 4 * C    # biases (f32)
                + 2 * bm_ * C * 2            # x double-buffer (bf16)
                + 2 * bm_ * C * out_bytes    # out double-buffer
                + bm_ * C * 4                # f32 accumulator scratch
                + 6 * bm_ * tH_)             # f32 hidden temp + bf16 copy

    # Candidate hidden tiles: H, H/2, ... (stay a multiple of 128 and >= 512).
    cands = [H]
    while cands[-1] % 256 == 0 and cands[-1] >= 1024:
        cands.append(cands[-1] // 2)
    tH = cands[-1]
    for c in cands:
        if usage(bm, c) <= budget:
            tH = c
            break
    while usage(bm, tH) > budget and bm > 64:   # last resort: shrink the row tile
        bm = max(64, bm // 2)
    return bm, tH


@functools.partial(jax.jit, static_argnames=("block_m",))
def feed_forward(x, w1, b1, w2, b2, *, block_m=256):
    """x: (B, T, C). w1: (C, 4C), b1: (4C,), w2: (4C, C), b2: (C,). Returns (B, T, C) in x.dtype."""
    B, T, C = x.shape
    H = w1.shape[1]
    assert C % 128 == 0 and H % 128 == 0, "pad n_embd / hidden to multiples of 128"
    M = B * T
    out_dtype = x.dtype

    # Operands for the MXU: bf16 (no-op when caller already stores them in bf16).
    x2d = x.reshape(M, C)
    if x2d.dtype != jnp.bfloat16:
        x2d = x2d.astype(jnp.bfloat16)
    w1b = w1 if w1.dtype == jnp.bfloat16 else w1.astype(jnp.bfloat16)
    w2b = w2 if w2.dtype == jnp.bfloat16 else w2.astype(jnp.bfloat16)
    b1_2d = b1.reshape(1, H).astype(jnp.float32)
    b2_2d = b2.reshape(1, C).astype(jnp.float32)

    vmem_limit, plan_budget = _vmem_limits()
    bm, tH = _plan_tiles(M, C, H, block_m,
                         out_bytes=jnp.dtype(out_dtype).itemsize,
                         budget=plan_budget)
    num_m = pl.cdiv(M, bm)       # ragged last block: padded read / masked write
    num_h = H // tH

    # Constant index_map -> keep weights/biases resident (single buffer) when not tiled.
    w_mode = dict(pipeline_mode=pl.Buffered(1)) if num_h == 1 else {}
    in_specs = [
        pl.BlockSpec((bm, C), lambda i, k: (i, 0)),                               # x row tile
        pl.BlockSpec((C, tH), lambda i, k: (0, k), **w_mode),                     # W1 col tile
        pl.BlockSpec((1, tH), lambda i, k: (0, k), **w_mode),                     # b1
        pl.BlockSpec((tH, C), lambda i, k: (k, 0), **w_mode),                     # W2 row tile
        pl.BlockSpec((1, C), lambda i, k: (0, 0), pipeline_mode=pl.Buffered(1)),  # b2
    ]

    out2d = pl.pallas_call(
        _ffwd_kernel,
        out_shape=jax.ShapeDtypeStruct((M, C), out_dtype),
        grid_spec=pltpu.PrefetchScalarGridSpec(
            num_scalar_prefetch=0,
            grid=(num_m, num_h),
            in_specs=in_specs,
            out_specs=pl.BlockSpec((bm, C), lambda i, k: (i, 0)),
            scratch_shapes=[pltpu.VMEM((bm, C), jnp.float32)],
        ),
        compiler_params=pltpu.CompilerParams(
            dimension_semantics=("parallel", "arbitrary"),  # rows shard across TCs (v7x)
            vmem_limit_bytes=vmem_limit,
        ),
    )(x2d, w1b, b1_2d, w2b, b2_2d)

    return out2d.reshape(B, T, C)


def init_params(key, n_embd):
    """PyTorch nn.Linear-style U(-1/sqrt(fan_in), 1/sqrt(fan_in)); weights stored bf16 at rest."""
    hidden = 4 * n_embd
    k1, k2, k3, k4 = jax.random.split(key, 4)
    bound1 = 1.0 / jnp.sqrt(n_embd)
    bound2 = 1.0 / jnp.sqrt(hidden)
    # stored as (in, out) so the kernel computes x @ W directly
    w1 = jax.random.uniform(k1, (n_embd, hidden), jnp.float32, -bound1, bound1).astype(jnp.bfloat16)
    b1 = jax.random.uniform(k2, (hidden,), jnp.float32, -bound1, bound1)
    w2 = jax.random.uniform(k3, (hidden, n_embd), jnp.float32, -bound2, bound2).astype(jnp.bfloat16)
    b2 = jax.random.uniform(k4, (n_embd,), jnp.float32, -bound2, bound2)
    return w1, b1, w2, b2


if __name__ == "__main__":
    # M = B*T = 272: exercises the multi-step grid, the partial (masked) last row tile,
    # and the resident-weight (num_h == 1) path at small shapes.
    B, T, C = 2, 136, 256

    key = jax.random.PRNGKey(0)
    kx, kp = jax.random.split(key)
    x = jax.random.normal(kx, (B, T, C), jnp.float32).astype(jnp.bfloat16)  # bf16 at rest
    w1, b1, w2, b2 = init_params(kp, C)                                     # bf16 weights

    out = feed_forward(x, w1, b1, w2, b2)
    out = jax.block_until_ready(out)

    # Reference in plain JAX (f32 math on the same bf16-rounded operands); only the
    # in-kernel bf16 hidden cast / bf16 output rounding / accumulation order differ.
    xf = x.astype(jnp.float32).reshape(-1, C)
    w1f = w1.astype(jnp.float32)
    w2f = w2.astype(jnp.float32)
    ref = (jnp.maximum(xf @ w1f + b1, 0.0) @ w2f + b2).reshape(B, T, C)

    assert out.shape == (B, T, C)
    assert out.dtype == x.dtype
    outf = out.astype(jnp.float32)
    max_diff = float(jnp.max(jnp.abs(outf - ref)))
    assert jnp.allclose(outf, ref, atol=2.5e-2, rtol=2.5e-2), (
        "mismatch vs reference, max abs diff = %g" % max_diff)

    print("KERNEL_OK")
</pallas_src>

<mosaic_0001>
module attributes {stable_mosaic.version = 11 : i64} {
  func.func @_ffwd_kernel(%arg0: i32, %arg1: i32, %arg2: memref<256x256xbf16, #tpu.memory_space<vmem>>, %arg3: memref<256x1024xbf16, #tpu.memory_space<vmem>>, %arg4: memref<1x1024xf32, #tpu.memory_space<vmem>>, %arg5: memref<1024x256xbf16, #tpu.memory_space<vmem>>, %arg6: memref<1x256xf32, #tpu.memory_space<vmem>>, %arg7: memref<256x256xbf16, #tpu.memory_space<vmem>>, %arg8: memref<256x256xf32, #tpu.memory_space<vmem>>) attributes {dimension_semantics = [#tpu.dimension_semantics<parallel>, #tpu.dimension_semantics<arbitrary>], iteration_bounds = array<i64: 2, 1>, scalar_prefetch = 0 : i64, scratch_operands = 1 : i64, tpu.core_type = #tpu.core_type<tc>, window_params = [{transform_indices = @transform_0, window_bounds = array<i64: 256, 256>}, {pipeline_mode = #tpu.pipeline_mode<synchronous>, transform_indices = @transform_1, window_bounds = array<i64: 256, 1024>}, {pipeline_mode = #tpu.pipeline_mode<synchronous>, transform_indices = @transform_2, window_bounds = array<i64: 1, 1024>}, {pipeline_mode = #tpu.pipeline_mode<synchronous>, transform_indices = @transform_3, window_bounds = array<i64: 1024, 256>}, {pipeline_mode = #tpu.pipeline_mode<synchronous>, transform_indices = @transform_4, window_bounds = array<i64: 1, 256>}, {transform_indices = @transform_5, window_bounds = array<i64: 256, 256>}]} {
    %c0_i32 = arith.constant 0 : i32
    %0 = arith.cmpi eq, %arg1, %c0_i32 : i32
    %1 = arith.extui %0 : i1 to i32
    %c0_i32_0 = arith.constant 0 : i32
    %2 = arith.cmpi ne, %1, %c0_i32_0 : i32
    scf.if %2 {
      %cst_16 = arith.constant 0.000000e+00 : f32
      %20 = vector.broadcast %cst_16 : f32 to vector<256x256xf32>
      %c0_17 = arith.constant 0 : index
      %c0_18 = arith.constant 0 : index
      %21 = vector.load %arg8[%c0_17, %c0_18] : memref<256x256xf32, #tpu.memory_space<vmem>>, vector<256x256xf32>
      tpu.vector_store %arg8[%c0_17, %c0_18], %20 {strides = array<i32>} : memref<256x256xf32, #tpu.memory_space<vmem>>, vector<256x256xf32>,
    } else {
    }
    %c0 = arith.constant 0 : index
    %c0_1 = arith.constant 0 : index
    %3 = vector.load %arg2[%c0, %c0_1] : memref<256x256xbf16, #tpu.memory_space<vmem>>, vector<256x256xbf16>
    %c0_2 = arith.constant 0 : index
    %c0_3 = arith.constant 0 : index
    %4 = vector.load %arg3[%c0_2, %c0_3] : memref<256x1024xbf16, #tpu.memory_space<vmem>>, vector<256x1024xbf16>
    %cst = arith.constant dense<0.000000e+00> : vector<256x1024xf32>
    %5 = tpu.matmul %3, %4, %cst {dimension_numbers = #tpu.dot_dimension_numbers<[1], [0], [0], [1], [0, 0, 1, 1], [], []>} : vector<256x256xbf16>, vector<256x1024xbf16>, vector<256x1024xf32> -> vector<256x1024xf32>
    %c0_4 = arith.constant 0 : index
    %c0_5 = arith.constant 0 : index
    %6 = vector.load %arg4[%c0_4, %c0_5] : memref<1x1024xf32, #tpu.memory_space<vmem>>, vector<1x1024xf32>
    %7 = vector.broadcast %6 : vector<1x1024xf32> to vector<256x1024xf32>
    %8 = arith.addf %5, %7 : vector<256x1024xf32>
    %cst_6 = arith.constant 0.000000e+00 : f32
    %9 = vector.broadcast %cst_6 : f32 to vector<256x1024xf32>
    %10 = arith.maximumf %8, %9 : vector<256x1024xf32>
    %c0_7 = arith.constant 0 : index
    %c0_8 = arith.constant 0 : index
    %11 = vector.load %arg8[%c0_7, %c0_8] : memref<256x256xf32, #tpu.memory_space<vmem>>, vector<256x256xf32>
    %12 = arith.truncf %10 : vector<256x1024xf32> to vector<256x1024xbf16>
    %c0_9 = arith.constant 0 : index
    %c0_10 = arith.constant 0 : index
    %13 = vector.load %arg5[%c0_9, %c0_10] : memref<1024x256xbf16, #tpu.memory_space<vmem>>, vector<1024x256xbf16>
    %cst_11 = arith.constant dense<0.000000e+00> : vector<256x256xf32>
    %14 = tpu.matmul %12, %13, %cst_11 {dimension_numbers = #tpu.dot_dimension_numbers<[1], [0], [0], [1], [0, 0, 1, 1], [], []>} : vector<256x1024xbf16>, vector<1024x256xbf16>, vector<256x256xf32> -> vector<256x256xf32>
    %15 = arith.addf %11, %14 : vector<256x256xf32>
    %c0_12 = arith.constant 0 : index
    %c0_13 = arith.constant 0 : index
    %16 = vector.load %arg8[%c0_12, %c0_13] : memref<256x256xf32, #tpu.memory_space<vmem>>, vector<256x256xf32>
    tpu.vector_store %arg8[%c0_12, %c0_13], %15 {strides = array<i32>} : memref<256x256xf32, #tpu.memory_space<vmem>>, vector<256x256xf32>,
    %c0_i32_14 = arith.constant 0 : i32
    %17 = arith.cmpi eq, %arg1, %c0_i32_14 : i32
    %18 = arith.extui %17 : i1 to i32
    %c0_i32_15 = arith.constant 0 : i32
    %19 = arith.cmpi ne, %18, %c0_i32_15 : i32
    scf.if %19 {
      %c0_16 = arith.constant 0 : index
      %c0_17 = arith.constant 0 : index
      %20 = vector.load %arg8[%c0_16, %c0_17] : memref<256x256xf32, #tpu.memory_space<vmem>>, vector<256x256xf32>
      %c0_18 = arith.constant 0 : index
      %c0_19 = arith.constant 0 : index
      %21 = vector.load %arg6[%c0_18, %c0_19] : memref<1x256xf32, #tpu.memory_space<vmem>>, vector<1x256xf32>
      %22 = vector.broadcast %21 : vector<1x256xf32> to vector<256x256xf32>
      %23 = arith.addf %20, %22 : vector<256x256xf32>
      %24 = arith.truncf %23 : vector<256x256xf32> to vector<256x256xbf16>
      %c0_20 = arith.constant 0 : index
      %c0_21 = arith.constant 0 : index
      %25 = vector.load %arg7[%c0_20, %c0_21] : memref<256x256xbf16, #tpu.memory_space<vmem>>, vector<256x256xbf16>
      tpu.vector_store %arg7[%c0_20, %c0_21], %24 {strides = array<i32>} : memref<256x256xbf16, #tpu.memory_space<vmem>>, vector<256x256xbf16>,
    } else {
    }
    return
  }
  func.func @transform_0(%arg0: i32, %arg1: i32) -> (i32, i32) {
    %c0_i32 = arith.constant 0 : i32
    %c0_i32_0 = arith.constant 0 : i32
    return %arg0, %c0_i32 : i32, i32
  }
  func.func @transform_1(%arg0: i32, %arg1: i32) -> (i32, i32) {
    %c0_i32 = arith.constant 0 : i32
    %c0_i32_0 = arith.constant 0 : i32
    return %c0_i32, %arg1 : i32, i32
  }
  func.func @transform_2(%arg0: i32, %arg1: i32) -> (i32, i32) {
    %c0_i32 = arith.constant 0 : i32
    %c0_i32_0 = arith.constant 0 : i32
    return %c0_i32, %arg1 : i32, i32
  }
  func.func @transform_3(%arg0: i32, %arg1: i32) -> (i32, i32) {
    %c0_i32 = arith.constant 0 : i32
    %c0_i32_0 = arith.constant 0 : i32
    return %arg1, %c0_i32 : i32, i32
  }
  func.func @transform_4(%arg0: i32, %arg1: i32) -> (i32, i32) {
    %c0_i32 = arith.constant 0 : i32
    %c0_i32_0 = arith.constant 0 : i32
    %c0_i32_1 = arith.constant 0 : i32
    return %c0_i32, %c0_i32_0 : i32, i32
  }
  func.func @transform_5(%arg0: i32, %arg1: i32) -> (i32, i32) {
    %c0_i32 = arith.constant 0 : i32
    %c0_i32_0 = arith.constant 0 : i32
    return %arg0, %c0_i32 : i32, i32
  }
}

</mosaic_0001>

<llo_original>
// kernel: feed_forward.1
$region0: #{feed_forward.1}
  #allocation0 [shape = 'u32[]', space=smem, size = 0x4, offset = 0x4, fixed_abs, tag = 'smem constant byte address 0x4 - core index']
  #allocation1 [shape = 'u32[144,128]{1,0:T(1,128)}', space=vmem, size = 0x12000, scoped, tag = 'internal scratch']
  #allocation2 [shape = 'f32[256,256]{1,0:T(8,128)}', space=vmem, size = 0x40000, scoped, tag = 'scratch operand']
  %s0 = inlined_call_operand.hbm [shape: bf16[272,256], index: 0, kind: input, shape index: {}]
  %s1 = inlined_call_operand.hbm [shape: bf16[256,1024], index: 1, kind: input, shape index: {}]
  %s2 = inlined_call_operand.vmem [shape: f32[1,1024], index: 2, kind: input, shape index: {}]
  %s3 = inlined_call_operand.hbm [shape: bf16[1024,256], index: 3, kind: input, shape index: {}]
  %s4 = inlined_call_operand.vmem [shape: f32[1,256], index: 4, kind: input, shape index: {}]
  %s5 = inlined_call_operand.hbm [shape: bf16[272,256], index: 5, kind: output, shape index: {}]
  %s6 = sld [smem:[#allocation0]]
  $region73: #{feed_forward.1} parent=0
    _
  %s8 = ssub.s32 1, %s6
  %s9 = scalar_select 0, %s8, %s6
  $region1: #{feed_forward.1} parent=0
    #allocation3 [shape = 'u8[262144]{0}', space=vmem, size = 0x40000, scoped, tag = 'input window, operand 0']
    #allocation4 [shape = 's32[2]{0}', space=sflag, size = 0x8, scoped, tag = 'scoped memory for feed_forward.1']
    #allocation5 [shape = 's32[2]{0}', space=sflag, size = 0x8, scoped, tag = 'scoped memory for feed_forward.1']
    #allocation6 [shape = 'u8[524288]{0}', space=vmem, size = 0x80000, scoped, tag = 'input window, operand 1, single buffered']
    #allocation7 [shape = 's32[1]{0}', space=sflag, size = 0x4, scoped, tag = 'scoped memory for feed_forward.1']
    #allocation8 [shape = 'u8[524288]{0}', space=vmem, size = 0x80000, scoped, tag = 'input window, operand 3, single buffered']
    #allocation9 [shape = 'u8[262144]{0}', space=vmem, size = 0x40000, scoped, tag = 'output window, operand 0']
    %10 = vsyncpa [#allocation4], 0
    %s11 = scalar_lea.sflag [#allocation4], 1
    %12 = vsyncpa %s11, 0
    %13 = vsyncpa [#allocation7], 0
    %14 = vsyncpa [#allocation5], 0
    %s15 = scalar_lea.sflag [#allocation5], 1
    %16 = vsyncpa %s15, 0
    loop: start=0, step=1, limit=4
    $region2: #{feed_forward.1} parent=1 // loop_pre_header
      _
    $region3: #{feed_forward.1} parent=1 // loop_header
      %s18 = sphi 0, %s22
      %p19 = scmp.ge.s32.totalorder %s18, 4
      %s25 = sphi 0, %s37
      %s26 = sphi 0, %s33
      %s27 = sphi 0, %s25
      %s28 = sphi 0, %s26
      %s29 = sphi 0, %s27
      %s30 = sphi 0, %s28
      %s40 = sphi 0, %s42
      %s43 = sphi 0, %s40
      %s44 = sphi 0, %s43
      %s60 = sphi 0, %s44
      %s66 = sphi 0, %s68
      %s69 = sphi 0, %s66
      %s70 = sphi 0, %s69
      %s86 = sphi 0, %s70
      %s92 = sphi 0, %s94
      %s95 = sphi 0, %s92
      %s96 = sphi 0, %s95
      %s112 = sphi 0, %s96
      %s118 = sphi 0, %s120
      %s121 = sphi 0, %s118
      %s122 = sphi 0, %s121
      %s138 = sphi 0, %s122
      %s142 = sphi 0, %s142
      %s144 = sphi 0, %s142
      %s145 = sphi 0, %s144
      %s159 = sphi 0, %s145
      %s165 = sphi 0, %s167
      %s168 = sphi 0, %s165
      %s169 = sphi 0, %s168
      %s185 = sphi 0, %s169
    $region4: #{feed_forward.1} parent=1 // loop_header_branch
      %21 = sbr.rel (%p19) target = $region8
    $region5: #{feed_forward.1} parent=1 // loop_body
      %s23 = ssub.s32 %s18, 1
      %s24 = ssub.s32 %s18, 2
      %s31 = sadd.s32 1, %s26
      %p32 = scmp.ge.s32.totalorder %s31, 1
      %s33 = scalar_select %p32, 0, %s31
      %s34 = sadd.s32 1, %s25
      %s35 = scalar_select %p32, %s34, %s25
      %p36 = scmp.ge.s32.totalorder %s35, 2
      %s37 = scalar_select %p36, 0, %s35
      %s38 = ssub.s32 %s25, %s37
      %p39 = scmp.eq.s32.totalorder %s38, 0
      %s41 = sadd.s32 %s40, 1
      %s42 = scalar_select %p39, %s40, %s41
      %p45 = pneg %p39
      %p46 = scmp.eq.s32.totalorder %s18, 1
      %p47 = por %p45, %p46
      %p48 = scmp.ne.s32.totalorder %s40, %s43
      %p49 = scmp.eq.s32.totalorder %s18, 0
      %p50 = por %p48, %p49
      %p51 = scmp.ne.s32.totalorder %s40, %s43
      %p52 = scmp.eq.s32.totalorder %s23, 1
      %p53 = por %p51, %p52
      %p54 = scmp.ne.s32.totalorder %s43, %s44
      %p55 = scmp.eq.s32.totalorder %s23, 0
      %p56 = por %p54, %p55
      %p57 = scmp.ne.s32.totalorder %s43, %s44
      %p58 = scmp.eq.s32.totalorder %s24, 1
      %p59 = por %p57, %p58
      %p61 = scmp.ne.s32.totalorder %s44, %s60
      %p62 = scmp.eq.s32.totalorder %s24, 0
      %p63 = por %p61, %p62
      %s64 = ssub.s32 %s26, %s33
      %p65 = scmp.eq.s32.totalorder %s64, 0
      %s67 = sadd.s32 %s66, 1
      %s68 = scalar_select %p65, %s66, %s67
      %p71 = pneg %p65
      %p72 = scmp.eq.s32.totalorder %s18, 1
      %p73 = por %p71, %p72
      %p74 = scmp.ne.s32.totalorder %s66, %s69
      %p75 = scmp.eq.s32.totalorder %s18, 0
      %p76 = por %p74, %p75
      %p77 = scmp.ne.s32.totalorder %s66, %s69
      %p78 = scmp.eq.s32.totalorder %s23, 1
      %p79 = por %p77, %p78
      %p80 = scmp.ne.s32.totalorder %s69, %s70
      %p81 = scmp.eq.s32.totalorder %s23, 0
      %p82 = por %p80, %p81
      %p83 = scmp.ne.s32.totalorder %s69, %s70
      %p84 = scmp.eq.s32.totalorder %s24, 1
      %p85 = por %p83, %p84
      %p87 = scmp.ne.s32.totalorder %s70, %s86
      %p88 = scmp.eq.s32.totalorder %s24, 0
      %p89 = por %p87, %p88
      %s90 = ssub.s32 %s26, %s33
      %p91 = scmp.eq.s32.totalorder %s90, 0
      %s93 = sadd.s32 %s92, 1
      %s94 = scalar_select %p91, %s92, %s93
      %p97 = pneg %p91
      %p98 = scmp.eq.s32.totalorder %s18, 1
      %p99 = por %p97, %p98
      %p100 = scmp.ne.s32.totalorder %s92, %s95
      %p101 = scmp.eq.s32.totalorder %s18, 0
      %p102 = por %p100, %p101
      %p103 = scmp.ne.s32.totalorder %s92, %s95
      %p104 = scmp.eq.s32.totalorder %s23, 1
      %p105 = por %p103, %p104
      %p106 = scmp.ne.s32.totalorder %s95, %s96
      %p107 = scmp.eq.s32.totalorder %s23, 0
      %p108 = por %p106, %p107
      %p109 = scmp.ne.s32.totalorder %s95, %s96
      %p110 = scmp.eq.s32.totalorder %s24, 1
      %p111 = por %p109, %p110
      %p113 = scmp.ne.s32.totalorder %s96, %s112
      %p114 = scmp.eq.s32.totalorder %s24, 0
      %p115 = por %p113, %p114
      %s116 = ssub.s32 %s26, %s33
      %p117 = scmp.eq.s32.totalorder %s116, 0
      %s119 = sadd.s32 %s118, 1
      %s120 = scalar_select %p117, %s118, %s119
      %p123 = pneg %p117
      %p124 = scmp.eq.s32.totalorder %s18, 1
      %p125 = por %p123, %p124
      %p126 = scmp.ne.s32.totalorder %s118, %s121
      %p127 = scmp.eq.s32.totalorder %s18, 0
      %p128 = por %p126, %p127
      %p129 = scmp.ne.s32.totalorder %s118, %s121
      %p130 = scmp.eq.s32.totalorder %s23, 1
      %p131 = por %p129, %p130
      %p132 = scmp.ne.s32.totalorder %s121, %s122
      %p133 = scmp.eq.s32.totalorder %s23, 0
      %p134 = por %p132, %p133
      %p135 = scmp.ne.s32.totalorder %s121, %s122
      %p136 = scmp.eq.s32.totalorder %s24, 1
      %p137 = por %p135, %p136
      %p139 = scmp.ne.s32.totalorder %s122, %s138
      %p140 = scmp.eq.s32.totalorder %s24, 0
      %p141 = por %p139, %p140
      %s143 = sadd.s32 %s142, 1
      %p146 = scmp.eq.s32.totalorder %s18, 1
      %p147 = scmp.ne.s32.totalorder %s142, %s144
      %p148 = scmp.eq.s32.totalorder %s18, 0
      %p149 = por %p147, %p148
      %p150 = scmp.ne.s32.totalorder %s142, %s144
      %p151 = scmp.eq.s32.totalorder %s23, 1
      %p152 = por %p150, %p151
      %p153 = scmp.ne.s32.totalorder %s144, %s145
      %p154 = scmp.eq.s32.totalorder %s23, 0
      %p155 = por %p153, %p154
      %p156 = scmp.ne.s32.totalorder %s144, %s145
      %p157 = scmp.eq.s32.totalorder %s24, 1
      %p158 = por %p156, %p157
      %p160 = scmp.ne.s32.totalorder %s145, %s159
      %p161 = scmp.eq.s32.totalorder %s24, 0
      %p162 = por %p160, %p161
      %s163 = ssub.s32 %s25, %s37
      %p164 = scmp.eq.s32.totalorder %s163, 0
      %s166 = sadd.s32 %s165, 1
      %s167 = scalar_select %p164, %s165, %s166
      %p170 = pneg %p164
      %p171 = scmp.eq.s32.totalorder %s18, 1
      %p172 = por %p170, %p171
      %p173 = scmp.ne.s32.totalorder %s165, %s168
      %p174 = scmp.eq.s32.totalorder %s18, 0
      %p175 = por %p173, %p174
      %p176 = scmp.ne.s32.totalorder %s165, %s168
      %p177 = scmp.eq.s32.totalorder %s23, 1
      %p178 = por %p176, %p177
      %p179 = scmp.ne.s32.totalorder %s168, %s169
      %p180 = scmp.eq.s32.totalorder %s23, 0
      %p181 = por %p179, %p180
      %p182 = scmp.ne.s32.totalorder %s168, %s169
      %p183 = scmp.eq.s32.totalorder %s24, 1
      %p184 = por %p182, %p183
      %p186 = scmp.ne.s32.totalorder %s169, %s185
      %p187 = scmp.eq.s32.totalorder %s24, 0
      %p188 = por %p186, %p187
      %p189 = scmp.le.s32.totalorder 1, %s18
      %p190 = scmp.lt.s32.totalorder %s18, 3
      %p191 = pnand %p189, %p190
      %p192 = pneg %p191
      // Predicated region
      $region9: #{feed_forward.1} parent=5 // pred_check
        _
      $region10: #{feed_forward.1} parent=5 // pred_check_branch
        %194 = sbr.rel (%p191) target = $region12
      $region11: #{feed_forward.1} parent=5 // pred_region
        %s195 = ssub.s32 %s18, 1
        // Predicated region
        $region13: #{feed_forward.1} parent=11 // pred_check
          %p196 = pneg %p82
        $region14: #{feed_forward.1} parent=11 // pred_check_branch
          %198 = sbr.rel (%p196) target = $region16
        $region15: #{feed_forward.1} parent=11 // pred_region
          %s199 = smul.u32 8, %s28
          %s201 = ssub.s32 16384, 16384
          %202 = vsyncadd [#allocation7], %s201
          %s203 = smul.addr %s199, 64
          %s204 = scalar_lea.hbm %s1, %s203
          %s205 = sshll.u32 [#allocation6], 4
          %s206 = int_to_ptr.vmem [resolvable:$true] %s205
          %211 = dma.hbm_to_vmem [thread:$0]  %s204, 16384, %s206, [#allocation7], 512, 512, 32
        $region16: #{feed_forward.1} parent=11 // pred_fallthru
          _
        // Predicated region
        $region17: #{feed_forward.1} parent=11 // pred_check
          %p212 = pneg %p108
        $region18: #{feed_forward.1} parent=11 // pred_check_branch
          %214 = sbr.rel (%p212) target = $region20
        $region19: #{feed_forward.1} parent=11 // pred_region
          %s215 = smul.u32 8, %s28
          %p216 = scmp.lt.s32.totalorder %s215, 7
          %s217 = scalar_select %p216, %s215, 7
          %s218 = scalar_lea.vmem %s2, %s217
          %s219 = smul.u32 8, %s28
        $region20: #{feed_forward.1} parent=11 // pred_fallthru
          _
        // Predicated region
        $region21: #{feed_forward.1} parent=11 // pred_check
          %p220 = pneg %p134
        $region22: #{feed_forward.1} parent=11 // pred_check_branch
          %222 = sbr.rel (%p220) target = $region24
        $region23: #{feed_forward.1} parent=11 // pred_region
          %s223 = smul.u32 128, %s28
          %s225 = ssub.s32 16384, 16384
          %226 = vsyncadd [#allocation7], %s225
          %s227 = smul.addr %s223, 2
          %s228 = smul.addr %s227, 64
          %s229 = scalar_lea.hbm %s3, %s228
          %s230 = sshll.u32 [#allocation8], 4
          %s231 = int_to_ptr.vmem [resolvable:$true] %s230
          %236 = dma.hbm_to_vmem [thread:$0]  %s229, 16384, %s231, [#allocation7], 128, 128, 8
        $region24: #{feed_forward.1} parent=11 // pred_fallthru
          _
        // Predicated region
        $region25: #{feed_forward.1} parent=11 // pred_check
          %p237 = pneg %p155
        $region26: #{feed_forward.1} parent=11 // pred_check_branch
          %239 = sbr.rel (%p237) target = $region28
        $region27: #{feed_forward.1} parent=11 // pred_region
          _
        $region28: #{feed_forward.1} parent=11 // pred_fallthru
          _
      $region12: #{feed_forward.1} parent=5 // pred_fallthru
        _
      %p240 = scmp.lt.s32.totalorder %s18, 2
      // Predicated region
      $region29: #{feed_forward.1} parent=5 // pred_check
        %p241 = pneg %p240
      $region30: #{feed_forward.1} parent=5 // pred_check_branch
        %243 = sbr.rel (%p241) target = $region32
      $region31: #{feed_forward.1} parent=5 // pred_region
        // Predicated region
        $region33: #{feed_forward.1} parent=31 // pred_check
          %p244 = pneg %p50
        $region34: #{feed_forward.1} parent=31 // pred_check_branch
          %246 = sbr.rel (%p244) target = $region36
        $region35: #{feed_forward.1} parent=31 // pred_region
          %s247 = sand.u32 %s40, 1
          %s248 = scalar_lea.sflag [#allocation4], %s247
          %s249 = sand.u32 %s40, 1
          %s250 = smul.addr %s249, 256
          %s251 = scalar_lea.vmem [#allocation3], %s250
          %s252 = smul.u32 32, %s25
          %s253 = ssub.s32 34, %s252
          %p254 = scmp.lt.s32.totalorder %s253, 32
          %s255 = scalar_select %p254, %s253, 32
          %s256 = smul.u32 64, %s255
          %s257 = smul.u32 %s256, 2
          %s259 = ssub.s32 4096, %s257
          %260 = vsyncadd %s248, %s259
          %p261 = scmp.ne.s32.totalorder 0, %s257
          %s262 = smul.addr %s252, 2
          %s263 = smul.addr %s262, 64
          %s264 = scalar_lea.hbm %s0, %s263
          %s265 = smul.u32 8, %s255
          %s266 = sshll.u32 %s251, 4
          %s267 = int_to_ptr.vmem [resolvable:$true] %s266
          %s268 = sshll.u32 %s265, 4
          %272 = dma.hbm_to_vmem [thread:$0]  (%p261), %s264, %s268, %s267, %s248, 128, 128, 8
        $region36: #{feed_forward.1} parent=31 // pred_fallthru
          _
      $region32: #{feed_forward.1} parent=5 // pred_fallthru
        _
      %p273 = scmp.le.s32.totalorder 1, %s18
      %p274 = scmp.lt.s32.totalorder %s18, 3
      %p275 = pnand %p273, %p274
      %p276 = pneg %p275
      // Predicated region
      $region37: #{feed_forward.1} parent=5 // pred_check
        _
      $region38: #{feed_forward.1} parent=5 // pred_check_branch
        %278 = sbr.rel (%p275) target = $region40
      $region39: #{feed_forward.1} parent=5 // pred_region
        %s279 = ssub.s32 %s18, 1
        %s280 = sand.u32 %s43, 1
        %s281 = scalar_lea.sflag [#allocation4], %s280
        %s282 = sand.u32 %s43, 1
        %s283 = smul.addr %s282, 256
        %s284 = scalar_lea.vmem [#allocation3], %s283
        // Predicated region
        $region41: #{feed_forward.1} parent=39 // pred_check
          %p285 = pneg %p56
        $region42: #{feed_forward.1} parent=39 // pred_check_branch
          %287 = sbr.rel (%p285) target = $region44
        $region43: #{feed_forward.1} parent=39 // pred_region
          %288 = dma.done %s281, 4096
        $region44: #{feed_forward.1} parent=39 // pred_fallthru
          _
        // Predicated region
        $region45: #{feed_forward.1} parent=39 // pred_check
          %p289 = pneg %p82
        $region46: #{feed_forward.1} parent=39 // pred_check_branch
          %291 = sbr.rel (%p289) target = $region48
        $region47: #{feed_forward.1} parent=39 // pred_region
          %292 = dma.done [#allocation7], 16384
        $region48: #{feed_forward.1} parent=39 // pred_fallthru
          _
        // Predicated region
        $region49: #{feed_forward.1} parent=39 // pred_check
          %p293 = pneg %p134
        $region50: #{feed_forward.1} parent=39 // pred_check_branch
          %295 = sbr.rel (%p293) target = $region52
        $region51: #{feed_forward.1} parent=39 // pred_region
          %296 = dma.done [#allocation7], 16384
        $region52: #{feed_forward.1} parent=39 // pred_fallthru
          _
        %s297 = sand.u32 %s43, 1
        %s298 = scalar_lea.sflag [#allocation4], %s297
        %s299 = sand.u32 %s43, 1
        %s300 = smul.addr %s299, 256
        %s301 = scalar_lea.vmem [#allocation3], %s300
        %p302 = pneg %p56
        %p303 = pneg %p53
        %p304 = pneg %p82
        %p305 = pneg %p79
        %s306 = smul.u32 8, %s28
        %p307 = scmp.lt.s32.totalorder %s306, 7
        %s308 = scalar_select %p307, %s306, 7
        %s309 = scalar_lea.vmem %s2, %s308
        %p310 = pneg %p108
        %p311 = pneg %p105
        %p312 = pneg %p134
        %p313 = pneg %p131
        %p314 = pneg %p155
        %p315 = pneg %p152
        %p316 = pneg %p181
        %p317 = pneg %p178
        %s318 = sand.u32 %s168, 1
        %s319 = scalar_lea.sflag [#allocation5], %s318
        %s320 = sand.u32 %s168, 1
        %s321 = smul.addr %s320, 256
        %s322 = scalar_lea.vmem [#allocation9], %s321
        %s323 = smul.u32 32, %s27
        %s324 = ssub.s32 34, %s323
        %p325 = scmp.lt.s32.totalorder %s324, 32
        %s326 = scalar_select %p325, %s324, 32
        %s327 = smul.u32 64, %s326
        %s328 = smul.u32 %s327, 2
        %s329 = smul.u32 8, %s28
        %s330 = smul.u32 8, %s28
        %p331 = scmp.lt.s32.totalorder %s330, 7
        %s332 = scalar_select %p331, %s330, 7
        %s333 = scalar_lea.vmem %s2, %s332
        %s334 = smul.u32 8, %s28
        %s335 = smul.u32 128, %s28
        %s336 = smul.u32 32, %s27
        %s337 = ssub.s32 34, %s336
        %p338 = scmp.lt.s32.totalorder %s337, 32
        %s339 = scalar_select %p338, %s337, 32
        %s340 = smul.u32 64, %s339
        %s341 = smul.u32 %s340, 2
        %p342 = scmp.eq.s32.totalorder %s28, 0
        // Predicated region
        $region53: #{feed_forward.1} parent=39 // pred_check
          %p343 = pneg %p342
        $region54: #{feed_forward.1} parent=39 // pred_check_branch
          %345 = sbr.rel (%p343) target = $region56
        $region55: #{feed_forward.1} parent=39 // pred_region
          %346 = vst [vmem:[#allocation2] sm:$0xff] 0.0
          %347 = vst [vmem:[#allocation2 + $0x8] sm:$0xff] 0.0
          %348 = vst [vmem:[#allocation2 + $0x10] sm:$0xff] 0.0
          %349 = vst [vmem:[#allocation2 + $0x18] sm:$0xff] 0.0
          %350 = vst [vmem:[#allocation2 + $0x20] sm:$0xff] 0.0
          %351 = vst [vmem:[#allocation2 + $0x28] sm:$0xff] 0.0
          %352 = vst [vmem:[#allocation2 + $0x30] sm:$0xff] 0.0
          %353 = vst [vmem:[#allocation2 + $0x38] sm:$0xff] 0.0
          %354 = vst [vmem:[#allocation2 + $0x40] sm:$0xff] 0.0
          %355 = vst [vmem:[#allocation2 + $0x48] sm:$0xff] 0.0
          %356 = vst [vmem:[#allocation2 + $0x50] sm:$0xff] 0.0
          %357 = vst [vmem:[#allocation2 + $0x58] sm:$0xff] 0.0
          %358 = vst [vmem:[#allocation2 + $0x60] sm:$0xff] 0.0
          %359 = vst [vmem:[#allocation2 + $0x68] sm:$0xff] 0.0
          %360 = vst [vmem:[#allocation2 + $0x70] sm:$0xff] 0.0
          %361 = vst [vmem:[#allocation2 + $0x78] sm:$0xff] 0.0
          %362 = vst [vmem:[#allocation2 + $0x80] sm:$0xff] 0.0
          %363 = vst [vmem:[#allocation2 + $0x88] sm:$0xff] 0.0
          %364 = vst [vmem:[#allocation2 + $0x90] sm:$0xff] 0.0
          %365 = vst [vmem:[#allocation2 + $0x98] sm:$0xff] 0.0
          %366 = vst [vmem:[#allocation2 + $0xa0] sm:$0xff] 0.0
          %367 = vst [vmem:[#allocation2 + $0xa8] sm:$0xff] 0.0
          %368 = vst [vmem:[#allocation2 + $0xb0] sm:$0xff] 0.0
          %369 = vst [vmem:[#allocation2 + $0xb8] sm:$0xff] 0.0
          %370 = vst [vmem:[#allocation2 + $0xc0] sm:$0xff] 0.0
          %371 = vst [vmem:[#allocation2 + $0xc8] sm:$0xff] 0.0
          %372 = vst [vmem:[#allocation2 + $0xd0] sm:$0xff] 0.0
          %373 = vst [vmem:[#allocation2 + $0xd8] sm:$0xff] 0.0
          %374 = vst [vmem:[#allocation2 + $0xe0] sm:$0xff] 0.0
          %375 = vst [vmem:[#allocation2 + $0xe8] sm:$0xff] 0.0
          %376 = vst [vmem:[#allocation2 + $0xf0] sm:$0xff] 0.0
          %377 = vst [vmem:[#allocation2 + $0xf8] sm:$0xff] 0.0
          %378 = vst [vmem:[#allocation2 + $0x100] sm:$0xff] 0.0
          %379 = vst [vmem:[#allocation2 + $0x108] sm:$0xff] 0.0
          %380 = vst [vmem:[#allocation2 + $0x110] sm:$0xff] 0.0
          %381 = vst [vmem:[#allocation2 + $0x118] sm:$0xff] 0.0
          %382 = vst [vmem:[#allocation2 + $0x120] sm:$0xff] 0.0
          %383 = vst [vmem:[#allocation2 + $0x128] sm:$0xff] 0.0
          %384 = vst [vmem:[#allocation2 + $0x130] sm:$0xff] 0.0
          %385 = vst [vmem:[#allocation2 + $0x138] sm:$0xff] 0.0
          %386 = vst [vmem:[#allocation2 + $0x140] sm:$0xff] 0.0
          %387 = vst [vmem:[#allocation2 + $0x148] sm:$0xff] 0.0
          %388 = vst [vmem:[#allocation2 + $0x150] sm:$0xff] 0.0
          %389 = vst [vmem:[#allocation2 + $0x158] sm:$0xff] 0.0
          %390 = vst [vmem:[#allocation2 + $0x160] sm:$0xff] 0.0
          %391 = vst [vmem:[#allocation2 + $0x168] sm:$0xff] 0.0
          %392 = vst [vmem:[#allocation2 + $0x170] sm:$0xff] 0.0
          %393 = vst [vmem:[#allocation2 + $0x178] sm:$0xff] 0.0
          %394 = vst [vmem:[#allocation2 + $0x180] sm:$0xff] 0.0
          %395 = vst [vmem:[#allocation2 + $0x188] sm:$0xff] 0.0
          %396 = vst [vmem:[#allocation2 + $0x190] sm:$0xff] 0.0
          %397 = vst [vmem:[#allocation2 + $0x198] sm:$0xff] 0.0
          %398 = vst [vmem:[#allocation2 + $0x1a0] sm:$0xff] 0.0
          %399 = vst [vmem:[#allocation2 + $0x1a8] sm:$0xff] 0.0
          %400 = vst [vmem:[#allocation2 + $0x1b0] sm:$0xff] 0.0
          %401 = vst [vmem:[#allocation2 + $0x1b8] sm:$0xff] 0.0
          %402 = vst [vmem:[#allocation2 + $0x1c0] sm:$0xff] 0.0
          %403 = vst [vmem:[#allocation2 + $0x1c8] sm:$0xff] 0.0
          %404 = vst [vmem:[#allocation2 + $0x1d0] sm:$0xff] 0.0
          %405 = vst [vmem:[#allocation2 + $0x1d8] sm:$0xff] 0.0
          %406 = vst [vmem:[#allocation2 + $0x1e0] sm:$0xff] 0.0
          %407 = vst [vmem:[#allocation2 + $0x1e8] sm:$0xff] 0.0
          %408 = vst [vmem:[#allocation2 + $0x1f0] sm:$0xff] 0.0
          %409 = vst [vmem:[#allocation2 + $0x1f8] sm:$0xff] 0.0
        $region56: #{feed_forward.1} parent=39 // pred_fallthru
          _
        %v410 = vld [vmem:[%s284] sm:$0xff]
        %v411 = vld [vmem:[%s284 + $0x8] sm:$0xff]
        %v412 = vld [vmem:[%s284 + $0x10] sm:$0xff]
        %v413 = vld [vmem:[%s284 + $0x18] sm:$0xff]
        %v414 = vld [vmem:[%s284 + $0x20] sm:$0xff]
        %v415 = vld [vmem:[%s284 + $0x28] sm:$0xff]
        %v416 = vld [vmem:[%s284 + $0x30] sm:$0xff]
        %v417 = vld [vmem:[%s284 + $0x38] sm:$0xff]
        %v418 = vld [vmem:[%s284 + $0x40] sm:$0xff]
        %v419 = vld [vmem:[%s284 + $0x48] sm:$0xff]
        %v420 = vld [vmem:[%s284 + $0x50] sm:$0xff]
        %v421 = vld [vmem:[%s284 + $0x58] sm:$0xff]
        %v422 = vld [vmem:[%s284 + $0x60] sm:$0xff]
        %v423 = vld [vmem:[%s284 + $0x68] sm:$0xff]
        %v424 = vld [vmem:[%s284 + $0x70] sm:$0xff]
        %v425 = vld [vmem:[%s284 + $0x78] sm:$0xff]
        %v426 = vld [vmem:[%s284 + $0x80] sm:$0xff]
        %v427 = vld [vmem:[%s284 + $0x88] sm:$0xff]
        %v428 = vld [vmem:[%s284 + $0x90] sm:$0xff]
        %v429 = vld [vmem:[%s284 + $0x98] sm:$0xff]
        %v430 = vld [vmem:[%s284 + $0xa0] sm:$0xff]
        %v431 = vld [vmem:[%s284 + $0xa8] sm:$0xff]
        %v432 = vld [vmem:[%s284 + $0xb0] sm:$0xff]
        %v433 = vld [vmem:[%s284 + $0xb8] sm:$0xff]
        %v434 = vld [vmem:[%s284 + $0xc0] sm:$0xff]
        %v435 = vld [vmem:[%s284 + $0xc8] sm:$0xff]
        %v436 = vld [vmem:[%s284 + $0xd0] sm:$0xff]
        %v437 = vld [vmem:[%s284 + $0xd8] sm:$0xff]
        %v438 = vld [vmem:[%s284 + $0xe0] sm:$0xff]
        %v439 = vld [vmem:[%s284 + $0xe8] sm:$0xff]
        %v440 = vld [vmem:[%s284 + $0xf0] sm:$0xff]
        %v441 = vld [vmem:[%s284 + $0xf8] sm:$0xff]
        %v442 = vld [vmem:[#allocation6] sm:$0xff]
        %v443 = vld [vmem:[#allocation6 + $0x8] sm:$0xff]
        %v444 = vld [vmem:[#allocation6 + $0x10] sm:$0xff]
        %v445 = vld [vmem:[#allocation6 + $0x18] sm:$0xff]
        %v446 = vld [vmem:[#allocation6 + $0x20] sm:$0xff]
        %v447 = vld [vmem:[#allocation6 + $0x28] sm:$0xff]
        %v448 = vld [vmem:[#allocation6 + $0x30] sm:$0xff]
        %v449 = vld [vmem:[#allocation6 + $0x38] sm:$0xff]
        %v450 = vld [vmem:[#allocation6 + $0x40] sm:$0xff]
        %v451 = vld [vmem:[#allocation6 + $0x48] sm:$0xff]
        %v452 = vld [vmem:[#allocation6 + $0x50] sm:$0xff]
        %v453 = vld [vmem:[#allocation6 + $0x58] sm:$0xff]
        %v454 = vld [vmem:[#allocation6 + $0x60] sm:$0xff]
        %v455 = vld [vmem:[#allocation6 + $0x68] sm:$0xff]
        %v456 = vld [vmem:[#allocation6 + $0x70] sm:$0xff]
        %v457 = vld [vmem:[#allocation6 + $0x78] sm:$0xff]
        %v458 = vld [vmem:[#allocation6 + $0x80] sm:$0xff]
        %v459 = vld [vmem:[#allocation6 + $0x88] sm:$0xff]
        %v460 = vld [vmem:[#allocation6 + $0x90] sm:$0xff]
        %v461 = vld [vmem:[#allocation6 + $0x98] sm:$0xff]
        %v462 = vld [vmem:[#allocation6 + $0xa0] sm:$0xff]
        %v463 = vld [vmem:[#allocation6 + $0xa8] sm:$0xff]
        %v464 = vld [vmem:[#allocation6 + $0xb0] sm:$0xff]
        %v465 = vld [vmem:[#allocation6 + $0xb8] sm:$0xff]
        %v466 = vld [vmem:[#allocation6 + $0xc0] sm:$0xff]
        %v467 = vld [vmem:[#allocation6 + $0xc8] sm:$0xff]
        %v468 = vld [vmem:[#allocation6 + $0xd0] sm:$0xff]
        %v469 = vld [vmem:[#allocation6 + $0xd8] sm:$0xff]
        %v470 = vld [vmem:[#allocation6 + $0xe0] sm:$0xff]
        %v471 = vld [vmem:[#allocation6 + $0xe8] sm:$0xff]
        %v472 = vld [vmem:[#allocation6 + $0xf0] sm:$0xff]
        %v473 = vld [vmem:[#allocation6 + $0xf8] sm:$0xff]
        %v474 = vld [vmem:[#allocation6 + $0x100] sm:$0xff]
        %v475 = vld [vmem:[#allocation6 + $0x108] sm:$0xff]
        %v476 = vld [vmem:[#allocation6 + $0x110] sm:$0xff]
        %v477 = vld [vmem:[#allocation6 + $0x118] sm:$0xff]
        %v478 = vld [vmem:[#allocation6 + $0x120] sm:$0xff]
        %v479 = vld [vmem:[#allocation6 + $0x128] sm:$0xff]
        %v480 = vld [vmem:[#allocation6 + $0x130] sm:$0xff]
        %v481 = vld [vmem:[#allocation6 + $0x138] sm:$0xff]
        %v482 = vld [vmem:[#allocation6 + $0x140] sm:$0xff]
        %v483 = vld [vmem:[#allocation6 + $0x148] sm:$0xff]
        %v484 = vld [vmem:[#allocation6 + $0x150] sm:$0xff]
        %v485 = vld [vmem:[#allocation6 + $0x158] sm:$0xff]
        %v486 = vld [vmem:[#allocation6 + $0x160] sm:$0xff]
        %v487 = vld [vmem:[#allocation6 + $0x168] sm:$0xff]
        %v488 = vld [vmem:[#allocation6 + $0x170] sm:$0xff]
        %v489 = vld [vmem:[#allocation6 + $0x178] sm:$0xff]
        %v490 = vld [vmem:[#allocation6 + $0x180] sm:$0xff]
        %v491 = vld [vmem:[#allocation6 + $0x188] sm:$0xff]
        %v492 = vld [vmem:[#allocation6 + $0x190] sm:$0xff]
        %v493 = vld [vmem:[#allocation6 + $0x198] sm:$0xff]
        %v494 = vld [vmem:[#allocation6 + $0x1a0] sm:$0xff]
        %v495 = vld [vmem:[#allocation6 + $0x1a8] sm:$0xff]
        %v496 = vld [vmem:[#allocation6 + $0x1b0] sm:$0xff]
        %v497 = vld [vmem:[#allocation6 + $0x1b8] sm:$0xff]
        %v498 = vld [vmem:[#allocation6 + $0x1c0] sm:$0xff]
        %v499 = vld [vmem:[#allocation6 + $0x1c8] sm:$0xff]
        %v500 = vld [vmem:[#allocation6 + $0x1d0] sm:$0xff]
        %v501 = vld [vmem:[#allocation6 + $0x1d8] sm:$0xff]
        %v502 = vld [vmem:[#allocation6 + $0x1e0] sm:$0xff]
        %v503 = vld [vmem:[#allocation6 + $0x1e8] sm:$0xff]
        %v504 = vld [vmem:[#allocation6 + $0x1f0] sm:$0xff]
        %v505 = vld [vmem:[#allocation6 + $0x1f8] sm:$0xff]
        %v506 = vld [vmem:[#allocation6 + $0x200] sm:$0xff]
        %v507 = vld [vmem:[#allocation6 + $0x208] sm:$0xff]
        %v508 = vld [vmem:[#allocation6 + $0x210] sm:$0xff]
        %v509 = vld [vmem:[#allocation6 + $0x218] sm:$0xff]
        %v510 = vld [vmem:[#allocation6 + $0x220] sm:$0xff]
        %v511 = vld [vmem:[#allocation6 + $0x228] sm:$0xff]
        %v512 = vld [vmem:[#allocation6 + $0x230] sm:$0xff]
        %v513 = vld [vmem:[#allocation6 + $0x238] sm:$0xff]
        %v514 = vld [vmem:[#allocation6 + $0x240] sm:$0xff]
        %v515 = vld [vmem:[#allocation6 + $0x248] sm:$0xff]
        %v516 = vld [vmem:[#allocation6 + $0x250] sm:$0xff]
        %v517 = vld [vmem:[#allocation6 + $0x258] sm:$0xff]
        %v518 = vld [vmem:[#allocation6 + $0x260] sm:$0xff]
        %v519 = vld [vmem:[#allocation6 + $0x268] sm:$0xff]
        %v520 = vld [vmem:[#allocation6 + $0x270] sm:$0xff]
        %v521 = vld [vmem:[#allocation6 + $0x278] sm:$0xff]
        %v522 = vld [vmem:[#allocation6 + $0x280] sm:$0xff]
        %v523 = vld [vmem:[#allocation6 + $0x288] sm:$0xff]
        %v524 = vld [vmem:[#allocation6 + $0x290] sm:$0xff]
        %v525 = vld [vmem:[#allocation6 + $0x298] sm:$0xff]
        %v526 = vld [vmem:[#allocation6 + $0x2a0] sm:$0xff]
        %v527 = vld [vmem:[#allocation6 + $0x2a8] sm:$0xff]
        %v528 = vld [vmem:[#allocation6 + $0x2b0] sm:$0xff]
        %v529 = vld [vmem:[#allocation6 + $0x2b8] sm:$0xff]
        %v530 = vld [vmem:[#allocation6 + $0x2c0] sm:$0xff]
        %v531 = vld [vmem:[#allocation6 + $0x2c8] sm:$0xff]
        %v532 = vld [vmem:[#allocation6 + $0x2d0] sm:$0xff]
        %v533 = vld [vmem:[#allocation6 + $0x2d8] sm:$0xff]
        %v534 = vld [vmem:[#allocation6 + $0x2e0] sm:$0xff]
        %v535 = vld [vmem:[#allocation6 + $0x2e8] sm:$0xff]
        %v536 = vld [vmem:[#allocation6 + $0x2f0] sm:$0xff]
        %v537 = vld [vmem:[#allocation6 + $0x2f8] sm:$0xff]
        %v538 = vld [vmem:[#allocation6 + $0x300] sm:$0xff]
        %v539 = vld [vmem:[#allocation6 + $0x308] sm:$0xff]
        %v540 = vld [vmem:[#allocation6 + $0x310] sm:$0xff]
        %v541 = vld [vmem:[#allocation6 + $0x318] sm:$0xff]
        %v542 = vld [vmem:[#allocation6 + $0x320] sm:$0xff]
        %v543 = vld [vmem:[#allocation6 + $0x328] sm:$0xff]
        %v544 = vld [vmem:[#allocation6 + $0x330] sm:$0xff]
        %v545 = vld [vmem:[#allocation6 + $0x338] sm:$0xff]
        %v546 = vld [vmem:[#allocation6 + $0x340] sm:$0xff]
        %v547 = vld [vmem:[#allocation6 + $0x348] sm:$0xff]
        %v548 = vld [vmem:[#allocation6 + $0x350] sm:$0xff]
        %v549 = vld [vmem:[#allocation6 + $0x358] sm:$0xff]
        %v550 = vld [vmem:[#allocation6 + $0x360] sm:$0xff]
        %v551 = vld [vmem:[#allocation6 + $0x368] sm:$0xff]
        %v552 = vld [vmem:[#allocation6 + $0x370] sm:$0xff]
        %v553 = vld [vmem:[#allocation6 + $0x378] sm:$0xff]
        %v554 = vld [vmem:[#allocation6 + $0x380] sm:$0xff]
        %v555 = vld [vmem:[#allocation6 + $0x388] sm:$0xff]
        %v556 = vld [vmem:[#allocation6 + $0x390] sm:$0xff]
        %v557 = vld [vmem:[#allocation6 + $0x398] sm:$0xff]
        %v558 = vld [vmem:[#allocation6 + $0x3a0] sm:$0xff]
        %v559 = vld [vmem:[#allocation6 + $0x3a8] sm:$0xff]
        %v560 = vld [vmem:[#allocation6 + $0x3b0] sm:$0xff]
        %v561 = vld [vmem:[#allocation6 + $0x3b8] sm:$0xff]
        %v562 = vld [vmem:[#allocation6 + $0x3c0] sm:$0xff]
        %v563 = vld [vmem:[#allocation6 + $0x3c8] sm:$0xff]
        %v564 = vld [vmem:[#allocation6 + $0x3d0] sm:$0xff]
        %v565 = vld [vmem:[#allocation6 + $0x3d8] sm:$0xff]
        %v566 = vld [vmem:[#allocation6 + $0x3e0] sm:$0xff]
        %v567 = vld [vmem:[#allocation6 + $0x3e8] sm:$0xff]
        %v568 = vld [vmem:[#allocation6 + $0x3f0] sm:$0xff]
        %v569 = vld [vmem:[#allocation6 + $0x3f8] sm:$0xff]
        %v570 = vld [vmem:[%s333] sm:$0xff]
        %v572 = vlaneseq
        %v573 = vshrl.u32 %v572, 7
        %v574 = vsub.s32 0, %v573
        %v575 = vrot.slane %v570, %v574
        %v576 = vlaneseq
        %v577 = vshrl.u32 %v576, 7
        %v578 = vsub.s32 1, %v577
        %v579 = vrot.slane %v570, %v578
        %v580 = vlaneseq
        %v581 = vshrl.u32 %v580, 7
        %v582 = vsub.s32 2, %v581
        %v583 = vrot.slane %v570, %v582
        %v584 = vlaneseq
        %v585 = vshrl.u32 %v584, 7
        %v586 = vsub.s32 3, %v585
        %v587 = vrot.slane %v570, %v586
        %v588 = vlaneseq
        %v589 = vshrl.u32 %v588, 7
        %v590 = vsub.s32 4, %v589
        %v591 = vrot.slane %v570, %v590
        %v592 = vlaneseq
        %v593 = vshrl.u32 %v592, 7
        %v594 = vsub.s32 5, %v593
        %v595 = vrot.slane %v570, %v594
        %v596 = vlaneseq
        %v597 = vshrl.u32 %v596, 7
        %v598 = vsub.s32 6, %v597
        %v599 = vrot.slane %v570, %v598
        %v600 = vlaneseq
        %v601 = vshrl.u32 %v600, 7
        %v602 = vsub.s32 7, %v601
        %v603 = vrot.slane %v570, %v602
        %v644 = vunpack.c.l.b16 %v410
        %v645 = vunpack.c.h.b16 %v410
        %v646 = vunpack.c.l.b16 %v411
        %v647 = vunpack.c.h.b16 %v411
        %v648 = vunpack.c.l.b16 %v412
        %v649 = vunpack.c.h.b16 %v412
        %v650 = vunpack.c.l.b16 %v413
        %v651 = vunpack.c.h.b16 %v413
        %v652 = vunpack.c.l.b16 %v414
        %v653 = vunpack.c.h.b16 %v414
        %v654 = vunpack.c.l.b16 %v415
        %v655 = vunpack.c.h.b16 %v415
        %v656 = vunpack.c.l.b16 %v416
        %v657 = vunpack.c.h.b16 %v416
        %v658 = vunpack.c.l.b16 %v417
        %v659 = vunpack.c.h.b16 %v417
        %v660 = vunpack.c.l.b16 %v418
        %v661 = vunpack.c.h.b16 %v418
        %v662 = vunpack.c.l.b16 %v419
        %v663 = vunpack.c.h.b16 %v419
        %v664 = vunpack.c.l.b16 %v420
        %v665 = vunpack.c.h.b16 %v420
        %v666 = vunpack.c.l.b16 %v421
        %v667 = vunpack.c.h.b16 %v421
        %v668 = vunpack.c.l.b16 %v422
        %v669 = vunpack.c.h.b16 %v422
        %v670 = vunpack.c.l.b16 %v423
        %v671 = vunpack.c.h.b16 %v423
        %v672 = vunpack.c.l.b16 %v424
        %v673 = vunpack.c.h.b16 %v424
        %v674 = vunpack.c.l.b16 %v425
        %v675 = vunpack.c.h.b16 %v425
        %v676 = vunpack.c.l.b16 %v426
        %v677 = vunpack.c.h.b16 %v426
        %v678 = vunpack.c.l.b16 %v427
        %v679 = vunpack.c.h.b16 %v427
        %v680 = vunpack.c.l.b16 %v428
        %v681 = vunpack.c.h.b16 %v428
        %v682 = vunpack.c.l.b16 %v429
        %v683 = vunpack.c.h.b16 %v429
        %v684 = vunpack.c.l.b16 %v430
        %v685 = vunpack.c.h.b16 %v430
        %v686 = vunpack.c.l.b16 %v431
        %v687 = vunpack.c.h.b16 %v431
        %v688 = vunpack.c.l.b16 %v432
        %v689 = vunpack.c.h.b16 %v432
        %v690 = vunpack.c.l.b16 %v433
        %v691 = vunpack.c.h.b16 %v433
        %v692 = vunpack.c.l.b16 %v434
        %v693 = vunpack.c.h.b16 %v434
        %v694 = vunpack.c.l.b16 %v435
        %v695 = vunpack.c.h.b16 %v435
        %v696 = vunpack.c.l.b16 %v436
        %v697 = vunpack.c.h.b16 %v436
        %v698 = vunpack.c.l.b16 %v437
        %v699 = vunpack.c.h.b16 %v437
        %v700 = vunpack.c.l.b16 %v438
        %v701 = vunpack.c.h.b16 %v438
        %v702 = vunpack.c.l.b16 %v439
        %v703 = vunpack.c.h.b16 %v439
        %v704 = vunpack.c.l.b16 %v440
        %v705 = vunpack.c.h.b16 %v440
        %v706 = vunpack.c.l.b16 %v441
        %v707 = vunpack.c.h.b16 %v441
        %v708 = vpack.c.b16 %v646, %v644
        %v709 = vpack.c.b16 %v647, %v645
        %v710 = vpack.c.b16 %v650, %v648
        %v711 = vpack.c.b16 %v651, %v649
        %v712 = vpack.c.b16 %v654, %v652
        %v713 = vpack.c.b16 %v655, %v653
        %v714 = vpack.c.b16 %v658, %v656
        %v715 = vpack.c.b16 %v659, %v657
        %v716 = vpack.c.b16 %v662, %v660
        %v717 = vpack.c.b16 %v663, %v661
        %v718 = vpack.c.b16 %v666, %v664
        %v719 = vpack.c.b16 %v667, %v665
        %v720 = vpack.c.b16 %v670, %v668
        %v721 = vpack.c.b16 %v671, %v669
        %v722 = vpack.c.b16 %v674, %v672
        %v723 = vpack.c.b16 %v675, %v673
        %v724 = vpack.c.b16 %v678, %v676
        %v725 = vpack.c.b16 %v679, %v677
        %v726 = vpack.c.b16 %v682, %v680
        %v727 = vpack.c.b16 %v683, %v681
        %v728 = vpack.c.b16 %v686, %v684
        %v729 = vpack.c.b16 %v687, %v685
        %v730 = vpack.c.b16 %v690, %v688
        %v731 = vpack.c.b16 %v691, %v689
        %v732 = vpack.c.b16 %v694, %v692
        %v733 = vpack.c.b16 %v695, %v693
        %v734 = vpack.c.b16 %v698, %v696
        %v735 = vpack.c.b16 %v699, %v697
        %v736 = vpack.c.b16 %v702, %v700
        %v737 = vpack.c.b16 %v703, %v701
        %v738 = vpack.c.b16 %v706, %v704
        %v739 = vpack.c.b16 %v707, %v705
        %v900 = vunpack.c.l.b16 %v442
        %v901 = vunpack.c.h.b16 %v442
        %v902 = vunpack.c.l.b16 %v443
        %v903 = vunpack.c.h.b16 %v443
        %v904 = vunpack.c.l.b16 %v444
        %v905 = vunpack.c.h.b16 %v444
        %v906 = vunpack.c.l.b16 %v445
        %v907 = vunpack.c.h.b16 %v445
        %v908 = vunpack.c.l.b16 %v446
        %v909 = vunpack.c.h.b16 %v446
        %v910 = vunpack.c.l.b16 %v447
        %v911 = vunpack.c.h.b16 %v447
        %v912 = vunpack.c.l.b16 %v448
        %v913 = vunpack.c.h.b16 %v448
        %v914 = vunpack.c.l.b16 %v449
        %v915 = vunpack.c.h.b16 %v449
        %v916 = vunpack.c.l.b16 %v450
        %v917 = vunpack.c.h.b16 %v450
        %v918 = vunpack.c.l.b16 %v451
        %v919 = vunpack.c.h.b16 %v451
        %v920 = vunpack.c.l.b16 %v452
        %v921 = vunpack.c.h.b16 %v452
        %v922 = vunpack.c.l.b16 %v453
        %v923 = vunpack.c.h.b16 %v453
        %v924 = vunpack.c.l.b16 %v454
        %v925 = vunpack.c.h.b16 %v454
        %v926 = vunpack.c.l.b16 %v455
        %v927 = vunpack.c.h.b16 %v455
        %v928 = vunpack.c.l.b16 %v456
        %v929 = vunpack.c.h.b16 %v456
        %v930 = vunpack.c.l.b16 %v457
        %v931 = vunpack.c.h.b16 %v457
        %v932 = vunpack.c.l.b16 %v458
        %v933 = vunpack.c.h.b16 %v458
        %v934 = vunpack.c.l.b16 %v459
        %v935 = vunpack.c.h.b16 %v459
        %v936 = vunpack.c.l.b16 %v460
        %v937 = vunpack.c.h.b16 %v460
        %v938 = vunpack.c.l.b16 %v461
        %v939 = vunpack.c.h.b16 %v461
        %v940 = vunpack.c.l.b16 %v462
        %v941 = vunpack.c.h.b16 %v462
        %v942 = vunpack.c.l.b16 %v463
        %v943 = vunpack.c.h.b16 %v463
        %v944 = vunpack.c.l.b16 %v464
        %v945 = vunpack.c.h.b16 %v464
        %v946 = vunpack.c.l.b16 %v465
        %v947 = vunpack.c.h.b16 %v465
        %v948 = vunpack.c.l.b16 %v466
        %v949 = vunpack.c.h.b16 %v466
        %v950 = vunpack.c.l.b16 %v467
        %v951 = vunpack.c.h.b16 %v467
        %v952 = vunpack.c.l.b16 %v468
        %v953 = vunpack.c.h.b16 %v468
        %v954 = vunpack.c.l.b16 %v469
        %v955 = vunpack.c.h.b16 %v469
        %v956 = vunpack.c.l.b16 %v470
        %v957 = vunpack.c.h.b16 %v470
        %v958 = vunpack.c.l.b16 %v471
        %v959 = vunpack.c.h.b16 %v471
        %v960 = vunpack.c.l.b16 %v472
        %v961 = vunpack.c.h.b16 %v472
        %v962 = vunpack.c.l.b16 %v473
        %v963 = vunpack.c.h.b16 %v473
        %v964 = vunpack.c.l.b16 %v474
        %v965 = vunpack.c.h.b16 %v474
        %v966 = vunpack.c.l.b16 %v475
        %v967 = vunpack.c.h.b16 %v475
        %v968 = vunpack.c.l.b16 %v476
        %v969 = vunpack.c.h.b16 %v476
        %v970 = vunpack.c.l.b16 %v477
        %v971 = vunpack.c.h.b16 %v477
        %v972 = vunpack.c.l.b16 %v478
        %v973 = vunpack.c.h.b16 %v478
        %v974 = vunpack.c.l.b16 %v479
        %v975 = vunpack.c.h.b16 %v479
        %v976 = vunpack.c.l.b16 %v480
        %v977 = vunpack.c.h.b16 %v480
        %v978 = vunpack.c.l.b16 %v481
        %v979 = vunpack.c.h.b16 %v481
        %v980 = vunpack.c.l.b16 %v482
        %v981 = vunpack.c.h.b16 %v482
        %v982 = vunpack.c.l.b16 %v483
        %v983 = vunpack.c.h.b16 %v483
        %v984 = vunpack.c.l.b16 %v484
        %v985 = vunpack.c.h.b16 %v484
        %v986 = vunpack.c.l.b16 %v485
        %v987 = vunpack.c.h.b16 %v485
        %v988 = vunpack.c.l.b16 %v486
        %v989 = vunpack.c.h.b16 %v486
        %v990 = vunpack.c.l.b16 %v487
        %v991 = vunpack.c.h.b16 %v487
        %v992 = vunpack.c.l.b16 %v488
        %v993 = vunpack.c.h.b16 %v488
        %v994 = vunpack.c.l.b16 %v489
        %v995 = vunpack.c.h.b16 %v489
        %v996 = vunpack.c.l.b16 %v490
        %v997 = vunpack.c.h.b16 %v490
        %v998 = vunpack.c.l.b16 %v491
        %v999 = vunpack.c.h.b16 %v491
        %v1000 = vunpack.c.l.b16 %v492
        %v1001 = vunpack.c.h.b16 %v492
        %v1002 = vunpack.c.l.b16 %v493
        %v1003 = vunpack.c.h.b16 %v493
        %v1004 = vunpack.c.l.b16 %v494
        %v1005 = vunpack.c.h.b16 %v494
        %v1006 = vunpack.c.l.b16 %v495
        %v1007 = vunpack.c.h.b16 %v495
        %v1008 = vunpack.c.l.b16 %v496
        %v1009 = vunpack.c.h.b16 %v496
        %v1010 = vunpack.c.l.b16 %v497
        %v1011 = vunpack.c.h.b16 %v497
        %v1012 = vunpack.c.l.b16 %v498
        %v1013 = vunpack.c.h.b16 %v498
        %v1014 = vunpack.c.l.b16 %v499
        %v1015 = vunpack.c.h.b16 %v499
        %v1016 = vunpack.c.l.b16 %v500
        %v1017 = vunpack.c.h.b16 %v500
        %v1018 = vunpack.c.l.b16 %v501
        %v1019 = vunpack.c.h.b16 %v501
        %v1020 = vunpack.c.l.b16 %v502
        %v1021 = vunpack.c.h.b16 %v502
        %v1022 = vunpack.c.l.b16 %v503
        %v1023 = vunpack.c.h.b16 %v503
        %v1024 = vunpack.c.l.b16 %v504
        %v1025 = vunpack.c.h.b16 %v504
        %v1026 = vunpack.c.l.b16 %v505
        %v1027 = vunpack.c.h.b16 %v505
        %v1028 = vunpack.c.l.b16 %v506
        %v1029 = vunpack.c.h.b16 %v506
        %v1030 = vunpack.c.l.b16 %v507
        %v1031 = vunpack.c.h.b16 %v507
        %v1032 = vunpack.c.l.b16 %v508
        %v1033 = vunpack.c.h.b16 %v508
        %v1034 = vunpack.c.l.b16 %v509
        %v1035 = vunpack.c.h.b16 %v509
        %v1036 = vunpack.c.l.b16 %v510
        %v1037 = vunpack.c.h.b16 %v510
        %v1038 = vunpack.c.l.b16 %v511
        %v1039 = vunpack.c.h.b16 %v511
        %v1040 = vunpack.c.l.b16 %v512
        %v1041 = vunpack.c.h.b16 %v512
        %v1042 = vunpack.c.l.b16 %v513
        %v1043 = vunpack.c.h.b16 %v513
        %v1044 = vunpack.c.l.b16 %v514
        %v1045 = vunpack.c.h.b16 %v514
        %v1046 = vunpack.c.l.b16 %v515
        %v1047 = vunpack.c.h.b16 %v515
        %v1048 = vunpack.c.l.b16 %v516
        %v1049 = vunpack.c.h.b16 %v516
        %v1050 = vunpack.c.l.b16 %v517
        %v1051 = vunpack.c.h.b16 %v517
        %v1052 = vunpack.c.l.b16 %v518
        %v1053 = vunpack.c.h.b16 %v518
        %v1054 = vunpack.c.l.b16 %v519
        %v1055 = vunpack.c.h.b16 %v519
        %v1056 = vunpack.c.l.b16 %v520
        %v1057 = vunpack.c.h.b16 %v520
        %v1058 = vunpack.c.l.b16 %v521
        %v1059 = vunpack.c.h.b16 %v521
        %v1060 = vunpack.c.l.b16 %v522
        %v1061 = vunpack.c.h.b16 %v522
        %v1062 = vunpack.c.l.b16 %v523
        %v1063 = vunpack.c.h.b16 %v523
        %v1064 = vunpack.c.l.b16 %v524
        %v1065 = vunpack.c.h.b16 %v524
        %v1066 = vunpack.c.l.b16 %v525
        %v1067 = vunpack.c.h.b16 %v525
        %v1068 = vunpack.c.l.b16 %v526
        %v1069 = vunpack.c.h.b16 %v526
        %v1070 = vunpack.c.l.b16 %v527
        %v1071 = vunpack.c.h.b16 %v527
        %v1072 = vunpack.c.l.b16 %v528
        %v1073 = vunpack.c.h.b16 %v528
        %v1074 = vunpack.c.l.b16 %v529
        %v1075 = vunpack.c.h.b16 %v529
        %v1076 = vunpack.c.l.b16 %v530
        %v1077 = vunpack.c.h.b16 %v530
        %v1078 = vunpack.c.l.b16 %v531
        %v1079 = vunpack.c.h.b16 %v531
        %v1080 = vunpack.c.l.b16 %v532
        %v1081 = vunpack.c.h.b16 %v532
        %v1082 = vunpack.c.l.b16 %v533
        %v1083 = vunpack.c.h.b16 %v533
        %v1084 = vunpack.c.l.b16 %v534
        %v1085 = vunpack.c.h.b16 %v534
        %v1086 = vunpack.c.l.b16 %v535
        %v1087 = vunpack.c.h.b16 %v535
        %v1088 = vunpack.c.l.b16 %v536
        %v1089 = vunpack.c.h.b16 %v536
        %v1090 = vunpack.c.l.b16 %v537
        %v1091 = vunpack.c.h.b16 %v537
        %v1092 = vunpack.c.l.b16 %v538
        %v1093 = vunpack.c.h.b16 %v538
        %v1094 = vunpack.c.l.b16 %v539
        %v1095 = vunpack.c.h.b16 %v539
        %v1096 = vunpack.c.l.b16 %v540
        %v1097 = vunpack.c.h.b16 %v540
        %v1098 = vunpack.c.l.b16 %v541
        %v1099 = vunpack.c.h.b16 %v541
        %v1100 = vunpack.c.l.b16 %v542
        %v1101 = vunpack.c.h.b16 %v542
        %v1102 = vunpack.c.l.b16 %v543
        %v1103 = vunpack.c.h.b16 %v543
        %v1104 = vunpack.c.l.b16 %v544
        %v1105 = vunpack.c.h.b16 %v544
        %v1106 = vunpack.c.l.b16 %v545
        %v1107 = vunpack.c.h.b16 %v545
        %v1108 = vunpack.c.l.b16 %v546
        %v1109 = vunpack.c.h.b16 %v546
        %v1110 = vunpack.c.l.b16 %v547
        %v1111 = vunpack.c.h.b16 %v547
        %v1112 = vunpack.c.l.b16 %v548
        %v1113 = vunpack.c.h.b16 %v548
        %v1114 = vunpack.c.l.b16 %v549
        %v1115 = vunpack.c.h.b16 %v549
        %v1116 = vunpack.c.l.b16 %v550
        %v1117 = vunpack.c.h.b16 %v550
        %v1118 = vunpack.c.l.b16 %v551
        %v1119 = vunpack.c.h.b16 %v551
        %v1120 = vunpack.c.l.b16 %v552
        %v1121 = vunpack.c.h.b16 %v552
        %v1122 = vunpack.c.l.b16 %v553
        %v1123 = vunpack.c.h.b16 %v553
        %v1124 = vunpack.c.l.b16 %v554
        %v1125 = vunpack.c.h.b16 %v554
        %v1126 = vunpack.c.l.b16 %v555
        %v1127 = vunpack.c.h.b16 %v555
        %v1128 = vunpack.c.l.b16 %v556
        %v1129 = vunpack.c.h.b16 %v556
        %v1130 = vunpack.c.l.b16 %v557
        %v1131 = vunpack.c.h.b16 %v557
        %v1132 = vunpack.c.l.b16 %v558
        %v1133 = vunpack.c.h.b16 %v558
        %v1134 = vunpack.c.l.b16 %v559
        %v1135 = vunpack.c.h.b16 %v559
        %v1136 = vunpack.c.l.b16 %v560
        %v1137 = vunpack.c.h.b16 %v560
        %v1138 = vunpack.c.l.b16 %v561
        %v1139 = vunpack.c.h.b16 %v561
        %v1140 = vunpack.c.l.b16 %v562
        %v1141 = vunpack.c.h.b16 %v562
        %v1142 = vunpack.c.l.b16 %v563
        %v1143 = vunpack.c.h.b16 %v563
        %v1144 = vunpack.c.l.b16 %v564
        %v1145 = vunpack.c.h.b16 %v564
        %v1146 = vunpack.c.l.b16 %v565
        %v1147 = vunpack.c.h.b16 %v565
        %v1148 = vunpack.c.l.b16 %v566
        %v1149 = vunpack.c.h.b16 %v566
        %v1150 = vunpack.c.l.b16 %v567
        %v1151 = vunpack.c.h.b16 %v567
        %v1152 = vunpack.c.l.b16 %v568
        %v1153 = vunpack.c.h.b16 %v568
        %v1154 = vunpack.c.l.b16 %v569
        %v1155 = vunpack.c.h.b16 %v569
        %v1156 = vpack.c.b16 %v908, %v900
        %v1157 = vpack.c.b16 %v909, %v901
        %v1158 = vpack.c.b16 %v910, %v902
        %v1159 = vpack.c.b16 %v911, %v903
        %v1160 = vpack.c.b16 %v912, %v904
        %v1161 = vpack.c.b16 %v913, %v905
        %v1162 = vpack.c.b16 %v914, %v906
        %v1163 = vpack.c.b16 %v915, %v907
        %v1164 = vpack.c.b16 %v924, %v916
        %v1165 = vpack.c.b16 %v925, %v917
        %v1166 = vpack.c.b16 %v926, %v918
        %v1167 = vpack.c.b16 %v927, %v919
        %v1168 = vpack.c.b16 %v928, %v920
        %v1169 = vpack.c.b16 %v929, %v921
        %v1170 = vpack.c.b16 %v930, %v922
        %v1171 = vpack.c.b16 %v931, %v923
        %v1172 = vpack.c.b16 %v940, %v932
        %v1173 = vpack.c.b16 %v941, %v933
        %v1174 = vpack.c.b16 %v942, %v934
        %v1175 = vpack.c.b16 %v943, %v935
        %v1176 = vpack.c.b16 %v944, %v936
        %v1177 = vpack.c.b16 %v945, %v937
        %v1178 = vpack.c.b16 %v946, %v938
        %v1179 = vpack.c.b16 %v947, %v939
        %v1180 = vpack.c.b16 %v956, %v948
        %v1181 = vpack.c.b16 %v957, %v949
        %v1182 = vpack.c.b16 %v958, %v950
        %v1183 = vpack.c.b16 %v959, %v951
        %v1184 = vpack.c.b16 %v960, %v952
        %v1185 = vpack.c.b16 %v961, %v953
        %v1186 = vpack.c.b16 %v962, %v954
        %v1187 = vpack.c.b16 %v963, %v955
        %v1188 = vpack.c.b16 %v972, %v964
        %v1189 = vpack.c.b16 %v973, %v965
        %v1190 = vpack.c.b16 %v974, %v966
        %v1191 = vpack.c.b16 %v975, %v967
        %v1192 = vpack.c.b16 %v976, %v968
        %v1193 = vpack.c.b16 %v977, %v969
        %v1194 = vpack.c.b16 %v978, %v970
        %v1195 = vpack.c.b16 %v979, %v971
        %v1196 = vpack.c.b16 %v988, %v980
        %v1197 = vpack.c.b16 %v989, %v981
        %v1198 = vpack.c.b16 %v990, %v982
        %v1199 = vpack.c.b16 %v991, %v983
        %v1200 = vpack.c.b16 %v992, %v984
        %v1201 = vpack.c.b16 %v993, %v985
        %v1202 = vpack.c.b16 %v994, %v986
        %v1203 = vpack.c.b16 %v995, %v987
        %v1204 = vpack.c.b16 %v1004, %v996
        %v1205 = vpack.c.b16 %v1005, %v997
        %v1206 = vpack.c.b16 %v1006, %v998
        %v1207 = vpack.c.b16 %v1007, %v999
        %v1208 = vpack.c.b16 %v1008, %v1000
        %v1209 = vpack.c.b16 %v1009, %v1001
        %v1210 = vpack.c.b16 %v1010, %v1002
        %v1211 = vpack.c.b16 %v1011, %v1003
        %v1212 = vpack.c.b16 %v1020, %v1012
        %v1213 = vpack.c.b16 %v1021, %v1013
        %v1214 = vpack.c.b16 %v1022, %v1014
        %v1215 = vpack.c.b16 %v1023, %v1015
        %v1216 = vpack.c.b16 %v1024, %v1016
        %v1217 = vpack.c.b16 %v1025, %v1017
        %v1218 = vpack.c.b16 %v1026, %v1018
        %v1219 = vpack.c.b16 %v1027, %v1019
        %v1220 = vpack.c.b16 %v1036, %v1028
        %v1221 = vpack.c.b16 %v1037, %v1029
        %v1222 = vpack.c.b16 %v1038, %v1030
        %v1223 = vpack.c.b16 %v1039, %v1031
        %v1224 = vpack.c.b16 %v1040, %v1032
        %v1225 = vpack.c.b16 %v1041, %v1033
        %v1226 = vpack.c.b16 %v1042, %v1034
        %v1227 = vpack.c.b16 %v1043, %v1035
        %v1228 = vpack.c.b16 %v1052, %v1044
        %v1229 = vpack.c.b16 %v1053, %v1045
        %v1230 = vpack.c.b16 %v1054, %v1046
        %v1231 = vpack.c.b16 %v1055, %v1047
        %v1232 = vpack.c.b16 %v1056, %v1048
        %v1233 = vpack.c.b16 %v1057, %v1049
        %v1234 = vpack.c.b16 %v1058, %v1050
        %v1235 = vpack.c.b16 %v1059, %v1051
        %v1236 = vpack.c.b16 %v1068, %v1060
        %v1237 = vpack.c.b16 %v1069, %v1061
        %v1238 = vpack.c.b16 %v1070, %v1062
        %v1239 = vpack.c.b16 %v1071, %v1063
        %v1240 = vpack.c.b16 %v1072, %v1064
        %v1241 = vpack.c.b16 %v1073, %v1065
        %v1242 = vpack.c.b16 %v1074, %v1066
        %v1243 = vpack.c.b16 %v1075, %v1067
        %v1244 = vpack.c.b16 %v1084, %v1076
        %v1245 = vpack.c.b16 %v1085, %v1077
        %v1246 = vpack.c.b16 %v1086, %v1078
        %v1247 = vpack.c.b16 %v1087, %v1079
        %v1248 = vpack.c.b16 %v1088, %v1080
        %v1249 = vpack.c.b16 %v1089, %v1081
        %v1250 = vpack.c.b16 %v1090, %v1082
        %v1251 = vpack.c.b16 %v1091, %v1083
        %v1252 = vpack.c.b16 %v1100, %v1092
        %v1253 = vpack.c.b16 %v1101, %v1093
        %v1254 = vpack.c.b16 %v1102, %v1094
        %v1255 = vpack.c.b16 %v1103, %v1095
        %v1256 = vpack.c.b16 %v1104, %v1096
        %v1257 = vpack.c.b16 %v1105, %v1097
        %v1258 = vpack.c.b16 %v1106, %v1098
        %v1259 = vpack.c.b16 %v1107, %v1099
        %v1260 = vpack.c.b16 %v1116, %v1108
        %v1261 = vpack.c.b16 %v1117, %v1109
        %v1262 = vpack.c.b16 %v1118, %v1110
        %v1263 = vpack.c.b16 %v1119, %v1111
        %v1264 = vpack.c.b16 %v1120, %v1112
        %v1265 = vpack.c.b16 %v1121, %v1113
        %v1266 = vpack.c.b16 %v1122, %v1114
        %v1267 = vpack.c.b16 %v1123, %v1115
        %v1268 = vpack.c.b16 %v1132, %v1124
        %v1269 = vpack.c.b16 %v1133, %v1125
        %v1270 = vpack.c.b16 %v1134, %v1126
        %v1271 = vpack.c.b16 %v1135, %v1127
        %v1272 = vpack.c.b16 %v1136, %v1128
        %v1273 = vpack.c.b16 %v1137, %v1129
        %v1274 = vpack.c.b16 %v1138, %v1130
        %v1275 = vpack.c.b16 %v1139, %v1131
        %v1276 = vpack.c.b16 %v1148, %v1140
        %v1277 = vpack.c.b16 %v1149, %v1141
        %v1278 = vpack.c.b16 %v1150, %v1142
        %v1279 = vpack.c.b16 %v1151, %v1143
        %v1280 = vpack.c.b16 %v1152, %v1144
        %v1281 = vpack.c.b16 %v1153, %v1145
        %v1282 = vpack.c.b16 %v1154, %v1146
        %v1283 = vpack.c.b16 %v1155, %v1147
        %1412 = vmatprep.subr.bf16.mxu0 %v1157
        %1413 = vmatpush1.bf16.msra.mxu0 %v1156
        %1414 = vmatprep.subr.bf16.mxu0 %v1165
        %1415 = vmatpush1.bf16.msra.mxu0 %v1164
        %1416 = vmatprep.subr.bf16.mxu0 %v1173
        %1417 = vmatpush1.bf16.msra.mxu0 %v1172
        %1418 = vmatprep.subr.bf16.mxu0 %v1181
        %1419 = vmatpush1.bf16.msra.mxu0 %v1180
        %1420 = vmatprep.subr.bf16.mxu0 %v1189
        %1421 = vmatpush1.bf16.msra.mxu0 %v1188
        %1422 = vmatprep.subr.bf16.mxu0 %v1197
        %1423 = vmatpush1.bf16.msra.mxu0 %v1196
        %1424 = vmatprep.subr.bf16.mxu0 %v1205
        %1425 = vmatpush1.bf16.msra.mxu0 %v1204
        %1426 = vmatprep.subr.bf16.mxu0 %v1213
        %1427 = vmatpush1.bf16.msra.mxu0 %v1212
        %1428 = vmatprep.subr.bf16.mxu0 %v1221
        %1429 = vmatpush1.bf16.msra.mxu0 %v1220
        %1430 = vmatprep.subr.bf16.mxu0 %v1229
        %1431 = vmatpush1.bf16.msra.mxu0 %v1228
        %1432 = vmatprep.subr.bf16.mxu0 %v1237
        %1433 = vmatpush1.bf16.msra.mxu0 %v1236
        %1434 = vmatprep.subr.bf16.mxu0 %v1245
        %1435 = vmatpush1.bf16.msra.mxu0 %v1244
        %1436 = vmatprep.subr.bf16.mxu0 %v1253
        %1437 = vmatpush1.bf16.msra.mxu0 %v1252
        %1438 = vmatprep.subr.bf16.mxu0 %v1261
        %1439 = vmatpush1.bf16.msra.mxu0 %v1260
        %1440 = vmatprep.subr.bf16.mxu0 %v1269
        %1441 = vmatpush1.bf16.msra.mxu0 %v1268
        %1442 = vmatprep.subr.bf16.mxu0 %v1277
        %1443 = vmatpush1.bf16.msra.mxu0 %v1276
        %1444 = vmatprep.mubr.bf16.mxu0 %v709
        %1445 = vmatmul.mubr.bf16.gmra.mrb[0].mxu0 %v708
        %v1446 = vpop.f32.mrb[0].mxu0
        %v1447 = vadd.f32 %v575, %v1446
        %v1448 = vpop.f32.mrb[0].mxu0
        %v1449 = vadd.f32 %v579, %v1448
        %v1450 = vpop.f32.mrb[0].mxu0
        %v1451 = vadd.f32 %v575, %v1450
        %v1452 = vpop.f32.mrb[0].mxu0
        %v1453 = vadd.f32 %v579, %v1452
        %1454 = vmatprep.mubr.bf16.mxu0 %v711
        %1455 = vmatmul.mubr.bf16.gmra.mrb[0].mxu0 %v710
        %v1456 = vpop.f32.mrb[0].mxu0
        %v1457 = vadd.f32 %v575, %v1456
        %v1458 = vpop.f32.mrb[0].mxu0
        %v1459 = vadd.f32 %v579, %v1458
        %v1460 = vpop.f32.mrb[0].mxu0
        %v1461 = vadd.f32 %v575, %v1460
        %v1462 = vpop.f32.mrb[0].mxu0
        %v1463 = vadd.f32 %v579, %v1462
        %1464 = vmatprep.mubr.bf16.mxu0 %v713
        %1465 = vmatmul.mubr.bf16.gmra.mrb[0].mxu0 %v712
        %v1466 = vpop.f32.mrb[0].mxu0
        %v1467 = vadd.f32 %v575, %v1466
        %v1468 = vpop.f32.mrb[0].mxu0
        %v1469 = vadd.f32 %v579, %v1468
        %v1470 = vpop.f32.mrb[0].mxu0
        %v1471 = vadd.f32 %v575, %v1470
        %v1472 = vpop.f32.mrb[0].mxu0
        %v1473 = vadd.f32 %v579, %v1472
        %1474 = vmatprep.mubr.bf16.mxu0 %v715
        %1475 = vmatmul.mubr.bf16.gmra.mrb[0].mxu0 %v714
        %v1476 = vpop.f32.mrb[0].mxu0
        %v1477 = vadd.f32 %v575, %v1476
        %v1478 = vpop.f32.mrb[0].mxu0
        %v1479 = vadd.f32 %v579, %v1478
        %v1480 = vpop.f32.mrb[0].mxu0
        %v1481 = vadd.f32 %v575, %v1480
        %v1482 = vpop.f32.mrb[0].mxu0
        %v1483 = vadd.f32 %v579, %v1482
        %1484 = vmatprep.mubr.bf16.mxu0 %v717
        %1485 = vmatmul.mubr.bf16.gmra.mrb[0].mxu0 %v716
        %v1486 = vpop.f32.mrb[0].mxu0
        %v1487 = vadd.f32 %v575, %v1486
        %v1488 = vpop.f32.mrb[0].mxu0
        %v1489 = vadd.f32 %v579, %v1488
        %v1490 = vpop.f32.mrb[0].mxu0
        %v1491 = vadd.f32 %v575, %v1490
        %v1492 = vpop.f32.mrb[0].mxu0
        %v1493 = vadd.f32 %v579, %v1492
        %1494 = vmatprep.mubr.bf16.mxu0 %v719
        %1495 = vmatmul.mubr.bf16.gmra.mrb[0].mxu0 %v718
        %v1496 = vpop.f32.mrb[0].mxu0
        %v1497 = vadd.f32 %v575, %v1496
        %v1498 = vpop.f32.mrb[0].mxu0
        %v1499 = vadd.f32 %v579, %v1498
        %v1500 = vpop.f32.mrb[0].mxu0
        %v1501 = vadd.f32 %v575, %v1500
        %v1502 = vpop.f32.mrb[0].mxu0
        %v1503 = vadd.f32 %v579, %v1502
        %1504 = vmatprep.mubr.bf16.mxu0 %v721
        %1505 = vmatmul.mubr.bf16.gmra.mrb[0].mxu0 %v720
        %v1506 = vpop.f32.mrb[0].mxu0
        %v1507 = vadd.f32 %v575, %v1506
        %v1508 = vpop.f32.mrb[0].mxu0
        %v1509 = vadd.f32 %v579, %v1508
        %v1510 = vpop.f32.mrb[0].mxu0
        %v1511 = vadd.f32 %v575, %v1510
        %v1512 = vpop.f32.mrb[0].mxu0
        %v1513 = vadd.f32 %v579, %v1512
        %1514 = vmatprep.mubr.bf16.mxu0 %v723
        %1515 = vmatmul.mubr.bf16.gmra.mrb[0].mxu0 %v722
        %v1516 = vpop.f32.mrb[0].mxu0
        %v1517 = vadd.f32 %v575, %v1516
        %v1518 = vpop.f32.mrb[0].mxu0
        %v1519 = vadd.f32 %v579, %v1518
        %v1520 = vpop.f32.mrb[0].mxu0
        %v1521 = vadd.f32 %v575, %v1520
        %v1522 = vpop.f32.mrb[0].mxu0
        %v1523 = vadd.f32 %v579, %v1522
        %1524 = vmatprep.mubr.bf16.mxu0 %v725
        %1525 = vmatmul.mubr.bf16.gmra.mrb[0].mxu0 %v724
        %v1526 = vpop.f32.mrb[0].mxu0
        %v1527 = vadd.f32 %v575, %v1526
        %v1528 = vpop.f32.mrb[0].mxu0
        %v1529 = vadd.f32 %v579, %v1528
        %v1530 = vpop.f32.mrb[0].mxu0
        %v1531 = vadd.f32 %v575, %v1530
        %v1532 = vpop.f32.mrb[0].mxu0
        %v1533 = vadd.f32 %v579, %v1532
        %1534 = vmatprep.mubr.bf16.mxu0 %v727
        %1535 = vmatmul.mubr.bf16.gmra.mrb[0].mxu0 %v726
        %v1536 = vpop.f32.mrb[0].mxu0
        %v1537 = vadd.f32 %v575, %v1536
        %v1538 = vpop.f32.mrb[0].mxu0
        %v1539 = vadd.f32 %v579, %v1538
        %v1540 = vpop.f32.mrb[0].mxu0
        %v1541 = vadd.f32 %v575, %v1540
        %v1542 = vpop.f32.mrb[0].mxu0
        %v1543 = vadd.f32 %v579, %v1542
        %1544 = vmatprep.mubr.bf16.mxu0 %v729
        %1545 = vmatmul.mubr.bf16.gmra.mrb[0].mxu0 %v728
        %v1546 = vpop.f32.mrb[0].mxu0
        %v1547 = vadd.f32 %v575, %v1546
        %v1548 = vpop.f32.mrb[0].mxu0
        %v1549 = vadd.f32 %v579, %v1548
        %v1550 = vpop.f32.mrb[0].mxu0
        %v1551 = vadd.f32 %v575, %v1550
        %v1552 = vpop.f32.mrb[0].mxu0
        %v1553 = vadd.f32 %v579, %v1552
        %1554 = vmatprep.mubr.bf16.mxu0 %v731
        %1555 = vmatmul.mubr.bf16.gmra.mrb[0].mxu0 %v730
        %v1556 = vpop.f32.mrb[0].mxu0
        %v1557 = vadd.f32 %v575, %v1556
        %v1558 = vpop.f32.mrb[0].mxu0
        %v1559 = vadd.f32 %v579, %v1558
        %v1560 = vpop.f32.mrb[0].mxu0
        %v1561 = vadd.f32 %v575, %v1560
        %v1562 = vpop.f32.mrb[0].mxu0
        %v1563 = vadd.f32 %v579, %v1562
        %1564 = vmatprep.mubr.bf16.mxu0 %v733
        %1565 = vmatmul.mubr.bf16.gmra.mrb[0].mxu0 %v732
        %v1566 = vpop.f32.mrb[0].mxu0
        %v1567 = vadd.f32 %v575, %v1566
        %v1568 = vpop.f32.mrb[0].mxu0
        %v1569 = vadd.f32 %v579, %v1568
        %v1570 = vpop.f32.mrb[0].mxu0
        %v1571 = vadd.f32 %v575, %v1570
        %v1572 = vpop.f32.mrb[0].mxu0
        %v1573 = vadd.f32 %v579, %v1572
        %1574 = vmatprep.mubr.bf16.mxu0 %v735
        %1575 = vmatmul.mubr.bf16.gmra.mrb[0].mxu0 %v734
        %v1576 = vpop.f32.mrb[0].mxu0
        %v1577 = vadd.f32 %v575, %v1576
        %v1578 = vpop.f32.mrb[0].mxu0
        %v1579 = vadd.f32 %v579, %v1578
        %v1580 = vpop.f32.mrb[0].mxu0
        %v1581 = vadd.f32 %v575, %v1580
        %v1582 = vpop.f32.mrb[0].mxu0
        %v1583 = vadd.f32 %v579, %v1582
        %1584 = vmatprep.mubr.bf16.mxu0 %v737
        %1585 = vmatmul.mubr.bf16.gmra.mrb[0].mxu0 %v736
        %v1586 = vpop.f32.mrb[0].mxu0
        %v1587 = vadd.f32 %v575, %v1586
        %v1588 = vpop.f32.mrb[0].mxu0
        %v1589 = vadd.f32 %v579, %v1588
        %v1590 = vpop.f32.mrb[0].mxu0
        %v1591 = vadd.f32 %v575, %v1590
        %v1592 = vpop.f32.mrb[0].mxu0
        %v1593 = vadd.f32 %v579, %v1592
        %1594 = vmatprep.mubr.bf16.mxu0 %v739
        %1595 = vmatmul.mubr.bf16.gmra.mrb[0].mxu0 %v738
        %v1596 = vpop.f32.mrb[0].mxu0
        %v1597 = vadd.f32 %v575, %v1596
        %v1598 = vpop.f32.mrb[0].mxu0
        %v1599 = vadd.f32 %v579, %v1598
        %v1600 = vpop.f32.mrb[0].mxu0
        %v1601 = vadd.f32 %v575, %v1600
        %v1602 = vpop.f32.mrb[0].mxu0
        %v1603 = vadd.f32 %v579, %v1602
        %1604 = vdwg.mxu0
        %1605 = vmatprep.subr.bf16.mxu0 %v1159
        %1606 = vmatpush1.bf16.msra.mxu0 %v1158
        %1607 = vmatprep.subr.bf16.mxu0 %v1167
        %1608 = vmatpush1.bf16.msra.mxu0 %v1166
        %1609 = vmatprep.subr.bf16.mxu0 %v1175
        %1610 = vmatpush1.bf16.msra.mxu0 %v1174
        %1611 = vmatprep.subr.bf16.mxu0 %v1183
        %1612 = vmatpush1.bf16.msra.mxu0 %v1182
        %1613 = vmatprep.subr.bf16.mxu0 %v1191
        %1614 = vmatpush1.bf16.msra.mxu0 %v1190
        %1615 = vmatprep.subr.bf16.mxu0 %v1199
        %1616 = vmatpush1.bf16.msra.mxu0 %v1198
        %1617 = vmatprep.subr.bf16.mxu0 %v1207
        %1618 = vmatpush1.bf16.msra.mxu0 %v1206
        %1619 = vmatprep.subr.bf16.mxu0 %v1215
        %1620 = vmatpush1.bf16.msra.mxu0 %v1214
        %1621 = vmatprep.subr.bf16.mxu0 %v1223
        %1622 = vmatpush1.bf16.msra.mxu0 %v1222
        %1623 = vmatprep.subr.bf16.mxu0 %v1231
        %1624 = vmatpush1.bf16.msra.mxu0 %v1230
        %1625 = vmatprep.subr.bf16.mxu0 %v1239
        %1626 = vmatpush1.bf16.msra.mxu0 %v1238
        %1627 = vmatprep.subr.bf16.mxu0 %v1247
        %1628 = vmatpush1.bf16.msra.mxu0 %v1246
        %1629 = vmatprep.subr.bf16.mxu0 %v1255
        %1630 = vmatpush1.bf16.msra.mxu0 %v1254
        %1631 = vmatprep.subr.bf16.mxu0 %v1263
        %1632 = vmatpush1.bf16.msra.mxu0 %v1262
        %1633 = vmatprep.subr.bf16.mxu0 %v1271
        %1634 = vmatpush1.bf16.msra.mxu0 %v1270
        %1635 = vmatprep.subr.bf16.mxu0 %v1279
        %1636 = vmatpush1.bf16.msra.mxu0 %v1278
        %1637 = vmatprep.mubr.bf16.mxu0 %v709
        %1638 = vmatmul.mubr.bf16.gmra.mrb[0].mxu0 %v708
        %v1639 = vpop.f32.mrb[0].mxu0
        %v1640 = vadd.f32 %v583, %v1639
        %v1641 = vpop.f32.mrb[0].mxu0
        %v1642 = vadd.f32 %v587, %v1641
        %v1643 = vpop.f32.mrb[0].mxu0
        %v1644 = vadd.f32 %v583, %v1643
        %v1645 = vpop.f32.mrb[0].mxu0
        %v1646 = vadd.f32 %v587, %v1645
        %1647 = vmatprep.mubr.bf16.mxu0 %v711
        %1648 = vmatmul.mubr.bf16.gmra.mrb[0].mxu0 %v710
        %v1649 = vpop.f32.mrb[0].mxu0
        %v1650 = vadd.f32 %v583, %v1649
        %v1651 = vpop.f32.mrb[0].mxu0
        %v1652 = vadd.f32 %v587, %v1651
        %v1653 = vpop.f32.mrb[0].mxu0
        %v1654 = vadd.f32 %v583, %v1653
        %v1655 = vpop.f32.mrb[0].mxu0
        %v1656 = vadd.f32 %v587, %v1655
        %1657 = vmatprep.mubr.bf16.mxu0 %v713
        %1658 = vmatmul.mubr.bf16.gmra.mrb[0].mxu0 %v712
        %v1659 = vpop.f32.mrb[0].mxu0
        %v1660 = vadd.f32 %v583, %v1659
        %v1661 = vpop.f32.mrb[0].mxu0
        %v1662 = vadd.f32 %v587, %v1661
        %v1663 = vpop.f32.mrb[0].mxu0
        %v1664 = vadd.f32 %v583, %v1663
        %v1665 = vpop.f32.mrb[0].mxu0
        %v1666 = vadd.f32 %v587, %v1665
        %1667 = vmatprep.mubr.bf16.mxu0 %v715
        %1668 = vmatmul.mubr.bf16.gmra.mrb[0].mxu0 %v714
        %v1669 = vpop.f32.mrb[0].mxu0
        %v1670 = vadd.f32 %v583, %v1669
        %v1671 = vpop.f32.mrb[0].mxu0
        %v1672 = vadd.f32 %v587, %v1671
        %v1673 = vpop.f32.mrb[0].mxu0
        %v1674 = vadd.f32 %v583, %v1673
        %v1675 = vpop.f32.mrb[0].mxu0
        %v1676 = vadd.f32 %v587, %v1675
        %1677 = vmatprep.mubr.bf16.mxu0 %v717
        %1678 = vmatmul.mubr.bf16.gmra.mrb[0].mxu0 %v716
        %v1679 = vpop.f32.mrb[0].mxu0
        %v1680 = vadd.f32 %v583, %v1679
        %v1681 = vpop.f32.mrb[0].mxu0
        %v1682 = vadd.f32 %v587, %v1681
        %v1683 = vpop.f32.mrb[0].mxu0
        %v1684 = vadd.f32 %v583, %v1683
        %v1685 = vpop.f32.mrb[0].mxu0
        %v1686 = vadd.f32 %v587, %v1685
        %1687 = vmatprep.mubr.bf16.mxu0 %v719
        %1688 = vmatmul.mubr.bf16.gmra.mrb[0].mxu0 %v718
        %v1689 = vpop.f32.mrb[0].mxu0
        %v1690 = vadd.f32 %v583, %v1689
        %v1691 = vpop.f32.mrb[0].mxu0
        %v1692 = vadd.f32 %v587, %v1691
        %v1693 = vpop.f32.mrb[0].mxu0
        %v1694 = vadd.f32 %v583, %v1693
        %v1695 = vpop.f32.mrb[0].mxu0
        %v1696 = vadd.f32 %v587, %v1695
        %1697 = vmatprep.mubr.bf16.mxu0 %v721
        %1698 = vmatmul.mubr.bf16.gmra.mrb[0].mxu0 %v720
        %v1699 = vpop.f32.mrb[0].mxu0
        %v1700 = vadd.f32 %v583, %v1699
        %v1701 = vpop.f32.mrb[0].mxu0
        %v1702 = vadd.f32 %v587, %v1701
        %v1703 = vpop.f32.mrb[0].mxu0
        %v1704 = vadd.f32 %v583, %v1703
        %v1705 = vpop.f32.mrb[0].mxu0
        %v1706 = vadd.f32 %v587, %v1705
        %1707 = vmatprep.mubr.bf16.mxu0 %v723
        %1708 = vmatmul.mubr.bf16.gmra.mrb[0].mxu0 %v722
        %v1709 = vpop.f32.mrb[0].mxu0
        %v1710 = vadd.f32 %v583, %v1709
        %v1711 = vpop.f32.mrb[0].mxu0
        %v1712 = vadd.f32 %v587, %v1711
        %v1713 = vpop.f32.mrb[0].mxu0
        %v1714 = vadd.f32 %v583, %v1713
        %v1715 = vpop.f32.mrb[0].mxu0
        %v1716 = vadd.f32 %v587, %v1715
        %1717 = vmatprep.mubr.bf16.mxu0 %v725
        %1718 = vmatmul.mubr.bf16.gmra.mrb[0].mxu0 %v724
        %v1719 = vpop.f32.mrb[0].mxu0
        %v1720 = vadd.f32 %v583, %v1719
        %v1721 = vpop.f32.mrb[0].mxu0
        %v1722 = vadd.f32 %v587, %v1721
        %v1723 = vpop.f32.mrb[0].mxu0
        %v1724 = vadd.f32 %v583, %v1723
        %v1725 = vpop.f32.mrb[0].mxu0
        %v1726 = vadd.f32 %v587, %v1725
        %1727 = vmatprep.mubr.bf16.mxu0 %v727
        %1728 = vmatmul.mubr.bf16.gmra.mrb[0].mxu0 %v726
        %v1729 = vpop.f32.mrb[0].mxu0
        %v1730 = vadd.f32 %v583, %v1729
        %v1731 = vpop.f32.mrb[0].mxu0
        %v1732 = vadd.f32 %v587, %v1731
        %v1733 = vpop.f32.mrb[0].mxu0
        %v1734 = vadd.f32 %v583, %v1733
        %v1735 = vpop.f32.mrb[0].mxu0
        %v1736 = vadd.f32 %v587, %v1735
        %1737 = vmatprep.mubr.bf16.mxu0 %v729
        %1738 = vmatmul.mubr.bf16.gmra.mrb[0].mxu0 %v728
        %v1739 = vpop.f32.mrb[0].mxu0
        %v1740 = vadd.f32 %v583, %v1739
        %v1741 = vpop.f32.mrb[0].mxu0
        %v1742 = vadd.f32 %v587, %v1741
        %v1743 = vpop.f32.mrb[0].mxu0
        %v1744 = vadd.f32 %v583, %v1743
        %v1745 = vpop.f32.mrb[0].mxu0
        %v1746 = vadd.f32 %v587, %v1745
        %1747 = vmatprep.mubr.bf16.mxu0 %v731
        %1748 = vmatmul.mubr.bf16.gmra.mrb[0].mxu0 %v730
        %v1749 = vpop.f32.mrb[0].mxu0
        %v1750 = vadd.f32 %v583, %v1749
        %v1751 = vpop.f32.mrb[0].mxu0
        %v1752 = vadd.f32 %v587, %v1751
        %v1753 = vpop.f32.mrb[0].mxu0
        %v1754 = vadd.f32 %v583, %v1753
        %v1755 = vpop.f32.mrb[0].mxu0
        %v1756 = vadd.f32 %v587, %v1755
        %1757 = vmatprep.mubr.bf16.mxu0 %v733
        %1758 = vmatmul.mubr.bf16.gmra.mrb[0].mxu0 %v732
        %v1759 = vpop.f32.mrb[0].mxu0
        %v1760 = vadd.f32 %v583, %v1759
        %v1761 = vpop.f32.mrb[0].mxu0
        %v1762 = vadd.f32 %v587, %v1761
        %v1763 = vpop.f32.mrb[0].mxu0
        %v1764 = vadd.f32 %v583, %v1763
        %v1765 = vpop.f32.mrb[0].mxu0
        %v1766 = vadd.f32 %v587, %v1765
        %1767 = vmatprep.mubr.bf16.mxu0 %v735
        %1768 = vmatmul.mubr.bf16.gmra.mrb[0].mxu0 %v734
        %v1769 = vpop.f32.mrb[0].mxu0
        %v1770 = vadd.f32 %v583, %v1769
        %v1771 = vpop.f32.mrb[0].mxu0
        %v1772 = vadd.f32 %v587, %v1771
        %v1773 = vpop.f32.mrb[0].mxu0
        %v1774 = vadd.f32 %v583, %v1773
        %v1775 = vpop.f32.mrb[0].mxu0
        %v1776 = vadd.f32 %v587, %v1775
        %1777 = vmatprep.mubr.bf16.mxu0 %v737
        %1778 = vmatmul.mubr.bf16.gmra.mrb[0].mxu0 %v736
        %v1779 = vpop.f32.mrb[0].mxu0
        %v1780 = vadd.f32 %v583, %v1779
        %v1781 = vpop.f32.mrb[0].mxu0
        %v1782 = vadd.f32 %v587, %v1781
        %v1783 = vpop.f32.mrb[0].mxu0
        %v1784 = vadd.f32 %v583, %v1783
        %v1785 = vpop.f32.mrb[0].mxu0
        %v1786 = vadd.f32 %v587, %v1785
        %1787 = vmatprep.mubr.bf16.mxu0 %v739
        %1788 = vmatmul.mubr.bf16.gmra.mrb[0].mxu0 %v738
        %v1789 = vpop.f32.mrb[0].mxu0
        %v1790 = vadd.f32 %v583, %v1789
        %v1791 = vpop.f32.mrb[0].mxu0
        %v1792 = vadd.f32 %v587, %v1791
        %v1793 = vpop.f32.mrb[0].mxu0
        %v1794 = vadd.f32 %v583, %v1793
        %v1795 = vpop.f32.mrb[0].mxu0
        %v1796 = vadd.f32 %v587, %v1795
        %1797 = vdwg.mxu0
        %1798 = vmatprep.subr.bf16.mxu0 %v1161
        %1799 = vmatpush1.bf16.msra.mxu0 %v1160
        %1800 = vmatprep.subr.bf16.mxu0 %v1169
        %1801 = vmatpush1.bf16.msra.mxu0 %v1168
        %1802 = vmatprep.subr.bf16.mxu0 %v1177
        %1803 = vmatpush1.bf16.msra.mxu0 %v1176
        %1804 = vmatprep.subr.bf16.mxu0 %v1185
        %1805 = vmatpush1.bf16.msra.mxu0 %v1184
        %1806 = vmatprep.subr.bf16.mxu0 %v1193
        %1807 = vmatpush1.bf16.msra.mxu0 %v1192
        %1808 = vmatprep.subr.bf16.mxu0 %v1201
        %1809 = vmatpush1.bf16.msra.mxu0 %v1200
        %1810 = vmatprep.subr.bf16.mxu0 %v1209
        %1811 = vmatpush1.bf16.msra.mxu0 %v1208
        %1812 = vmatprep.subr.bf16.mxu0 %v1217
        %1813 = vmatpush1.bf16.msra.mxu0 %v1216
        %1814 = vmatprep.subr.bf16.mxu0 %v1225
        %1815 = vmatpush1.bf16.msra.mxu0 %v1224
        %1816 = vmatprep.subr.bf16.mxu0 %v1233
        %1817 = vmatpush1.bf16.msra.mxu0 %v1232
        %1818 = vmatprep.subr.bf16.mxu0 %v1241
        %1819 = vmatpush1.bf16.msra.mxu0 %v1240
        %1820 = vmatprep.subr.bf16.mxu0 %v1249
        %1821 = vmatpush1.bf16.msra.mxu0 %v1248
        %1822 = vmatprep.subr.bf16.mxu0 %v1257
        %1823 = vmatpush1.bf16.msra.mxu0 %v1256
        %1824 = vmatprep.subr.bf16.mxu0 %v1265
        %1825 = vmatpush1.bf16.msra.mxu0 %v1264
        %1826 = vmatprep.subr.bf16.mxu0 %v1273
        %1827 = vmatpush1.bf16.msra.mxu0 %v1272
        %1828 = vmatprep.subr.bf16.mxu0 %v1281
        %1829 = vmatpush1.bf16.msra.mxu0 %v1280
        %1830 = vmatprep.mubr.bf16.mxu0 %v709
        %1831 = vmatmul.mubr.bf16.gmra.mrb[0].mxu0 %v708
        %v1832 = vpop.f32.mrb[0].mxu0
        %v1833 = vadd.f32 %v591, %v1832
        %v1834 = vpop.f32.mrb[0].mxu0
        %v1835 = vadd.f32 %v595, %v1834
        %v1836 = vpop.f32.mrb[0].mxu0
        %v1837 = vadd.f32 %v591, %v1836
        %v1838 = vpop.f32.mrb[0].mxu0
        %v1839 = vadd.f32 %v595, %v1838
        %1840 = vmatprep.mubr.bf16.mxu0 %v711
        %1841 = vmatmul.mubr.bf16.gmra.mrb[0].mxu0 %v710
        %v1842 = vpop.f32.mrb[0].mxu0
        %v1843 = vadd.f32 %v591, %v1842
        %v1844 = vpop.f32.mrb[0].mxu0
        %v1845 = vadd.f32 %v595, %v1844
        %v1846 = vpop.f32.mrb[0].mxu0
        %v1847 = vadd.f32 %v591, %v1846
        %v1848 = vpop.f32.mrb[0].mxu0
        %v1849 = vadd.f32 %v595, %v1848
        %1850 = vmatprep.mubr.bf16.mxu0 %v713
        %1851 = vmatmul.mubr.bf16.gmra.mrb[0].mxu0 %v712
        %v1852 = vpop.f32.mrb[0].mxu0
        %v1853 = vadd.f32 %v591, %v1852
        %v1854 = vpop.f32.mrb[0].mxu0
        %v1855 = vadd.f32 %v595, %v1854
        %v1856 = vpop.f32.mrb[0].mxu0
        %v1857 = vadd.f32 %v591, %v1856
        %v1858 = vpop.f32.mrb[0].mxu0
        %v1859 = vadd.f32 %v595, %v1858
        %1860 = vmatprep.mubr.bf16.mxu0 %v715
        %1861 = vmatmul.mubr.bf16.gmra.mrb[0].mxu0 %v714
        %v1862 = vpop.f32.mrb[0].mxu0
        %v1863 = vadd.f32 %v591, %v1862
        %v1864 = vpop.f32.mrb[0].mxu0
        %v1865 = vadd.f32 %v595, %v1864
        %v1866 = vpop.f32.mrb[0].mxu0
        %v1867 = vadd.f32 %v591, %v1866
        %v1868 = vpop.f32.mrb[0].mxu0
        %v1869 = vadd.f32 %v595, %v1868
        %1870 = vmatprep.mubr.bf16.mxu0 %v717
        %1871 = vmatmul.mubr.bf16.gmra.mrb[0].mxu0 %v716
        %v1872 = vpop.f32.mrb[0].mxu0
        %v1873 = vadd.f32 %v591, %v1872
        %v1874 = vpop.f32.mrb[0].mxu0
        %v1875 = vadd.f32 %v595, %v1874
        %v1876 = vpop.f32.mrb[0].mxu0
        %v1877 = vadd.f32 %v591, %v1876
        %v1878 = vpop.f32.mrb[0].mxu0
        %v1879 = vadd.f32 %v595, %v1878
        %1880 = vmatprep.mubr.bf16.mxu0 %v719
        %1881 = vmatmul.mubr.bf16.gmra.mrb[0].mxu0 %v718
        %v1882 = vpop.f32.mrb[0].mxu0
        %v1883 = vadd.f32 %v591, %v1882
        %v1884 = vpop.f32.mrb[0].mxu0
        %v1885 = vadd.f32 %v595, %v1884
        %v1886 = vpop.f32.mrb[0].mxu0
        %v1887 = vadd.f32 %v591, %v1886
        %v1888 = vpop.f32.mrb[0].mxu0
        %v1889 = vadd.f32 %v595, %v1888
        %1890 = vmatprep.mubr.bf16.mxu0 %v721
        %1891 = vmatmul.mubr.bf16.gmra.mrb[0].mxu0 %v720
        %v1892 = vpop.f32.mrb[0].mxu0
        %v1893 = vadd.f32 %v591, %v1892
        %v1894 = vpop.f32.mrb[0].mxu0
        %v1895 = vadd.f32 %v595, %v1894
        %v1896 = vpop.f32.mrb[0].mxu0
        %v1897 = vadd.f32 %v591, %v1896
        %v1898 = vpop.f32.mrb[0].mxu0
        %v1899 = vadd.f32 %v595, %v1898
        %1900 = vmatprep.mubr.bf16.mxu0 %v723
        %1901 = vmatmul.mubr.bf16.gmra.mrb[0].mxu0 %v722
        %v1902 = vpop.f32.mrb[0].mxu0
        %v1903 = vadd.f32 %v591, %v1902
        %v1904 = vpop.f32.mrb[0].mxu0
        %v1905 = vadd.f32 %v595, %v1904
        %v1906 = vpop.f32.mrb[0].mxu0
        %v1907 = vadd.f32 %v591, %v1906
        %v1908 = vpop.f32.mrb[0].mxu0
        %v1909 = vadd.f32 %v595, %v1908
        %1910 = vmatprep.mubr.bf16.mxu0 %v725
        %1911 = vmatmul.mubr.bf16.gmra.mrb[0].mxu0 %v724
        %v1912 = vpop.f32.mrb[0].mxu0
        %v1913 = vadd.f32 %v591, %v1912
        %v1914 = vpop.f32.mrb[0].mxu0
        %v1915 = vadd.f32 %v595, %v1914
        %v1916 = vpop.f32.mrb[0].mxu0
        %v1917 = vadd.f32 %v591, %v1916
        %v1918 = vpop.f32.mrb[0].mxu0
        %v1919 = vadd.f32 %v595, %v1918
        %1920 = vmatprep.mubr.bf16.mxu0 %v727
        %1921 = vmatmul.mubr.bf16.gmra.mrb[0].mxu0 %v726
        %v1922 = vpop.f32.mrb[0].mxu0
        %v1923 = vadd.f32 %v591, %v1922
        %v1924 = vpop.f32.mrb[0].mxu0
        %v1925 = vadd.f32 %v595, %v1924
        %v1926 = vpop.f32.mrb[0].mxu0
        %v1927 = vadd.f32 %v591, %v1926
        %v1928 = vpop.f32.mrb[0].mxu0
        %v1929 = vadd.f32 %v595, %v1928
        %1930 = vmatprep.mubr.bf16.mxu0 %v729
        %1931 = vmatmul.mubr.bf16.gmra.mrb[0].mxu0 %v728
        %v1932 = vpop.f32.mrb[0].mxu0
        %v1933 = vadd.f32 %v591, %v1932
        %v1934 = vpop.f32.mrb[0].mxu0
        %v1935 = vadd.f32 %v595, %v1934
        %v1936 = vpop.f32.mrb[0].mxu0
        %v1937 = vadd.f32 %v591, %v1936
        %v1938 = vpop.f32.mrb[0].mxu0
        %v1939 = vadd.f32 %v595, %v1938
        %1940 = vmatprep.mubr.bf16.mxu0 %v731
        %1941 = vmatmul.mubr.bf16.gmra.mrb[0].mxu0 %v730
        %v1942 = vpop.f32.mrb[0].mxu0
        %v1943 = vadd.f32 %v591, %v1942
        %v1944 = vpop.f32.mrb[0].mxu0
        %v1945 = vadd.f32 %v595, %v1944
        %v1946 = vpop.f32.mrb[0].mxu0
        %v1947 = vadd.f32 %v591, %v1946
        %v1948 = vpop.f32.mrb[0].mxu0
        %v1949 = vadd.f32 %v595, %v1948
        %1950 = vmatprep.mubr.bf16.mxu0 %v733
        %1951 = vmatmul.mubr.bf16.gmra.mrb[0].mxu0 %v732
        %v1952 = vpop.f32.mrb[0].mxu0
        %v1953 = vadd.f32 %v591, %v1952
        %v1954 = vpop.f32.mrb[0].mxu0
        %v1955 = vadd.f32 %v595, %v1954
        %v1956 = vpop.f32.mrb[0].mxu0
        %v1957 = vadd.f32 %v591, %v1956
        %v1958 = vpop.f32.mrb[0].mxu0
        %v1959 = vadd.f32 %v595, %v1958
        %1960 = vmatprep.mubr.bf16.mxu0 %v735
        %1961 = vmatmul.mubr.bf16.gmra.mrb[0].mxu0 %v734
        %v1962 = vpop.f32.mrb[0].mxu0
        %v1963 = vadd.f32 %v591, %v1962
        %v1964 = vpop.f32.mrb[0].mxu0
        %v1965 = vadd.f32 %v595, %v1964
        %v1966 = vpop.f32.mrb[0].mxu0
        %v1967 = vadd.f32 %v591, %v1966
        %v1968 = vpop.f32.mrb[0].mxu0
        %v1969 = vadd.f32 %v595, %v1968
        %1970 = vmatprep.mubr.bf16.mxu0 %v737
        %1971 = vmatmul.mubr.bf16.gmra.mrb[0].mxu0 %v736
        %v1972 = vpop.f32.mrb[0].mxu0
        %v1973 = vadd.f32 %v591, %v1972
        %v1974 = vpop.f32.mrb[0].mxu0
        %v1975 = vadd.f32 %v595, %v1974
        %v1976 = vpop.f32.mrb[0].mxu0
        %v1977 = vadd.f32 %v591, %v1976
        %v1978 = vpop.f32.mrb[0].mxu0
        %v1979 = vadd.f32 %v595, %v1978
        %1980 = vmatprep.mubr.bf16.mxu0 %v739
        %1981 = vmatmul.mubr.bf16.gmra.mrb[0].mxu0 %v738
        %v1982 = vpop.f32.mrb[0].mxu0
        %v1983 = vadd.f32 %v591, %v1982
        %v1984 = vpop.f32.mrb[0].mxu0
        %v1985 = vadd.f32 %v595, %v1984
        %v1986 = vpop.f32.mrb[0].mxu0
        %v1987 = vadd.f32 %v591, %v1986
        %v1988 = vpop.f32.mrb[0].mxu0
        %v1989 = vadd.f32 %v595, %v1988
        %1990 = vdwg.mxu0
        %1991 = vmatprep.subr.bf16.mxu0 %v1163
        %1992 = vmatpush1.bf16.msra.mxu0 %v1162
        %1993 = vmatprep.subr.bf16.mxu0 %v1171
        %1994 = vmatpush1.bf16.msra.mxu0 %v1170
        %1995 = vmatprep.subr.bf16.mxu0 %v1179
        %1996 = vmatpush1.bf16.msra.mxu0 %v1178
        %1997 = vmatprep.subr.bf16.mxu0 %v1187
        %1998 = vmatpush1.bf16.msra.mxu0 %v1186
        %1999 = vmatprep.subr.bf16.mxu0 %v1195
        %2000 = vmatpush1.bf16.msra.mxu0 %v1194
        %2001 = vmatprep.subr.bf16.mxu0 %v1203
        %2002 = vmatpush1.bf16.msra.mxu0 %v1202
        %2003 = vmatprep.subr.bf16.mxu0 %v1211
        %2004 = vmatpush1.bf16.msra.mxu0 %v1210
        %2005 = vmatprep.subr.bf16.mxu0 %v1219
        %2006 = vmatpush1.bf16.msra.mxu0 %v1218
        %2007 = vmatprep.subr.bf16.mxu0 %v1227
        %2008 = vmatpush1.bf16.msra.mxu0 %v1226
        %2009 = vmatprep.subr.bf16.mxu0 %v1235
        %2010 = vmatpush1.bf16.msra.mxu0 %v1234
        %2011 = vmatprep.subr.bf16.mxu0 %v1243
        %2012 = vmatpush1.bf16.msra.mxu0 %v1242
        %2013 = vmatprep.subr.bf16.mxu0 %v1251
        %2014 = vmatpush1.bf16.msra.mxu0 %v1250
        %2015 = vmatprep.subr.bf16.mxu0 %v1259
        %2016 = vmatpush1.bf16.msra.mxu0 %v1258
        %2017 = vmatprep.subr.bf16.mxu0 %v1267
        %2018 = vmatpush1.bf16.msra.mxu0 %v1266
        %2019 = vmatprep.subr.bf16.mxu0 %v1275
        %2020 = vmatpush1.bf16.msra.mxu0 %v1274
        %2021 = vmatprep.subr.bf16.mxu0 %v1283
        %2022 = vmatpush1.bf16.msra.mxu0 %v1282
        %2023 = vmatprep.mubr.bf16.mxu0 %v709
        %2024 = vmatmul.mubr.bf16.gmra.mrb[0].mxu0 %v708
        %v2025 = vpop.f32.mrb[0].mxu0
        %v2026 = vadd.f32 %v599, %v2025
        %v2027 = vpop.f32.mrb[0].mxu0
        %v2028 = vadd.f32 %v603, %v2027
        %v2029 = vpop.f32.mrb[0].mxu0
        %v2030 = vadd.f32 %v599, %v2029
        %v2031 = vpop.f32.mrb[0].mxu0
        %v2032 = vadd.f32 %v603, %v2031
        %2033 = vmatprep.mubr.bf16.mxu0 %v711
        %2034 = vmatmul.mubr.bf16.gmra.mrb[0].mxu0 %v710
        %v2035 = vpop.f32.mrb[0].mxu0
        %v2036 = vadd.f32 %v599, %v2035
        %v2037 = vpop.f32.mrb[0].mxu0
        %v2038 = vadd.f32 %v603, %v2037
        %v2039 = vpop.f32.mrb[0].mxu0
        %v2040 = vadd.f32 %v599, %v2039
        %v2041 = vpop.f32.mrb[0].mxu0
        %v2042 = vadd.f32 %v603, %v2041
        %2043 = vmatprep.mubr.bf16.mxu0 %v713
        %2044 = vmatmul.mubr.bf16.gmra.mrb[0].mxu0 %v712
        %v2045 = vpop.f32.mrb[0].mxu0
        %v2046 = vadd.f32 %v599, %v2045
        %v2047 = vpop.f32.mrb[0].mxu0
        %v2048 = vadd.f32 %v603, %v2047
        %v2049 = vpop.f32.mrb[0].mxu0
        %v2050 = vadd.f32 %v599, %v2049
        %v2051 = vpop.f32.mrb[0].mxu0
        %v2052 = vadd.f32 %v603, %v2051
        %2053 = vmatprep.mubr.bf16.mxu0 %v715
        %2054 = vmatmul.mubr.bf16.gmra.mrb[0].mxu0 %v714
        %v2055 = vpop.f32.mrb[0].mxu0
        %v2056 = vadd.f32 %v599, %v2055
        %v2057 = vpop.f32.mrb[0].mxu0
        %v2058 = vadd.f32 %v603, %v2057
        %v2059 = vpop.f32.mrb[0].mxu0
        %v2060 = vadd.f32 %v599, %v2059
        %v2061 = vpop.f32.mrb[0].mxu0
        %v2062 = vadd.f32 %v603, %v2061
        %2063 = vmatprep.mubr.bf16.mxu0 %v717
        %2064 = vmatmul.mubr.bf16.gmra.mrb[0].mxu0 %v716
        %v2065 = vpop.f32.mrb[0].mxu0
        %v2066 = vadd.f32 %v599, %v2065
        %v2067 = vpop.f32.mrb[0].mxu0
        %v2068 = vadd.f32 %v603, %v2067
        %v2069 = vpop.f32.mrb[0].mxu0
        %v2070 = vadd.f32 %v599, %v2069
        %v2071 = vpop.f32.mrb[0].mxu0
        %v2072 = vadd.f32 %v603, %v2071
        %2073 = vmatprep.mubr.bf16.mxu0 %v719
        %2074 = vmatmul.mubr.bf16.gmra.mrb[0].mxu0 %v718
        %v2075 = vpop.f32.mrb[0].mxu0
        %v2076 = vadd.f32 %v599, %v2075
        %v2077 = vpop.f32.mrb[0].mxu0
        %v2078 = vadd.f32 %v603, %v2077
        %v2079 = vpop.f32.mrb[0].mxu0
        %v2080 = vadd.f32 %v599, %v2079
        %v2081 = vpop.f32.mrb[0].mxu0
        %v2082 = vadd.f32 %v603, %v2081
        %2083 = vmatprep.mubr.bf16.mxu0 %v721
        %2084 = vmatmul.mubr.bf16.gmra.mrb[0].mxu0 %v720
        %v2085 = vpop.f32.mrb[0].mxu0
        %v2086 = vadd.f32 %v599, %v2085
        %v2087 = vpop.f32.mrb[0].mxu0
        %v2088 = vadd.f32 %v603, %v2087
        %v2089 = vpop.f32.mrb[0].mxu0
        %v2090 = vadd.f32 %v599, %v2089
        %v2091 = vpop.f32.mrb[0].mxu0
        %v2092 = vadd.f32 %v603, %v2091
        %2093 = vmatprep.mubr.bf16.mxu0 %v723
        %2094 = vmatmul.mubr.bf16.gmra.mrb[0].mxu0 %v722
        %v2095 = vpop.f32.mrb[0].mxu0
        %v2096 = vadd.f32 %v599, %v2095
        %v2097 = vpop.f32.mrb[0].mxu0
        %v2098 = vadd.f32 %v603, %v2097
        %v2099 = vpop.f32.mrb[0].mxu0
        %v2100 = vadd.f32 %v599, %v2099
        %v2101 = vpop.f32.mrb[0].mxu0
        %v2102 = vadd.f32 %v603, %v2101
        %2103 = vmatprep.mubr.bf16.mxu0 %v725
        %2104 = vmatmul.mubr.bf16.gmra.mrb[0].mxu0 %v724
        %v2105 = vpop.f32.mrb[0].mxu0
        %v2106 = vadd.f32 %v599, %v2105
        %v2107 = vpop.f32.mrb[0].mxu0
        %v2108 = vadd.f32 %v603, %v2107
        %v2109 = vpop.f32.mrb[0].mxu0
        %v2110 = vadd.f32 %v599, %v2109
        %v2111 = vpop.f32.mrb[0].mxu0
        %v2112 = vadd.f32 %v603, %v2111
        %2113 = vmatprep.mubr.bf16.mxu0 %v727
        %2114 = vmatmul.mubr.bf16.gmra.mrb[0].mxu0 %v726
        %v2115 = vpop.f32.mrb[0].mxu0
        %v2116 = vadd.f32 %v599, %v2115
        %v2117 = vpop.f32.mrb[0].mxu0
        %v2118 = vadd.f32 %v603, %v2117
        %v2119 = vpop.f32.mrb[0].mxu0
        %v2120 = vadd.f32 %v599, %v2119
        %v2121 = vpop.f32.mrb[0].mxu0
        %v2122 = vadd.f32 %v603, %v2121
        %2123 = vmatprep.mubr.bf16.mxu0 %v729
        %2124 = vmatmul.mubr.bf16.gmra.mrb[0].mxu0 %v728
        %v2125 = vpop.f32.mrb[0].mxu0
        %v2126 = vadd.f32 %v599, %v2125
        %v2127 = vpop.f32.mrb[0].mxu0
        %v2128 = vadd.f32 %v603, %v2127
        %v2129 = vpop.f32.mrb[0].mxu0
        %v2130 = vadd.f32 %v599, %v2129
        %v2131 = vpop.f32.mrb[0].mxu0
        %v2132 = vadd.f32 %v603, %v2131
        %2133 = vmatprep.mubr.bf16.mxu0 %v731
        %2134 = vmatmul.mubr.bf16.gmra.mrb[0].mxu0 %v730
        %v2135 = vpop.f32.mrb[0].mxu0
        %v2136 = vadd.f32 %v599, %v2135
        %v2137 = vpop.f32.mrb[0].mxu0
        %v2138 = vadd.f32 %v603, %v2137
        %v2139 = vpop.f32.mrb[0].mxu0
        %v2140 = vadd.f32 %v599, %v2139
        %v2141 = vpop.f32.mrb[0].mxu0
        %v2142 = vadd.f32 %v603, %v2141
        %2143 = vmatprep.mubr.bf16.mxu0 %v733
        %2144 = vmatmul.mubr.bf16.gmra.mrb[0].mxu0 %v732
        %v2145 = vpop.f32.mrb[0].mxu0
        %v2146 = vadd.f32 %v599, %v2145
        %v2147 = vpop.f32.mrb[0].mxu0
        %v2148 = vadd.f32 %v603, %v2147
        %v2149 = vpop.f32.mrb[0].mxu0
        %v2150 = vadd.f32 %v599, %v2149
        %v2151 = vpop.f32.mrb[0].mxu0
        %v2152 = vadd.f32 %v603, %v2151
        %2153 = vmatprep.mubr.bf16.mxu0 %v735
        %2154 = vmatmul.mubr.bf16.gmra.mrb[0].mxu0 %v734
        %v2155 = vpop.f32.mrb[0].mxu0
        %v2156 = vadd.f32 %v599, %v2155
        %v2157 = vpop.f32.mrb[0].mxu0
        %v2158 = vadd.f32 %v603, %v2157
        %v2159 = vpop.f32.mrb[0].mxu0
        %v2160 = vadd.f32 %v599, %v2159
        %v2161 = vpop.f32.mrb[0].mxu0
        %v2162 = vadd.f32 %v603, %v2161
        %2163 = vmatprep.mubr.bf16.mxu0 %v737
        %2164 = vmatmul.mubr.bf16.gmra.mrb[0].mxu0 %v736
        %v2165 = vpop.f32.mrb[0].mxu0
        %v2166 = vadd.f32 %v599, %v2165
        %v2167 = vpop.f32.mrb[0].mxu0
        %v2168 = vadd.f32 %v603, %v2167
        %v2169 = vpop.f32.mrb[0].mxu0
        %v2170 = vadd.f32 %v599, %v2169
        %v2171 = vpop.f32.mrb[0].mxu0
        %v2172 = vadd.f32 %v603, %v2171
        %2173 = vmatprep.mubr.bf16.mxu0 %v739
        %2174 = vmatmul.mubr.bf16.gmra.mrb[0].mxu0 %v738
        %v2175 = vpop.f32.mrb[0].mxu0
        %v2176 = vadd.f32 %v599, %v2175
        %v2177 = vpop.f32.mrb[0].mxu0
        %v2178 = vadd.f32 %v603, %v2177
        %v2179 = vpop.f32.mrb[0].mxu0
        %v2180 = vadd.f32 %v599, %v2179
        %v2181 = vpop.f32.mrb[0].mxu0
        %v2182 = vadd.f32 %v603, %v2181
        %2183 = vdwg.mxu0
        %v2184 = vmax.f32 %v1447, 0.0
        %v2185 = vmax.f32 %v1449, 0.0
        %v2186 = vmax.f32 %v1640, 0.0
        %v2187 = vmax.f32 %v1642, 0.0
        %v2188 = vmax.f32 %v1833, 0.0
        %v2189 = vmax.f32 %v1835, 0.0
        %v2190 = vmax.f32 %v2026, 0.0
        %v2191 = vmax.f32 %v2028, 0.0
        %v2192 = vmax.f32 %v1451, 0.0
        %v2193 = vmax.f32 %v1453, 0.0
        %v2194 = vmax.f32 %v1644, 0.0
        %v2195 = vmax.f32 %v1646, 0.0
        %v2196 = vmax.f32 %v1837, 0.0
        %v2197 = vmax.f32 %v1839, 0.0
        %v2198 = vmax.f32 %v2030, 0.0
        %v2199 = vmax.f32 %v2032, 0.0
        %v2200 = vmax.f32 %v1457, 0.0
        %v2201 = vmax.f32 %v1459, 0.0
        %v2202 = vmax.f32 %v1650, 0.0
        %v2203 = vmax.f32 %v1652, 0.0
        %v2204 = vmax.f32 %v1843, 0.0
        %v2205 = vmax.f32 %v1845, 0.0
        %v2206 = vmax.f32 %v2036, 0.0
        %v2207 = vmax.f32 %v2038, 0.0
        %v2208 = vmax.f32 %v1461, 0.0
        %v2209 = vmax.f32 %v1463, 0.0
        %v2210 = vmax.f32 %v1654, 0.0
        %v2211 = vmax.f32 %v1656, 0.0
        %v2212 = vmax.f32 %v1847, 0.0
        %v2213 = vmax.f32 %v1849, 0.0
        %v2214 = vmax.f32 %v2040, 0.0
        %v2215 = vmax.f32 %v2042, 0.0
        %v2216 = vmax.f32 %v1467, 0.0
        %v2217 = vmax.f32 %v1469, 0.0
        %v2218 = vmax.f32 %v1660, 0.0
        %v2219 = vmax.f32 %v1662, 0.0
        %v2220 = vmax.f32 %v1853, 0.0
        %v2221 = vmax.f32 %v1855, 0.0
        %v2222 = vmax.f32 %v2046, 0.0
        %v2223 = vmax.f32 %v2048, 0.0
        %v2224 = vmax.f32 %v1471, 0.0
        %v2225 = vmax.f32 %v1473, 0.0
        %v2226 = vmax.f32 %v1664, 0.0
        %v2227 = vmax.f32 %v1666, 0.0
        %v2228 = vmax.f32 %v1857, 0.0
        %v2229 = vmax.f32 %v1859, 0.0
        %v2230 = vmax.f32 %v2050, 0.0
        %v2231 = vmax.f32 %v2052, 0.0
        %v2232 = vmax.f32 %v1477, 0.0
        %v2233 = vmax.f32 %v1479, 0.0
        %v2234 = vmax.f32 %v1670, 0.0
        %v2235 = vmax.f32 %v1672, 0.0
        %v2236 = vmax.f32 %v1863, 0.0
        %v2237 = vmax.f32 %v1865, 0.0
        %v2238 = vmax.f32 %v2056, 0.0
        %v2239 = vmax.f32 %v2058, 0.0
        %v2240 = vmax.f32 %v1481, 0.0
        %v2241 = vmax.f32 %v1483, 0.0
        %v2242 = vmax.f32 %v1674, 0.0
        %v2243 = vmax.f32 %v1676, 0.0
        %v2244 = vmax.f32 %v1867, 0.0
        %v2245 = vmax.f32 %v1869, 0.0
        %v2246 = vmax.f32 %v2060, 0.0
        %v2247 = vmax.f32 %v2062, 0.0
        %v2248 = vmax.f32 %v1487, 0.0
        %v2249 = vmax.f32 %v1489, 0.0
        %v2250 = vmax.f32 %v1680, 0.0
        %v2251 = vmax.f32 %v1682, 0.0
        %v2252 = vmax.f32 %v1873, 0.0
        %v2253 = vmax.f32 %v1875, 0.0
        %v2254 = vmax.f32 %v2066, 0.0
        %v2255 = vmax.f32 %v2068, 0.0
        %v2256 = vmax.f32 %v1491, 0.0
        %v2257 = vmax.f32 %v1493, 0.0
        %v2258 = vmax.f32 %v1684, 0.0
        %v2259 = vmax.f32 %v1686, 0.0
        %v2260 = vmax.f32 %v1877, 0.0
        %v2261 = vmax.f32 %v1879, 0.0
        %v2262 = vmax.f32 %v2070, 0.0
        %v2263 = vmax.f32 %v2072, 0.0
        %v2264 = vmax.f32 %v1497, 0.0
        %v2265 = vmax.f32 %v1499, 0.0
        %v2266 = vmax.f32 %v1690, 0.0
        %v2267 = vmax.f32 %v1692, 0.0
        %v2268 = vmax.f32 %v1883, 0.0
        %v2269 = vmax.f32 %v1885, 0.0
        %v2270 = vmax.f32 %v2076, 0.0
        %v2271 = vmax.f32 %v2078, 0.0
        %v2272 = vmax.f32 %v1501, 0.0
        %v2273 = vmax.f32 %v1503, 0.0
        %v2274 = vmax.f32 %v1694, 0.0
        %v2275 = vmax.f32 %v1696, 0.0
        %v2276 = vmax.f32 %v1887, 0.0
        %v2277 = vmax.f32 %v1889, 0.0
        %v2278 = vmax.f32 %v2080, 0.0
        %v2279 = vmax.f32 %v2082, 0.0
        %v2280 = vmax.f32 %v1507, 0.0
        %v2281 = vmax.f32 %v1509, 0.0
        %v2282 = vmax.f32 %v1700, 0.0
        %v2283 = vmax.f32 %v1702, 0.0
        %v2284 = vmax.f32 %v1893, 0.0
        %v2285 = vmax.f32 %v1895, 0.0
        %v2286 = vmax.f32 %v2086, 0.0
        %v2287 = vmax.f32 %v2088, 0.0
        %v2288 = vmax.f32 %v1511, 0.0
        %v2289 = vmax.f32 %v1513, 0.0
        %v2290 = vmax.f32 %v1704, 0.0
        %v2291 = vmax.f32 %v1706, 0.0
        %v2292 = vmax.f32 %v1897, 0.0
        %v2293 = vmax.f32 %v1899, 0.0
        %v2294 = vmax.f32 %v2090, 0.0
        %v2295 = vmax.f32 %v2092, 0.0
        %v2296 = vmax.f32 %v1517, 0.0
        %v2297 = vmax.f32 %v1519, 0.0
        %v2298 = vmax.f32 %v1710, 0.0
        %v2299 = vmax.f32 %v1712, 0.0
        %v2300 = vmax.f32 %v1903, 0.0
        %v2301 = vmax.f32 %v1905, 0.0
        %v2302 = vmax.f32 %v2096, 0.0
        %v2303 = vmax.f32 %v2098, 0.0
        %v2304 = vmax.f32 %v1521, 0.0
        %v2305 = vmax.f32 %v1523, 0.0
        %v2306 = vmax.f32 %v1714, 0.0
        %v2307 = vmax.f32 %v1716, 0.0
        %v2308 = vmax.f32 %v1907, 0.0
        %v2309 = vmax.f32 %v1909, 0.0
        %v2310 = vmax.f32 %v2100, 0.0
        %v2311 = vmax.f32 %v2102, 0.0
        %v2312 = vmax.f32 %v1527, 0.0
        %v2313 = vmax.f32 %v1529, 0.0
        %v2314 = vmax.f32 %v1720, 0.0
        %v2315 = vmax.f32 %v1722, 0.0
        %v2316 = vmax.f32 %v1913, 0.0
        %v2317 = vmax.f32 %v1915, 0.0
        %v2318 = vmax.f32 %v2106, 0.0
        %v2319 = vmax.f32 %v2108, 0.0
        %v2320 = vmax.f32 %v1531, 0.0
        %v2321 = vmax.f32 %v1533, 0.0
        %v2322 = vmax.f32 %v1724, 0.0
        %v2323 = vmax.f32 %v1726, 0.0
        %v2324 = vmax.f32 %v1917, 0.0
        %v2325 = vmax.f32 %v1919, 0.0
        %v2326 = vmax.f32 %v2110, 0.0
        %v2327 = vmax.f32 %v2112, 0.0
        %v2328 = vmax.f32 %v1537, 0.0
        %v2329 = vmax.f32 %v1539, 0.0
        %v2330 = vmax.f32 %v1730, 0.0
        %v2331 = vmax.f32 %v1732, 0.0
        %v2332 = vmax.f32 %v1923, 0.0
        %v2333 = vmax.f32 %v1925, 0.0
        %v2334 = vmax.f32 %v2116, 0.0
        %v2335 = vmax.f32 %v2118, 0.0
        %v2336 = vmax.f32 %v1541, 0.0
        %v2337 = vmax.f32 %v1543, 0.0
        %v2338 = vmax.f32 %v1734, 0.0
        %v2339 = vmax.f32 %v1736, 0.0
        %v2340 = vmax.f32 %v1927, 0.0
        %v2341 = vmax.f32 %v1929, 0.0
        %v2342 = vmax.f32 %v2120, 0.0
        %v2343 = vmax.f32 %v2122, 0.0
        %v2344 = vmax.f32 %v1547, 0.0
        %v2345 = vmax.f32 %v1549, 0.0
        %v2346 = vmax.f32 %v1740, 0.0
        %v2347 = vmax.f32 %v1742, 0.0
        %v2348 = vmax.f32 %v1933, 0.0
        %v2349 = vmax.f32 %v1935, 0.0
        %v2350 = vmax.f32 %v2126, 0.0
        %v2351 = vmax.f32 %v2128, 0.0
        %v2352 = vmax.f32 %v1551, 0.0
        %v2353 = vmax.f32 %v1553, 0.0
        %v2354 = vmax.f32 %v1744, 0.0
        %v2355 = vmax.f32 %v1746, 0.0
        %v2356 = vmax.f32 %v1937, 0.0
        %v2357 = vmax.f32 %v1939, 0.0
        %v2358 = vmax.f32 %v2130, 0.0
        %v2359 = vmax.f32 %v2132, 0.0
        %v2360 = vmax.f32 %v1557, 0.0
        %v2361 = vmax.f32 %v1559, 0.0
        %v2362 = vmax.f32 %v1750, 0.0
        %v2363 = vmax.f32 %v1752, 0.0
        %v2364 = vmax.f32 %v1943, 0.0
        %v2365 = vmax.f32 %v1945, 0.0
        %v2366 = vmax.f32 %v2136, 0.0
        %v2367 = vmax.f32 %v2138, 0.0
        %v2368 = vmax.f32 %v1561, 0.0
        %v2369 = vmax.f32 %v1563, 0.0
        %v2370 = vmax.f32 %v1754, 0.0
        %v2371 = vmax.f32 %v1756, 0.0
        %v2372 = vmax.f32 %v1947, 0.0
        %v2373 = vmax.f32 %v1949, 0.0
        %v2374 = vmax.f32 %v2140, 0.0
        %v2375 = vmax.f32 %v2142, 0.0
        %v2376 = vmax.f32 %v1567, 0.0
        %v2377 = vmax.f32 %v1569, 0.0
        %v2378 = vmax.f32 %v1760, 0.0
        %v2379 = vmax.f32 %v1762, 0.0
        %v2380 = vmax.f32 %v1953, 0.0
        %v2381 = vmax.f32 %v1955, 0.0
        %v2382 = vmax.f32 %v2146, 0.0
        %v2383 = vmax.f32 %v2148, 0.0
        %v2384 = vmax.f32 %v1571, 0.0
        %v2385 = vmax.f32 %v1573, 0.0
        %v2386 = vmax.f32 %v1764, 0.0
        %v2387 = vmax.f32 %v1766, 0.0
        %v2388 = vmax.f32 %v1957, 0.0
        %v2389 = vmax.f32 %v1959, 0.0
        %v2390 = vmax.f32 %v2150, 0.0
        %v2391 = vmax.f32 %v2152, 0.0
        %v2392 = vmax.f32 %v1577, 0.0
        %v2393 = vmax.f32 %v1579, 0.0
        %v2394 = vmax.f32 %v1770, 0.0
        %v2395 = vmax.f32 %v1772, 0.0
        %v2396 = vmax.f32 %v1963, 0.0
        %v2397 = vmax.f32 %v1965, 0.0
        %v2398 = vmax.f32 %v2156, 0.0
        %v2399 = vmax.f32 %v2158, 0.0
        %v2400 = vmax.f32 %v1581, 0.0
        %v2401 = vmax.f32 %v1583, 0.0
        %v2402 = vmax.f32 %v1774, 0.0
        %v2403 = vmax.f32 %v1776, 0.0
        %v2404 = vmax.f32 %v1967, 0.0
        %v2405 = vmax.f32 %v1969, 0.0
        %v2406 = vmax.f32 %v2160, 0.0
        %v2407 = vmax.f32 %v2162, 0.0
        %v2408 = vmax.f32 %v1587, 0.0
        %v2409 = vmax.f32 %v1589, 0.0
        %v2410 = vmax.f32 %v1780, 0.0
        %v2411 = vmax.f32 %v1782, 0.0
        %v2412 = vmax.f32 %v1973, 0.0
        %v2413 = vmax.f32 %v1975, 0.0
        %v2414 = vmax.f32 %v2166, 0.0
        %v2415 = vmax.f32 %v2168, 0.0
        %v2416 = vmax.f32 %v1591, 0.0
        %v2417 = vmax.f32 %v1593, 0.0
        %v2418 = vmax.f32 %v1784, 0.0
        %v2419 = vmax.f32 %v1786, 0.0
        %v2420 = vmax.f32 %v1977, 0.0
        %v2421 = vmax.f32 %v1979, 0.0
        %v2422 = vmax.f32 %v2170, 0.0
        %v2423 = vmax.f32 %v2172, 0.0
        %v2424 = vmax.f32 %v1597, 0.0
        %v2425 = vmax.f32 %v1599, 0.0
        %v2426 = vmax.f32 %v1790, 0.0
        %v2427 = vmax.f32 %v1792, 0.0
        %v2428 = vmax.f32 %v1983, 0.0
        %v2429 = vmax.f32 %v1985, 0.0
        %v2430 = vmax.f32 %v2176, 0.0
        %v2431 = vmax.f32 %v2178, 0.0
        %v2432 = vmax.f32 %v1601, 0.0
        %v2433 = vmax.f32 %v1603, 0.0
        %v2434 = vmax.f32 %v1794, 0.0
        %v2435 = vmax.f32 %v1796, 0.0
        %v2436 = vmax.f32 %v1987, 0.0
        %v2437 = vmax.f32 %v1989, 0.0
        %v2438 = vmax.f32 %v2180, 0.0
        %v2439 = vmax.f32 %v2182, 0.0
        %v2440 = vld [vmem:[#allocation2] sm:$0xff]
        %v2441 = vld [vmem:[#allocation2 + $0x8] sm:$0xff]
        %v2442 = vld [vmem:[#allocation2 + $0x10] sm:$0xff]
        %v2443 = vld [vmem:[#allocation2 + $0x18] sm:$0xff]
        %v2444 = vld [vmem:[#allocation2 + $0x20] sm:$0xff]
        %v2445 = vld [vmem:[#allocation2 + $0x28] sm:$0xff]
        %v2446 = vld [vmem:[#allocation2 + $0x30] sm:$0xff]
        %v2447 = vld [vmem:[#allocation2 + $0x38] sm:$0xff]
        %v2448 = vld [vmem:[#allocation2 + $0x40] sm:$0xff]
        %v2449 = vld [vmem:[#allocation2 + $0x48] sm:$0xff]
        %v2450 = vld [vmem:[#allocation2 + $0x50] sm:$0xff]
        %v2451 = vld [vmem:[#allocation2 + $0x58] sm:$0xff]
        %v2452 = vld [vmem:[#allocation2 + $0x60] sm:$0xff]
        %v2453 = vld [vmem:[#allocation2 + $0x68] sm:$0xff]
        %v2454 = vld [vmem:[#allocation2 + $0x70] sm:$0xff]
        %v2455 = vld [vmem:[#allocation2 + $0x78] sm:$0xff]
        %v2456 = vld [vmem:[#allocation2 + $0x80] sm:$0xff]
        %v2457 = vld [vmem:[#allocation2 + $0x88] sm:$0xff]
        %v2458 = vld [vmem:[#allocation2 + $0x90] sm:$0xff]
        %v2459 = vld [vmem:[#allocation2 + $0x98] sm:$0xff]
        %v2460 = vld [vmem:[#allocation2 + $0xa0] sm:$0xff]
        %v2461 = vld [vmem:[#allocation2 + $0xa8] sm:$0xff]
        %v2462 = vld [vmem:[#allocation2 + $0xb0] sm:$0xff]
        %v2463 = vld [vmem:[#allocation2 + $0xb8] sm:$0xff]
        %v2464 = vld [vmem:[#allocation2 + $0xc0] sm:$0xff]
        %v2465 = vld [vmem:[#allocation2 + $0xc8] sm:$0xff]
        %v2466 = vld [vmem:[#allocation2 + $0xd0] sm:$0xff]
        %v2467 = vld [vmem:[#allocation2 + $0xd8] sm:$0xff]
        %v2468 = vld [vmem:[#allocation2 + $0xe0] sm:$0xff]
        %v2469 = vld [vmem:[#allocation2 + $0xe8] sm:$0xff]
        %v2470 = vld [vmem:[#allocation2 + $0xf0] sm:$0xff]
        %v2471 = vld [vmem:[#allocation2 + $0xf8] sm:$0xff]
        %v2472 = vld [vmem:[#allocation2 + $0x100] sm:$0xff]
        %v2473 = vld [vmem:[#allocation2 + $0x108] sm:$0xff]
        %v2474 = vld [vmem:[#allocation2 + $0x110] sm:$0xff]
        %v2475 = vld [vmem:[#allocation2 + $0x118] sm:$0xff]
        %v2476 = vld [vmem:[#allocation2 + $0x120] sm:$0xff]
        %v2477 = vld [vmem:[#allocation2 + $0x128] sm:$0xff]
        %v2478 = vld [vmem:[#allocation2 + $0x130] sm:$0xff]
        %v2479 = vld [vmem:[#allocation2 + $0x138] sm:$0xff]
        %v2480 = vld [vmem:[#allocation2 + $0x140] sm:$0xff]
        %v2481 = vld [vmem:[#allocation2 + $0x148] sm:$0xff]
        %v2482 = vld [vmem:[#allocation2 + $0x150] sm:$0xff]
        %v2483 = vld [vmem:[#allocation2 + $0x158] sm:$0xff]
        %v2484 = vld [vmem:[#allocation2 + $0x160] sm:$0xff]
        %v2485 = vld [vmem:[#allocation2 + $0x168] sm:$0xff]
        %v2486 = vld [vmem:[#allocation2 + $0x170] sm:$0xff]
        %v2487 = vld [vmem:[#allocation2 + $0x178] sm:$0xff]
        %v2488 = vld [vmem:[#allocation2 + $0x180] sm:$0xff]
        %v2489 = vld [vmem:[#allocation2 + $0x188] sm:$0xff]
        %v2490 = vld [vmem:[#allocation2 + $0x190] sm:$0xff]
        %v2491 = vld [vmem:[#allocation2 + $0x198] sm:$0xff]
        %v2492 = vld [vmem:[#allocation2 + $0x1a0] sm:$0xff]
        %v2493 = vld [vmem:[#allocation2 + $0x1a8] sm:$0xff]
        %v2494 = vld [vmem:[#allocation2 + $0x1b0] sm:$0xff]
        %v2495 = vld [vmem:[#allocation2 + $0x1b8] sm:$0xff]
        %v2496 = vld [vmem:[#allocation2 + $0x1c0] sm:$0xff]
        %v2497 = vld [vmem:[#allocation2 + $0x1c8] sm:$0xff]
        %v2498 = vld [vmem:[#allocation2 + $0x1d0] sm:$0xff]
        %v2499 = vld [vmem:[#allocation2 + $0x1d8] sm:$0xff]
        %v2500 = vld [vmem:[#allocation2 + $0x1e0] sm:$0xff]
        %v2501 = vld [vmem:[#allocation2 + $0x1e8] sm:$0xff]
        %v2502 = vld [vmem:[#allocation2 + $0x1f0] sm:$0xff]
        %v2503 = vld [vmem:[#allocation2 + $0x1f8] sm:$0xff]
        %v2504 = vpack.c.bf16 %v2192, %v2184
        %v2505 = vpack.c.bf16 %v2193, %v2185
        %v2506 = vpack.c.bf16 %v2194, %v2186
        %v2507 = vpack.c.bf16 %v2195, %v2187
        %v2508 = vpack.c.bf16 %v2196, %v2188
        %v2509 = vpack.c.bf16 %v2197, %v2189
        %v2510 = vpack.c.bf16 %v2198, %v2190
        %v2511 = vpack.c.bf16 %v2199, %v2191
        %v2512 = vpack.c.bf16 %v2208, %v2200
        %v2513 = vpack.c.bf16 %v2209, %v2201
        %v2514 = vpack.c.bf16 %v2210, %v2202
        %v2515 = vpack.c.bf16 %v2211, %v2203
        %v2516 = vpack.c.bf16 %v2212, %v2204
        %v2517 = vpack.c.bf16 %v2213, %v2205
        %v2518 = vpack.c.bf16 %v2214, %v2206
        %v2519 = vpack.c.bf16 %v2215, %v2207
        %v2520 = vpack.c.bf16 %v2224, %v2216
        %v2521 = vpack.c.bf16 %v2225, %v2217
        %v2522 = vpack.c.bf16 %v2226, %v2218
        %v2523 = vpack.c.bf16 %v2227, %v2219
        %v2524 = vpack.c.bf16 %v2228, %v2220
        %v2525 = vpack.c.bf16 %v2229, %v2221
        %v2526 = vpack.c.bf16 %v2230, %v2222
        %v2527 = vpack.c.bf16 %v2231, %v2223
        %v2528 = vpack.c.bf16 %v2240, %v2232
        %v2529 = vpack.c.bf16 %v2241, %v2233
        %v2530 = vpack.c.bf16 %v2242, %v2234
        %v2531 = vpack.c.bf16 %v2243, %v2235
        %v2532 = vpack.c.bf16 %v2244, %v2236
        %v2533 = vpack.c.bf16 %v2245, %v2237
        %v2534 = vpack.c.bf16 %v2246, %v2238
        %v2535 = vpack.c.bf16 %v2247, %v2239
        %v2536 = vpack.c.bf16 %v2256, %v2248
        %v2537 = vpack.c.bf16 %v2257, %v2249
        %v2538 = vpack.c.bf16 %v2258, %v2250
        %v2539 = vpack.c.bf16 %v2259, %v2251
        %v2540 = vpack.c.bf16 %v2260, %v2252
        %v2541 = vpack.c.bf16 %v2261, %v2253
        %v2542 = vpack.c.bf16 %v2262, %v2254
        %v2543 = vpack.c.bf16 %v2263, %v2255
        %v2544 = vpack.c.bf16 %v2272, %v2264
        %v2545 = vpack.c.bf16 %v2273, %v2265
        %v2546 = vpack.c.bf16 %v2274, %v2266
        %v2547 = vpack.c.bf16 %v2275, %v2267
        %v2548 = vpack.c.bf16 %v2276, %v2268
        %v2549 = vpack.c.bf16 %v2277, %v2269
        %v2550 = vpack.c.bf16 %v2278, %v2270
        %v2551 = vpack.c.bf16 %v2279, %v2271
        %v2552 = vpack.c.bf16 %v2288, %v2280
        %v2553 = vpack.c.bf16 %v2289, %v2281
        %v2554 = vpack.c.bf16 %v2290, %v2282
        %v2555 = vpack.c.bf16 %v2291, %v2283
        %v2556 = vpack.c.bf16 %v2292, %v2284
        %v2557 = vpack.c.bf16 %v2293, %v2285
        %v2558 = vpack.c.bf16 %v2294, %v2286
        %v2559 = vpack.c.bf16 %v2295, %v2287
        %v2560 = vpack.c.bf16 %v2304, %v2296
        %v2561 = vpack.c.bf16 %v2305, %v2297
        %v2562 = vpack.c.bf16 %v2306, %v2298
        %v2563 = vpack.c.bf16 %v2307, %v2299
        %v2564 = vpack.c.bf16 %v2308, %v2300
        %v2565 = vpack.c.bf16 %v2309, %v2301
        %v2566 = vpack.c.bf16 %v2310, %v2302
        %v2567 = vpack.c.bf16 %v2311, %v2303
        %v2568 = vpack.c.bf16 %v2320, %v2312
        %v2569 = vpack.c.bf16 %v2321, %v2313
        %v2570 = vpack.c.bf16 %v2322, %v2314
        %v2571 = vpack.c.bf16 %v2323, %v2315
        %v2572 = vpack.c.bf16 %v2324, %v2316
        %v2573 = vpack.c.bf16 %v2325, %v2317
        %v2574 = vpack.c.bf16 %v2326, %v2318
        %v2575 = vpack.c.bf16 %v2327, %v2319
        %v2576 = vpack.c.bf16 %v2336, %v2328
        %v2577 = vpack.c.bf16 %v2337, %v2329
        %v2578 = vpack.c.bf16 %v2338, %v2330
        %v2579 = vpack.c.bf16 %v2339, %v2331
        %v2580 = vpack.c.bf16 %v2340, %v2332
        %v2581 = vpack.c.bf16 %v2341, %v2333
        %v2582 = vpack.c.bf16 %v2342, %v2334
        %v2583 = vpack.c.bf16 %v2343, %v2335
        %v2584 = vpack.c.bf16 %v2352, %v2344
        %v2585 = vpack.c.bf16 %v2353, %v2345
        %v2586 = vpack.c.bf16 %v2354, %v2346
        %v2587 = vpack.c.bf16 %v2355, %v2347
        %v2588 = vpack.c.bf16 %v2356, %v2348
        %v2589 = vpack.c.bf16 %v2357, %v2349
        %v2590 = vpack.c.bf16 %v2358, %v2350
        %v2591 = vpack.c.bf16 %v2359, %v2351
        %v2592 = vpack.c.bf16 %v2368, %v2360
        %v2593 = vpack.c.bf16 %v2369, %v2361
        %v2594 = vpack.c.bf16 %v2370, %v2362
        %v2595 = vpack.c.bf16 %v2371, %v2363
        %v2596 = vpack.c.bf16 %v2372, %v2364
        %v2597 = vpack.c.bf16 %v2373, %v2365
        %v2598 = vpack.c.bf16 %v2374, %v2366
        %v2599 = vpack.c.bf16 %v2375, %v2367
        %v2600 = vpack.c.bf16 %v2384, %v2376
        %v2601 = vpack.c.bf16 %v2385, %v2377
        %v2602 = vpack.c.bf16 %v2386, %v2378
        %v2603 = vpack.c.bf16 %v2387, %v2379
        %v2604 = vpack.c.bf16 %v2388, %v2380
        %v2605 = vpack.c.bf16 %v2389, %v2381
        %v2606 = vpack.c.bf16 %v2390, %v2382
        %v2607 = vpack.c.bf16 %v2391, %v2383
        %v2608 = vpack.c.bf16 %v2400, %v2392
        %v2609 = vpack.c.bf16 %v2401, %v2393
        %v2610 = vpack.c.bf16 %v2402, %v2394
        %v2611 = vpack.c.bf16 %v2403, %v2395
        %v2612 = vpack.c.bf16 %v2404, %v2396
        %v2613 = vpack.c.bf16 %v2405, %v2397
        %v2614 = vpack.c.bf16 %v2406, %v2398
        %v2615 = vpack.c.bf16 %v2407, %v2399
        %v2616 = vpack.c.bf16 %v2416, %v2408
        %v2617 = vpack.c.bf16 %v2417, %v2409
        %v2618 = vpack.c.bf16 %v2418, %v2410
        %v2619 = vpack.c.bf16 %v2419, %v2411
        %v2620 = vpack.c.bf16 %v2420, %v2412
        %v2621 = vpack.c.bf16 %v2421, %v2413
        %v2622 = vpack.c.bf16 %v2422, %v2414
        %v2623 = vpack.c.bf16 %v2423, %v2415
        %v2624 = vpack.c.bf16 %v2432, %v2424
        %v2625 = vpack.c.bf16 %v2433, %v2425
        %v2626 = vpack.c.bf16 %v2434, %v2426
        %v2627 = vpack.c.bf16 %v2435, %v2427
        %v2628 = vpack.c.bf16 %v2436, %v2428
        %v2629 = vpack.c.bf16 %v2437, %v2429
        %v2630 = vpack.c.bf16 %v2438, %v2430
        %v2631 = vpack.c.bf16 %v2439, %v2431
        %v2632 = vld [vmem:[#allocation8] sm:$0xff]
        %v2633 = vld [vmem:[#allocation8 + $0x8] sm:$0xff]
        %v2634 = vld [vmem:[#allocation8 + $0x10] sm:$0xff]
        %v2635 = vld [vmem:[#allocation8 + $0x18] sm:$0xff]
        %v2636 = vld [vmem:[#allocation8 + $0x20] sm:$0xff]
        %v2637 = vld [vmem:[#allocation8 + $0x28] sm:$0xff]
        %v2638 = vld [vmem:[#allocation8 + $0x30] sm:$0xff]
        %v2639 = vld [vmem:[#allocation8 + $0x38] sm:$0xff]
        %v2640 = vld [vmem:[#allocation8 + $0x40] sm:$0xff]
        %v2641 = vld [vmem:[#allocation8 + $0x48] sm:$0xff]
        %v2642 = vld [vmem:[#allocation8 + $0x50] sm:$0xff]
        %v2643 = vld [vmem:[#allocation8 + $0x58] sm:$0xff]
        %v2644 = vld [vmem:[#allocation8 + $0x60] sm:$0xff]
        %v2645 = vld [vmem:[#allocation8 + $0x68] sm:$0xff]
        %v2646 = vld [vmem:[#allocation8 + $0x70] sm:$0xff]
        %v2647 = vld [vmem:[#allocation8 + $0x78] sm:$0xff]
        %v2648 = vld [vmem:[#allocation8 + $0x80] sm:$0xff]
        %v2649 = vld [vmem:[#allocation8 + $0x88] sm:$0xff]
        %v2650 = vld [vmem:[#allocation8 + $0x90] sm:$0xff]
        %v2651 = vld [vmem:[#allocation8 + $0x98] sm:$0xff]
        %v2652 = vld [vmem:[#allocation8 + $0xa0] sm:$0xff]
        %v2653 = vld [vmem:[#allocation8 + $0xa8] sm:$0xff]
        %v2654 = vld [vmem:[#allocation8 + $0xb0] sm:$0xff]
        %v2655 = vld [vmem:[#allocation8 + $0xb8] sm:$0xff]
        %v2656 = vld [vmem:[#allocation8 + $0xc0] sm:$0xff]
        %v2657 = vld [vmem:[#allocation8 + $0xc8] sm:$0xff]
        %v2658 = vld [vmem:[#allocation8 + $0xd0] sm:$0xff]
        %v2659 = vld [vmem:[#allocation8 + $0xd8] sm:$0xff]
        %v2660 = vld [vmem:[#allocation8 + $0xe0] sm:$0xff]
        %v2661 = vld [vmem:[#allocation8 + $0xe8] sm:$0xff]
        %v2662 = vld [vmem:[#allocation8 + $0xf0] sm:$0xff]
        %v2663 = vld [vmem:[#allocation8 + $0xf8] sm:$0xff]
        %v2664 = vld [vmem:[#allocation8 + $0x100] sm:$0xff]
        %v2665 = vld [vmem:[#allocation8 + $0x108] sm:$0xff]
        %v2666 = vld [vmem:[#allocation8 + $0x110] sm:$0xff]
        %v2667 = vld [vmem:[#allocation8 + $0x118] sm:$0xff]
        %v2668 = vld [vmem:[#allocation8 + $0x120] sm:$0xff]
        %v2669 = vld [vmem:[#allocation8 + $0x128] sm:$0xff]
        %v2670 = vld [vmem:[#allocation8 + $0x130] sm:$0xff]
        %v2671 = vld [vmem:[#allocation8 + $0x138] sm:$0xff]
        %v2672 = vld [vmem:[#allocation8 + $0x140] sm:$0xff]
        %v2673 = vld [vmem:[#allocation8 + $0x148] sm:$0xff]
        %v2674 = vld [vmem:[#allocation8 + $0x150] sm:$0xff]
        %v2675 = vld [vmem:[#allocation8 + $0x158] sm:$0xff]
        %v2676 = vld [vmem:[#allocation8 + $0x160] sm:$0xff]
        %v2677 = vld [vmem:[#allocation8 + $0x168] sm:$0xff]
        %v2678 = vld [vmem:[#allocation8 + $0x170] sm:$0xff]
        %v2679 = vld [vmem:[#allocation8 + $0x178] sm:$0xff]
        %v2680 = vld [vmem:[#allocation8 + $0x180] sm:$0xff]
        %v2681 = vld [vmem:[#allocation8 + $0x188] sm:$0xff]
        %v2682 = vld [vmem:[#allocation8 + $0x190] sm:$0xff]
        %v2683 = vld [vmem:[#allocation8 + $0x198] sm:$0xff]
        %v2684 = vld [vmem:[#allocation8 + $0x1a0] sm:$0xff]
        %v2685 = vld [vmem:[#allocation8 + $0x1a8] sm:$0xff]
        %v2686 = vld [vmem:[#allocation8 + $0x1b0] sm:$0xff]
        %v2687 = vld [vmem:[#allocation8 + $0x1b8] sm:$0xff]
        %v2688 = vld [vmem:[#allocation8 + $0x1c0] sm:$0xff]
        %v2689 = vld [vmem:[#allocation8 + $0x1c8] sm:$0xff]
        %v2690 = vld [vmem:[#allocation8 + $0x1d0] sm:$0xff]
        %v2691 = vld [vmem:[#allocation8 + $0x1d8] sm:$0xff]
        %v2692 = vld [vmem:[#allocation8 + $0x1e0] sm:$0xff]
        %v2693 = vld [vmem:[#allocation8 + $0x1e8] sm:$0xff]
        %v2694 = vld [vmem:[#allocation8 + $0x1f0] sm:$0xff]
        %v2695 = vld [vmem:[#allocation8 + $0x1f8] sm:$0xff]
        %v2696 = vld [vmem:[#allocation8 + $0x200] sm:$0xff]
        %v2697 = vld [vmem:[#allocation8 + $0x208] sm:$0xff]
        %v2698 = vld [vmem:[#allocation8 + $0x210] sm:$0xff]
        %v2699 = vld [vmem:[#allocation8 + $0x218] sm:$0xff]
        %v2700 = vld [vmem:[#allocation8 + $0x220] sm:$0xff]
        %v2701 = vld [vmem:[#allocation8 + $0x228] sm:$0xff]
        %v2702 = vld [vmem:[#allocation8 + $0x230] sm:$0xff]
        %v2703 = vld [vmem:[#allocation8 + $0x238] sm:$0xff]
        %v2704 = vld [vmem:[#allocation8 + $0x240] sm:$0xff]
        %v2705 = vld [vmem:[#allocation8 + $0x248] sm:$0xff]
        %v2706 = vld [vmem:[#allocation8 + $0x250] sm:$0xff]
        %v2707 = vld [vmem:[#allocation8 + $0x258] sm:$0xff]
        %v2708 = vld [vmem:[#allocation8 + $0x260] sm:$0xff]
        %v2709 = vld [vmem:[#allocation8 + $0x268] sm:$0xff]
        %v2710 = vld [vmem:[#allocation8 + $0x270] sm:$0xff]
        %v2711 = vld [vmem:[#allocation8 + $0x278] sm:$0xff]
        %v2712 = vld [vmem:[#allocation8 + $0x280] sm:$0xff]
        %v2713 = vld [vmem:[#allocation8 + $0x288] sm:$0xff]
        %v2714 = vld [vmem:[#allocation8 + $0x290] sm:$0xff]
        %v2715 = vld [vmem:[#allocation8 + $0x298] sm:$0xff]
        %v2716 = vld [vmem:[#allocation8 + $0x2a0] sm:$0xff]
        %v2717 = vld [vmem:[#allocation8 + $0x2a8] sm:$0xff]
        %v2718 = vld [vmem:[#allocation8 + $0x2b0] sm:$0xff]
        %v2719 = vld [vmem:[#allocation8 + $0x2b8] sm:$0xff]
        %v2720 = vld [vmem:[#allocation8 + $0x2c0] sm:$0xff]
        %v2721 = vld [vmem:[#allocation8 + $0x2c8] sm:$0xff]
        %v2722 = vld [vmem:[#allocation8 + $0x2d0] sm:$0xff]
        %v2723 = vld [vmem:[#allocation8 + $0x2d8] sm:$0xff]
        %v2724 = vld [vmem:[#allocation8 + $0x2e0] sm:$0xff]
        %v2725 = vld [vmem:[#allocation8 + $0x2e8] sm:$0xff]
        %v2726 = vld [vmem:[#allocation8 + $0x2f0] sm:$0xff]
        %v2727 = vld [vmem:[#allocation8 + $0x2f8] sm:$0xff]
        %v2728 = vld [vmem:[#allocation8 + $0x300] sm:$0xff]
        %v2729 = vld [vmem:[#allocation8 + $0x308] sm:$0xff]
        %v2730 = vld [vmem:[#allocation8 + $0x310] sm:$0xff]
        %v2731 = vld [vmem:[#allocation8 + $0x318] sm:$0xff]
        %v2732 = vld [vmem:[#allocation8 + $0x320] sm:$0xff]
        %v2733 = vld [vmem:[#allocation8 + $0x328] sm:$0xff]
        %v2734 = vld [vmem:[#allocation8 + $0x330] sm:$0xff]
        %v2735 = vld [vmem:[#allocation8 + $0x338] sm:$0xff]
        %v2736 = vld [vmem:[#allocation8 + $0x340] sm:$0xff]
        %v2737 = vld [vmem:[#allocation8 + $0x348] sm:$0xff]
        %v2738 = vld [vmem:[#allocation8 + $0x350] sm:$0xff]
        %v2739 = vld [vmem:[#allocation8 + $0x358] sm:$0xff]
        %v2740 = vld [vmem:[#allocation8 + $0x360] sm:$0xff]
        %v2741 = vld [vmem:[#allocation8 + $0x368] sm:$0xff]
        %v2742 = vld [vmem:[#allocation8 + $0x370] sm:$0xff]
        %v2743 = vld [vmem:[#allocation8 + $0x378] sm:$0xff]
        %v2744 = vld [vmem:[#allocation8 + $0x380] sm:$0xff]
        %v2745 = vld [vmem:[#allocation8 + $0x388] sm:$0xff]
        %v2746 = vld [vmem:[#allocation8 + $0x390] sm:$0xff]
        %v2747 = vld [vmem:[#allocation8 + $0x398] sm:$0xff]
        %v2748 = vld [vmem:[#allocation8 + $0x3a0] sm:$0xff]
        %v2749 = vld [vmem:[#allocation8 + $0x3a8] sm:$0xff]
        %v2750 = vld [vmem:[#allocation8 + $0x3b0] sm:$0xff]
        %v2751 = vld [vmem:[#allocation8 + $0x3b8] sm:$0xff]
        %v2752 = vld [vmem:[#allocation8 + $0x3c0] sm:$0xff]
        %v2753 = vld [vmem:[#allocation8 + $0x3c8] sm:$0xff]
        %v2754 = vld [vmem:[#allocation8 + $0x3d0] sm:$0xff]
        %v2755 = vld [vmem:[#allocation8 + $0x3d8] sm:$0xff]
        %v2756 = vld [vmem:[#allocation8 + $0x3e0] sm:$0xff]
        %v2757 = vld [vmem:[#allocation8 + $0x3e8] sm:$0xff]
        %v2758 = vld [vmem:[#allocation8 + $0x3f0] sm:$0xff]
        %v2759 = vld [vmem:[#allocation8 + $0x3f8] sm:$0xff]
        %v2888 = vunpack.c.l.b16 %v2632
        %v2889 = vunpack.c.h.b16 %v2632
        %v2890 = vunpack.c.l.b16 %v2633
        %v2891 = vunpack.c.h.b16 %v2633
        %v2892 = vunpack.c.l.b16 %v2634
        %v2893 = vunpack.c.h.b16 %v2634
        %v2894 = vunpack.c.l.b16 %v2635
        %v2895 = vunpack.c.h.b16 %v2635
        %v2896 = vunpack.c.l.b16 %v2636
        %v2897 = vunpack.c.h.b16 %v2636
        %v2898 = vunpack.c.l.b16 %v2637
        %v2899 = vunpack.c.h.b16 %v2637
        %v2900 = vunpack.c.l.b16 %v2638
        %v2901 = vunpack.c.h.b16 %v2638
        %v2902 = vunpack.c.l.b16 %v2639
        %v2903 = vunpack.c.h.b16 %v2639
        %v2904 = vunpack.c.l.b16 %v2640
        %v2905 = vunpack.c.h.b16 %v2640
        %v2906 = vunpack.c.l.b16 %v2641
        %v2907 = vunpack.c.h.b16 %v2641
        %v2908 = vunpack.c.l.b16 %v2642
        %v2909 = vunpack.c.h.b16 %v2642
        %v2910 = vunpack.c.l.b16 %v2643
        %v2911 = vunpack.c.h.b16 %v2643
        %v2912 = vunpack.c.l.b16 %v2644
        %v2913 = vunpack.c.h.b16 %v2644
        %v2914 = vunpack.c.l.b16 %v2645
        %v2915 = vunpack.c.h.b16 %v2645
        %v2916 = vunpack.c.l.b16 %v2646
        %v2917 = vunpack.c.h.b16 %v2646
        %v2918 = vunpack.c.l.b16 %v2647
        %v2919 = vunpack.c.h.b16 %v2647
        %v2920 = vunpack.c.l.b16 %v2648
        %v2921 = vunpack.c.h.b16 %v2648
        %v2922 = vunpack.c.l.b16 %v2649
        %v2923 = vunpack.c.h.b16 %v2649
        %v2924 = vunpack.c.l.b16 %v2650
        %v2925 = vunpack.c.h.b16 %v2650
        %v2926 = vunpack.c.l.b16 %v2651
        %v2927 = vunpack.c.h.b16 %v2651
        %v2928 = vunpack.c.l.b16 %v2652
        %v2929 = vunpack.c.h.b16 %v2652
        %v2930 = vunpack.c.l.b16 %v2653
        %v2931 = vunpack.c.h.b16 %v2653
        %v2932 = vunpack.c.l.b16 %v2654
        %v2933 = vunpack.c.h.b16 %v2654
        %v2934 = vunpack.c.l.b16 %v2655
        %v2935 = vunpack.c.h.b16 %v2655
        %v2936 = vunpack.c.l.b16 %v2656
        %v2937 = vunpack.c.h.b16 %v2656
        %v2938 = vunpack.c.l.b16 %v2657
        %v2939 = vunpack.c.h.b16 %v2657
        %v2940 = vunpack.c.l.b16 %v2658
        %v2941 = vunpack.c.h.b16 %v2658
        %v2942 = vunpack.c.l.b16 %v2659
        %v2943 = vunpack.c.h.b16 %v2659
        %v2944 = vunpack.c.l.b16 %v2660
        %v2945 = vunpack.c.h.b16 %v2660
        %v2946 = vunpack.c.l.b16 %v2661
        %v2947 = vunpack.c.h.b16 %v2661
        %v2948 = vunpack.c.l.b16 %v2662
        %v2949 = vunpack.c.h.b16 %v2662
        %v2950 = vunpack.c.l.b16 %v2663
        %v2951 = vunpack.c.h.b16 %v2663
        %v2952 = vunpack.c.l.b16 %v2664
        %v2953 = vunpack.c.h.b16 %v2664
        %v2954 = vunpack.c.l.b16 %v2665
        %v2955 = vunpack.c.h.b16 %v2665
        %v2956 = vunpack.c.l.b16 %v2666
        %v2957 = vunpack.c.h.b16 %v2666
        %v2958 = vunpack.c.l.b16 %v2667
        %v2959 = vunpack.c.h.b16 %v2667
        %v2960 = vunpack.c.l.b16 %v2668
        %v2961 = vunpack.c.h.b16 %v2668
        %v2962 = vunpack.c.l.b16 %v2669
        %v2963 = vunpack.c.h.b16 %v2669
        %v2964 = vunpack.c.l.b16 %v2670
        %v2965 = vunpack.c.h.b16 %v2670
        %v2966 = vunpack.c.l.b16 %v2671
        %v2967 = vunpack.c.h.b16 %v2671
        %v2968 = vunpack.c.l.b16 %v2672
        %v2969 = vunpack.c.h.b16 %v2672
        %v2970 = vunpack.c.l.b16 %v2673
        %v2971 = vunpack.c.h.b16 %v2673
        %v2972 = vunpack.c.l.b16 %v2674
        %v2973 = vunpack.c.h.b16 %v2674
        %v2974 = vunpack.c.l.b16 %v2675
        %v2975 = vunpack.c.h.b16 %v2675
        %v2976 = vunpack.c.l.b16 %v2676
        %v2977 = vunpack.c.h.b16 %v2676
        %v2978 = vunpack.c.l.b16 %v2677
        %v2979 = vunpack.c.h.b16 %v2677
        %v2980 = vunpack.c.l.b16 %v2678
        %v2981 = vunpack.c.h.b16 %v2678
        %v2982 = vunpack.c.l.b16 %v2679
        %v2983 = vunpack.c.h.b16 %v2679
        %v2984 = vunpack.c.l.b16 %v2680
        %v2985 = vunpack.c.h.b16 %v2680
        %v2986 = vunpack.c.l.b16 %v2681
        %v2987 = vunpack.c.h.b16 %v2681
        %v2988 = vunpack.c.l.b16 %v2682
        %v2989 = vunpack.c.h.b16 %v2682
        %v2990 = vunpack.c.l.b16 %v2683
        %v2991 = vunpack.c.h.b16 %v2683
        %v2992 = vunpack.c.l.b16 %v2684
        %v2993 = vunpack.c.h.b16 %v2684
        %v2994 = vunpack.c.l.b16 %v2685
        %v2995 = vunpack.c.h.b16 %v2685
        %v2996 = vunpack.c.l.b16 %v2686
        %v2997 = vunpack.c.h.b16 %v2686
        %v2998 = vunpack.c.l.b16 %v2687
        %v2999 = vunpack.c.h.b16 %v2687
        %v3000 = vunpack.c.l.b16 %v2688
        %v3001 = vunpack.c.h.b16 %v2688
        %v3002 = vunpack.c.l.b16 %v2689
        %v3003 = vunpack.c.h.b16 %v2689
        %v3004 = vunpack.c.l.b16 %v2690
        %v3005 = vunpack.c.h.b16 %v2690
        %v3006 = vunpack.c.l.b16 %v2691
        %v3007 = vunpack.c.h.b16 %v2691
        %v3008 = vunpack.c.l.b16 %v2692
        %v3009 = vunpack.c.h.b16 %v2692
        %v3010 = vunpack.c.l.b16 %v2693
        %v3011 = vunpack.c.h.b16 %v2693
        %v3012 = vunpack.c.l.b16 %v2694
        %v3013 = vunpack.c.h.b16 %v2694
        %v3014 = vunpack.c.l.b16 %v2695
        %v3015 = vunpack.c.h.b16 %v2695
        %v3016 = vunpack.c.l.b16 %v2696
        %v3017 = vunpack.c.h.b16 %v2696
        %v3018 = vunpack.c.l.b16 %v2697
        %v3019 = vunpack.c.h.b16 %v2697
        %v3020 = vunpack.c.l.b16 %v2698
        %v3021 = vunpack.c.h.b16 %v2698
        %v3022 = vunpack.c.l.b16 %v2699
        %v3023 = vunpack.c.h.b16 %v2699
        %v3024 = vunpack.c.l.b16 %v2700
        %v3025 = vunpack.c.h.b16 %v2700
        %v3026 = vunpack.c.l.b16 %v2701
        %v3027 = vunpack.c.h.b16 %v2701
        %v3028 = vunpack.c.l.b16 %v2702
        %v3029 = vunpack.c.h.b16 %v2702
        %v3030 = vunpack.c.l.b16 %v2703
        %v3031 = vunpack.c.h.b16 %v2703
        %v3032 = vunpack.c.l.b16 %v2704
        %v3033 = vunpack.c.h.b16 %v2704
        %v3034 = vunpack.c.l.b16 %v2705
        %v3035 = vunpack.c.h.b16 %v2705
        %v3036 = vunpack.c.l.b16 %v2706
        %v3037 = vunpack.c.h.b16 %v2706
        %v3038 = vunpack.c.l.b16 %v2707
        %v3039 = vunpack.c.h.b16 %v2707
        %v3040 = vunpack.c.l.b16 %v2708
        %v3041 = vunpack.c.h.b16 %v2708
        %v3042 = vunpack.c.l.b16 %v2709
        %v3043 = vunpack.c.h.b16 %v2709
        %v3044 = vunpack.c.l.b16 %v2710
        %v3045 = vunpack.c.h.b16 %v2710
        %v3046 = vunpack.c.l.b16 %v2711
        %v3047 = vunpack.c.h.b16 %v2711
        %v3048 = vunpack.c.l.b16 %v2712
        %v3049 = vunpack.c.h.b16 %v2712
        %v3050 = vunpack.c.l.b16 %v2713
        %v3051 = vunpack.c.h.b16 %v2713
        %v3052 = vunpack.c.l.b16 %v2714
        %v3053 = vunpack.c.h.b16 %v2714
        %v3054 = vunpack.c.l.b16 %v2715
        %v3055 = vunpack.c.h.b16 %v2715
        %v3056 = vunpack.c.l.b16 %v2716
        %v3057 = vunpack.c.h.b16 %v2716
        %v3058 = vunpack.c.l.b16 %v2717
        %v3059 = vunpack.c.h.b16 %v2717
        %v3060 = vunpack.c.l.b16 %v2718
        %v3061 = vunpack.c.h.b16 %v2718
        %v3062 = vunpack.c.l.b16 %v2719
        %v3063 = vunpack.c.h.b16 %v2719
        %v3064 = vunpack.c.l.b16 %v2720
        %v3065 = vunpack.c.h.b16 %v2720
        %v3066 = vunpack.c.l.b16 %v2721
        %v3067 = vunpack.c.h.b16 %v2721
        %v3068 = vunpack.c.l.b16 %v2722
        %v3069 = vunpack.c.h.b16 %v2722
        %v3070 = vunpack.c.l.b16 %v2723
        %v3071 = vunpack.c.h.b16 %v2723
        %v3072 = vunpack.c.l.b16 %v2724
        %v3073 = vunpack.c.h.b16 %v2724
        %v3074 = vunpack.c.l.b16 %v2725
        %v3075 = vunpack.c.h.b16 %v2725
        %v3076 = vunpack.c.l.b16 %v2726
        %v3077 = vunpack.c.h.b16 %v2726
        %v3078 = vunpack.c.l.b16 %v2727
        %v3079 = vunpack.c.h.b16 %v2727
        %v3080 = vunpack.c.l.b16 %v2728
        %v3081 = vunpack.c.h.b16 %v2728
        %v3082 = vunpack.c.l.b16 %v2729
        %v3083 = vunpack.c.h.b16 %v2729
        %v3084 = vunpack.c.l.b16 %v2730
        %v3085 = vunpack.c.h.b16 %v2730
        %v3086 = vunpack.c.l.b16 %v2731
        %v3087 = vunpack.c.h.b16 %v2731
        %v3088 = vunpack.c.l.b16 %v2732
        %v3089 = vunpack.c.h.b16 %v2732
        %v3090 = vunpack.c.l.b16 %v2733
        %v3091 = vunpack.c.h.b16 %v2733
        %v3092 = vunpack.c.l.b16 %v2734
        %v3093 = vunpack.c.h.b16 %v2734
        %v3094 = vunpack.c.l.b16 %v2735
        %v3095 = vunpack.c.h.b16 %v2735
        %v3096 = vunpack.c.l.b16 %v2736
        %v3097 = vunpack.c.h.b16 %v2736
        %v3098 = vunpack.c.l.b16 %v2737
        %v3099 = vunpack.c.h.b16 %v2737
        %v3100 = vunpack.c.l.b16 %v2738
        %v3101 = vunpack.c.h.b16 %v2738
        %v3102 = vunpack.c.l.b16 %v2739
        %v3103 = vunpack.c.h.b16 %v2739
        %v3104 = vunpack.c.l.b16 %v2740
        %v3105 = vunpack.c.h.b16 %v2740
        %v3106 = vunpack.c.l.b16 %v2741
        %v3107 = vunpack.c.h.b16 %v2741
        %v3108 = vunpack.c.l.b16 %v2742
        %v3109 = vunpack.c.h.b16 %v2742
        %v3110 = vunpack.c.l.b16 %v2743
        %v3111 = vunpack.c.h.b16 %v2743
        %v3112 = vunpack.c.l.b16 %v2744
        %v3113 = vunpack.c.h.b16 %v2744
        %v3114 = vunpack.c.l.b16 %v2745
        %v3115 = vunpack.c.h.b16 %v2745
        %v3116 = vunpack.c.l.b16 %v2746
        %v3117 = vunpack.c.h.b16 %v2746
        %v3118 = vunpack.c.l.b16 %v2747
        %v3119 = vunpack.c.h.b16 %v2747
        %v3120 = vunpack.c.l.b16 %v2748
        %v3121 = vunpack.c.h.b16 %v2748
        %v3122 = vunpack.c.l.b16 %v2749
        %v3123 = vunpack.c.h.b16 %v2749
        %v3124 = vunpack.c.l.b16 %v2750
        %v3125 = vunpack.c.h.b16 %v2750
        %v3126 = vunpack.c.l.b16 %v2751
        %v3127 = vunpack.c.h.b16 %v2751
        %v3128 = vunpack.c.l.b16 %v2752
        %v3129 = vunpack.c.h.b16 %v2752
        %v3130 = vunpack.c.l.b16 %v2753
        %v3131 = vunpack.c.h.b16 %v2753
        %v3132 = vunpack.c.l.b16 %v2754
        %v3133 = vunpack.c.h.b16 %v2754
        %v3134 = vunpack.c.l.b16 %v2755
        %v3135 = vunpack.c.h.b16 %v2755
        %v3136 = vunpack.c.l.b16 %v2756
        %v3137 = vunpack.c.h.b16 %v2756
        %v3138 = vunpack.c.l.b16 %v2757
        %v3139 = vunpack.c.h.b16 %v2757
        %v3140 = vunpack.c.l.b16 %v2758
        %v3141 = vunpack.c.h.b16 %v2758
        %v3142 = vunpack.c.l.b16 %v2759
        %v3143 = vunpack.c.h.b16 %v2759
        %v3144 = vpack.c.b16 %v2890, %v2888
        %v3145 = vpack.c.b16 %v2891, %v2889
        %v3146 = vpack.c.b16 %v2894, %v2892
        %v3147 = vpack.c.b16 %v2895, %v2893
        %v3148 = vpack.c.b16 %v2898, %v2896
        %v3149 = vpack.c.b16 %v2899, %v2897
        %v3150 = vpack.c.b16 %v2902, %v2900
        %v3151 = vpack.c.b16 %v2903, %v2901
        %v3152 = vpack.c.b16 %v2906, %v2904
        %v3153 = vpack.c.b16 %v2907, %v2905
        %v3154 = vpack.c.b16 %v2910, %v2908
        %v3155 = vpack.c.b16 %v2911, %v2909
        %v3156 = vpack.c.b16 %v2914, %v2912
        %v3157 = vpack.c.b16 %v2915, %v2913
        %v3158 = vpack.c.b16 %v2918, %v2916
        %v3159 = vpack.c.b16 %v2919, %v2917
        %v3160 = vpack.c.b16 %v2922, %v2920
        %v3161 = vpack.c.b16 %v2923, %v2921
        %v3162 = vpack.c.b16 %v2926, %v2924
        %v3163 = vpack.c.b16 %v2927, %v2925
        %v3164 = vpack.c.b16 %v2930, %v2928
        %v3165 = vpack.c.b16 %v2931, %v2929
        %v3166 = vpack.c.b16 %v2934, %v2932
        %v3167 = vpack.c.b16 %v2935, %v2933
        %v3168 = vpack.c.b16 %v2938, %v2936
        %v3169 = vpack.c.b16 %v2939, %v2937
        %v3170 = vpack.c.b16 %v2942, %v2940
        %v3171 = vpack.c.b16 %v2943, %v2941
        %v3172 = vpack.c.b16 %v2946, %v2944
        %v3173 = vpack.c.b16 %v2947, %v2945
        %v3174 = vpack.c.b16 %v2950, %v2948
        %v3175 = vpack.c.b16 %v2951, %v2949
        %v3176 = vpack.c.b16 %v2954, %v2952
        %v3177 = vpack.c.b16 %v2955, %v2953
        %v3178 = vpack.c.b16 %v2958, %v2956
        %v3179 = vpack.c.b16 %v2959, %v2957
        %v3180 = vpack.c.b16 %v2962, %v2960
        %v3181 = vpack.c.b16 %v2963, %v2961
        %v3182 = vpack.c.b16 %v2966, %v2964
        %v3183 = vpack.c.b16 %v2967, %v2965
        %v3184 = vpack.c.b16 %v2970, %v2968
        %v3185 = vpack.c.b16 %v2971, %v2969
        %v3186 = vpack.c.b16 %v2974, %v2972
        %v3187 = vpack.c.b16 %v2975, %v2973
        %v3188 = vpack.c.b16 %v2978, %v2976
        %v3189 = vpack.c.b16 %v2979, %v2977
        %v3190 = vpack.c.b16 %v2982, %v2980
        %v3191 = vpack.c.b16 %v2983, %v2981
        %v3192 = vpack.c.b16 %v2986, %v2984
        %v3193 = vpack.c.b16 %v2987, %v2985
        %v3194 = vpack.c.b16 %v2990, %v2988
        %v3195 = vpack.c.b16 %v2991, %v2989
        %v3196 = vpack.c.b16 %v2994, %v2992
        %v3197 = vpack.c.b16 %v2995, %v2993
        %v3198 = vpack.c.b16 %v2998, %v2996
        %v3199 = vpack.c.b16 %v2999, %v2997
        %v3200 = vpack.c.b16 %v3002, %v3000
        %v3201 = vpack.c.b16 %v3003, %v3001
        %v3202 = vpack.c.b16 %v3006, %v3004
        %v3203 = vpack.c.b16 %v3007, %v3005
        %v3204 = vpack.c.b16 %v3010, %v3008
        %v3205 = vpack.c.b16 %v3011, %v3009
        %v3206 = vpack.c.b16 %v3014, %v3012
        %v3207 = vpack.c.b16 %v3015, %v3013
        %v3208 = vpack.c.b16 %v3018, %v3016
        %v3209 = vpack.c.b16 %v3019, %v3017
        %v3210 = vpack.c.b16 %v3022, %v3020
        %v3211 = vpack.c.b16 %v3023, %v3021
        %v3212 = vpack.c.b16 %v3026, %v3024
        %v3213 = vpack.c.b16 %v3027, %v3025
        %v3214 = vpack.c.b16 %v3030, %v3028
        %v3215 = vpack.c.b16 %v3031, %v3029
        %v3216 = vpack.c.b16 %v3034, %v3032
        %v3217 = vpack.c.b16 %v3035, %v3033
        %v3218 = vpack.c.b16 %v3038, %v3036
        %v3219 = vpack.c.b16 %v3039, %v3037
        %v3220 = vpack.c.b16 %v3042, %v3040
        %v3221 = vpack.c.b16 %v3043, %v3041
        %v3222 = vpack.c.b16 %v3046, %v3044
        %v3223 = vpack.c.b16 %v3047, %v3045
        %v3224 = vpack.c.b16 %v3050, %v3048
        %v3225 = vpack.c.b16 %v3051, %v3049
        %v3226 = vpack.c.b16 %v3054, %v3052
        %v3227 = vpack.c.b16 %v3055, %v3053
        %v3228 = vpack.c.b16 %v3058, %v3056
        %v3229 = vpack.c.b16 %v3059, %v3057
        %v3230 = vpack.c.b16 %v3062, %v3060
        %v3231 = vpack.c.b16 %v3063, %v3061
        %v3232 = vpack.c.b16 %v3066, %v3064
        %v3233 = vpack.c.b16 %v3067, %v3065
        %v3234 = vpack.c.b16 %v3070, %v3068
        %v3235 = vpack.c.b16 %v3071, %v3069
        %v3236 = vpack.c.b16 %v3074, %v3072
        %v3237 = vpack.c.b16 %v3075, %v3073
        %v3238 = vpack.c.b16 %v3078, %v3076
        %v3239 = vpack.c.b16 %v3079, %v3077
        %v3240 = vpack.c.b16 %v3082, %v3080
        %v3241 = vpack.c.b16 %v3083, %v3081
        %v3242 = vpack.c.b16 %v3086, %v3084
        %v3243 = vpack.c.b16 %v3087, %v3085
        %v3244 = vpack.c.b16 %v3090, %v3088
        %v3245 = vpack.c.b16 %v3091, %v3089
        %v3246 = vpack.c.b16 %v3094, %v3092
        %v3247 = vpack.c.b16 %v3095, %v3093
        %v3248 = vpack.c.b16 %v3098, %v3096
        %v3249 = vpack.c.b16 %v3099, %v3097
        %v3250 = vpack.c.b16 %v3102, %v3100
        %v3251 = vpack.c.b16 %v3103, %v3101
        %v3252 = vpack.c.b16 %v3106, %v3104
        %v3253 = vpack.c.b16 %v3107, %v3105
        %v3254 = vpack.c.b16 %v3110, %v3108
        %v3255 = vpack.c.b16 %v3111, %v3109
        %v3256 = vpack.c.b16 %v3114, %v3112
        %v3257 = vpack.c.b16 %v3115, %v3113
        %v3258 = vpack.c.b16 %v3118, %v3116
        %v3259 = vpack.c.b16 %v3119, %v3117
        %v3260 = vpack.c.b16 %v3122, %v3120
        %v3261 = vpack.c.b16 %v3123, %v3121
        %v3262 = vpack.c.b16 %v3126, %v3124
        %v3263 = vpack.c.b16 %v3127, %v3125
        %v3264 = vpack.c.b16 %v3130, %v3128
        %v3265 = vpack.c.b16 %v3131, %v3129
        %v3266 = vpack.c.b16 %v3134, %v3132
        %v3267 = vpack.c.b16 %v3135, %v3133
        %v3268 = vpack.c.b16 %v3138, %v3136
        %v3269 = vpack.c.b16 %v3139, %v3137
        %v3270 = vpack.c.b16 %v3142, %v3140
        %v3271 = vpack.c.b16 %v3143, %v3141
        %3400 = vmatprep.subr.bf16.mxu0 %v3145
        %3401 = vmatpush1.bf16.msra.mxu0 %v3144
        %3402 = vmatprep.subr.bf16.mxu0 %v3147
        %3403 = vmatpush1.bf16.msra.mxu0 %v3146
        %3404 = vmatprep.subr.bf16.mxu0 %v3149
        %3405 = vmatpush1.bf16.msra.mxu0 %v3148
        %3406 = vmatprep.subr.bf16.mxu0 %v3151
        %3407 = vmatpush1.bf16.msra.mxu0 %v3150
        %3408 = vmatprep.subr.bf16.mxu0 %v3153
        %3409 = vmatpush1.bf16.msra.mxu0 %v3152
        %3410 = vmatprep.subr.bf16.mxu0 %v3155
        %3411 = vmatpush1.bf16.msra.mxu0 %v3154
        %3412 = vmatprep.subr.bf16.mxu0 %v3157
        %3413 = vmatpush1.bf16.msra.mxu0 %v3156
        %3414 = vmatprep.subr.bf16.mxu0 %v3159
        %3415 = vmatpush1.bf16.msra.mxu0 %v3158
        %3416 = vmatprep.subr.bf16.mxu0 %v3161
        %3417 = vmatpush1.bf16.msra.mxu0 %v3160
        %3418 = vmatprep.subr.bf16.mxu0 %v3163
        %3419 = vmatpush1.bf16.msra.mxu0 %v3162
        %3420 = vmatprep.subr.bf16.mxu0 %v3165
        %3421 = vmatpush1.bf16.msra.mxu0 %v3164
        %3422 = vmatprep.subr.bf16.mxu0 %v3167
        %3423 = vmatpush1.bf16.msra.mxu0 %v3166
        %3424 = vmatprep.subr.bf16.mxu0 %v3169
        %3425 = vmatpush1.bf16.msra.mxu0 %v3168
        %3426 = vmatprep.subr.bf16.mxu0 %v3171
        %3427 = vmatpush1.bf16.msra.mxu0 %v3170
        %3428 = vmatprep.subr.bf16.mxu0 %v3173
        %3429 = vmatpush1.bf16.msra.mxu0 %v3172
        %3430 = vmatprep.subr.bf16.mxu0 %v3175
        %3431 = vmatpush1.bf16.msra.mxu0 %v3174
        %3432 = vmatprep.mubr.bf16.mxu0 %v2505
        %3433 = vmatmul.mubr.bf16.gmra.mrb[0].mxu0 %v2504
        %v3434 = vpop.f32.mrb[0].mxu0
        %v3435 = vadd.f32 0.0, %v3434
        %v3436 = vpop.f32.mrb[0].mxu0
        %v3437 = vadd.f32 0.0, %v3436
        %v3438 = vpop.f32.mrb[0].mxu0
        %v3439 = vadd.f32 0.0, %v3438
        %v3440 = vpop.f32.mrb[0].mxu0
        %v3441 = vadd.f32 0.0, %v3440
        %3442 = vmatprep.mubr.bf16.mxu0 %v2513
        %3443 = vmatmul.mubr.bf16.gmra.mrb[0].mxu0 %v2512
        %v3444 = vpop.f32.mrb[0].mxu0
        %v3445 = vadd.f32 0.0, %v3444
        %v3446 = vpop.f32.mrb[0].mxu0
        %v3447 = vadd.f32 0.0, %v3446
        %v3448 = vpop.f32.mrb[0].mxu0
        %v3449 = vadd.f32 0.0, %v3448
        %v3450 = vpop.f32.mrb[0].mxu0
        %v3451 = vadd.f32 0.0, %v3450
        %3452 = vmatprep.mubr.bf16.mxu0 %v2521
        %3453 = vmatmul.mubr.bf16.gmra.mrb[0].mxu0 %v2520
        %v3454 = vpop.f32.mrb[0].mxu0
        %v3455 = vadd.f32 0.0, %v3454
        %v3456 = vpop.f32.mrb[0].mxu0
        %v3457 = vadd.f32 0.0, %v3456
        %v3458 = vpop.f32.mrb[0].mxu0
        %v3459 = vadd.f32 0.0, %v3458
        %v3460 = vpop.f32.mrb[0].mxu0
        %v3461 = vadd.f32 0.0, %v3460
        %3462 = vmatprep.mubr.bf16.mxu0 %v2529
        %3463 = vmatmul.mubr.bf16.gmra.mrb[0].mxu0 %v2528
        %v3464 = vpop.f32.mrb[0].mxu0
        %v3465 = vadd.f32 0.0, %v3464
        %v3466 = vpop.f32.mrb[0].mxu0
        %v3467 = vadd.f32 0.0, %v3466
        %v3468 = vpop.f32.mrb[0].mxu0
        %v3469 = vadd.f32 0.0, %v3468
        %v3470 = vpop.f32.mrb[0].mxu0
        %v3471 = vadd.f32 0.0, %v3470
        %3472 = vmatprep.mubr.bf16.mxu0 %v2537
        %3473 = vmatmul.mubr.bf16.gmra.mrb[0].mxu0 %v2536
        %v3474 = vpop.f32.mrb[0].mxu0
        %v3475 = vadd.f32 0.0, %v3474
        %v3476 = vpop.f32.mrb[0].mxu0
        %v3477 = vadd.f32 0.0, %v3476
        %v3478 = vpop.f32.mrb[0].mxu0
        %v3479 = vadd.f32 0.0, %v3478
        %v3480 = vpop.f32.mrb[0].mxu0
        %v3481 = vadd.f32 0.0, %v3480
        %3482 = vmatprep.mubr.bf16.mxu0 %v2545
        %3483 = vmatmul.mubr.bf16.gmra.mrb[0].mxu0 %v2544
        %v3484 = vpop.f32.mrb[0].mxu0
        %v3485 = vadd.f32 0.0, %v3484
        %v3486 = vpop.f32.mrb[0].mxu0
        %v3487 = vadd.f32 0.0, %v3486
        %v3488 = vpop.f32.mrb[0].mxu0
        %v3489 = vadd.f32 0.0, %v3488
        %v3490 = vpop.f32.mrb[0].mxu0
        %v3491 = vadd.f32 0.0, %v3490
        %3492 = vmatprep.mubr.bf16.mxu0 %v2553
        %3493 = vmatmul.mubr.bf16.gmra.mrb[0].mxu0 %v2552
        %v3494 = vpop.f32.mrb[0].mxu0
        %v3495 = vadd.f32 0.0, %v3494
        %v3496 = vpop.f32.mrb[0].mxu0
        %v3497 = vadd.f32 0.0, %v3496
        %v3498 = vpop.f32.mrb[0].mxu0
        %v3499 = vadd.f32 0.0, %v3498
        %v3500 = vpop.f32.mrb[0].mxu0
        %v3501 = vadd.f32 0.0, %v3500
        %3502 = vmatprep.mubr.bf16.mxu0 %v2561
        %3503 = vmatmul.mubr.bf16.gmra.mrb[0].mxu0 %v2560
        %v3504 = vpop.f32.mrb[0].mxu0
        %v3505 = vadd.f32 0.0, %v3504
        %v3506 = vpop.f32.mrb[0].mxu0
        %v3507 = vadd.f32 0.0, %v3506
        %v3508 = vpop.f32.mrb[0].mxu0
        %v3509 = vadd.f32 0.0, %v3508
        %v3510 = vpop.f32.mrb[0].mxu0
        %v3511 = vadd.f32 0.0, %v3510
        %3512 = vmatprep.mubr.bf16.mxu0 %v2569
        %3513 = vmatmul.mubr.bf16.gmra.mrb[0].mxu0 %v2568
        %v3514 = vpop.f32.mrb[0].mxu0
        %v3515 = vadd.f32 0.0, %v3514
        %v3516 = vpop.f32.mrb[0].mxu0
        %v3517 = vadd.f32 0.0, %v3516
        %v3518 = vpop.f32.mrb[0].mxu0
        %v3519 = vadd.f32 0.0, %v3518
        %v3520 = vpop.f32.mrb[0].mxu0
        %v3521 = vadd.f32 0.0, %v3520
        %3522 = vmatprep.mubr.bf16.mxu0 %v2577
        %3523 = vmatmul.mubr.bf16.gmra.mrb[0].mxu0 %v2576
        %v3524 = vpop.f32.mrb[0].mxu0
        %v3525 = vadd.f32 0.0, %v3524
        %v3526 = vpop.f32.mrb[0].mxu0
        %v3527 = vadd.f32 0.0, %v3526
        %v3528 = vpop.f32.mrb[0].mxu0
        %v3529 = vadd.f32 0.0, %v3528
        %v3530 = vpop.f32.mrb[0].mxu0
        %v3531 = vadd.f32 0.0, %v3530
        %3532 = vmatprep.mubr.bf16.mxu0 %v2585
        %3533 = vmatmul.mubr.bf16.gmra.mrb[0].mxu0 %v2584
        %v3534 = vpop.f32.mrb[0].mxu0
        %v3535 = vadd.f32 0.0, %v3534
        %v3536 = vpop.f32.mrb[0].mxu0
        %v3537 = vadd.f32 0.0, %v3536
        %v3538 = vpop.f32.mrb[0].mxu0
        %v3539 = vadd.f32 0.0, %v3538
        %v3540 = vpop.f32.mrb[0].mxu0
        %v3541 = vadd.f32 0.0, %v3540
        %3542 = vmatprep.mubr.bf16.mxu0 %v2593
        %3543 = vmatmul.mubr.bf16.gmra.mrb[0].mxu0 %v2592
        %v3544 = vpop.f32.mrb[0].mxu0
        %v3545 = vadd.f32 0.0, %v3544
        %v3546 = vpop.f32.mrb[0].mxu0
        %v3547 = vadd.f32 0.0, %v3546
        %v3548 = vpop.f32.mrb[0].mxu0
        %v3549 = vadd.f32 0.0, %v3548
        %v3550 = vpop.f32.mrb[0].mxu0
        %v3551 = vadd.f32 0.0, %v3550
        %3552 = vmatprep.mubr.bf16.mxu0 %v2601
        %3553 = vmatmul.mubr.bf16.gmra.mrb[0].mxu0 %v2600
        %v3554 = vpop.f32.mrb[0].mxu0
        %v3555 = vadd.f32 0.0, %v3554
        %v3556 = vpop.f32.mrb[0].mxu0
        %v3557 = vadd.f32 0.0, %v3556
        %v3558 = vpop.f32.mrb[0].mxu0
        %v3559 = vadd.f32 0.0, %v3558
        %v3560 = vpop.f32.mrb[0].mxu0
        %v3561 = vadd.f32 0.0, %v3560
        %3562 = vmatprep.mubr.bf16.mxu0 %v2609
        %3563 = vmatmul.mubr.bf16.gmra.mrb[0].mxu0 %v2608
        %v3564 = vpop.f32.mrb[0].mxu0
        %v3565 = vadd.f32 0.0, %v3564
        %v3566 = vpop.f32.mrb[0].mxu0
        %v3567 = vadd.f32 0.0, %v3566
        %v3568 = vpop.f32.mrb[0].mxu0
        %v3569 = vadd.f32 0.0, %v3568
        %v3570 = vpop.f32.mrb[0].mxu0
        %v3571 = vadd.f32 0.0, %v3570
        %3572 = vmatprep.mubr.bf16.mxu0 %v2617
        %3573 = vmatmul.mubr.bf16.gmra.mrb[0].mxu0 %v2616
        %v3574 = vpop.f32.mrb[0].mxu0
        %v3575 = vadd.f32 0.0, %v3574
        %v3576 = vpop.f32.mrb[0].mxu0
        %v3577 = vadd.f32 0.0, %v3576
        %v3578 = vpop.f32.mrb[0].mxu0
        %v3579 = vadd.f32 0.0, %v3578
        %v3580 = vpop.f32.mrb[0].mxu0
        %v3581 = vadd.f32 0.0, %v3580
        %3582 = vmatprep.mubr.bf16.mxu0 %v2625
        %3583 = vmatmul.mubr.bf16.gmra.mrb[0].mxu0 %v2624
        %v3584 = vpop.f32.mrb[0].mxu0
        %v3585 = vadd.f32 0.0, %v3584
        %v3586 = vpop.f32.mrb[0].mxu0
        %v3587 = vadd.f32 0.0, %v3586
        %v3588 = vpop.f32.mrb[0].mxu0
        %v3589 = vadd.f32 0.0, %v3588
        %v3590 = vpop.f32.mrb[0].mxu0
        %v3591 = vadd.f32 0.0, %v3590
        %3592 = vdwg.mxu0
        %3593 = vmatprep.subr.bf16.mxu0 %v3177
        %3594 = vmatpush1.bf16.msra.mxu0 %v3176
        %3595 = vmatprep.subr.bf16.mxu0 %v3179
        %3596 = vmatpush1.bf16.msra.mxu0 %v3178
        %3597 = vmatprep.subr.bf16.mxu0 %v3181
        %3598 = vmatpush1.bf16.msra.mxu0 %v3180
        %3599 = vmatprep.subr.bf16.mxu0 %v3183
        %3600 = vmatpush1.bf16.msra.mxu0 %v3182
        %3601 = vmatprep.subr.bf16.mxu0 %v3185
        %3602 = vmatpush1.bf16.msra.mxu0 %v3184
        %3603 = vmatprep.subr.bf16.mxu0 %v3187
        %3604 = vmatpush1.bf16.msra.mxu0 %v3186
        %3605 = vmatprep.subr.bf16.mxu0 %v3189
        %3606 = vmatpush1.bf16.msra.mxu0 %v3188
        %3607 = vmatprep.subr.bf16.mxu0 %v3191
        %3608 = vmatpush1.bf16.msra.mxu0 %v3190
        %3609 = vmatprep.subr.bf16.mxu0 %v3193
        %3610 = vmatpush1.bf16.msra.mxu0 %v3192
        %3611 = vmatprep.subr.bf16.mxu0 %v3195
        %3612 = vmatpush1.bf16.msra.mxu0 %v3194
        %3613 = vmatprep.subr.bf16.mxu0 %v3197
        %3614 = vmatpush1.bf16.msra.mxu0 %v3196
        %3615 = vmatprep.subr.bf16.mxu0 %v3199
        %3616 = vmatpush1.bf16.msra.mxu0 %v3198
        %3617 = vmatprep.subr.bf16.mxu0 %v3201
        %3618 = vmatpush1.bf16.msra.mxu0 %v3200
        %3619 = vmatprep.subr.bf16.mxu0 %v3203
        %3620 = vmatpush1.bf16.msra.mxu0 %v3202
        %3621 = vmatprep.subr.bf16.mxu0 %v3205
        %3622 = vmatpush1.bf16.msra.mxu0 %v3204
        %3623 = vmatprep.subr.bf16.mxu0 %v3207
        %3624 = vmatpush1.bf16.msra.mxu0 %v3206
        %3625 = vmatprep.mubr.bf16.mxu0 %v2507
        %3626 = vmatmul.mubr.bf16.gmra.mrb[0].mxu0 %v2506
        %v3627 = vpop.f32.mrb[0].mxu0
        %v3628 = vadd.f32 %v3435, %v3627
        %v3629 = vpop.f32.mrb[0].mxu0
        %v3630 = vadd.f32 %v3437, %v3629
        %v3631 = vpop.f32.mrb[0].mxu0
        %v3632 = vadd.f32 %v3439, %v3631
        %v3633 = vpop.f32.mrb[0].mxu0
        %v3634 = vadd.f32 %v3441, %v3633
        %3635 = vmatprep.mubr.bf16.mxu0 %v2515
        %3636 = vmatmul.mubr.bf16.gmra.mrb[0].mxu0 %v2514
        %v3637 = vpop.f32.mrb[0].mxu0
        %v3638 = vadd.f32 %v3445, %v3637
        %v3639 = vpop.f32.mrb[0].mxu0
        %v3640 = vadd.f32 %v3447, %v3639
        %v3641 = vpop.f32.mrb[0].mxu0
        %v3642 = vadd.f32 %v3449, %v3641
        %v3643 = vpop.f32.mrb[0].mxu0
        %v3644 = vadd.f32 %v3451, %v3643
        %3645 = vmatprep.mubr.bf16.mxu0 %v2523
        %3646 = vmatmul.mubr.bf16.gmra.mrb[0].mxu0 %v2522
        %v3647 = vpop.f32.mrb[0].mxu0
        %v3648 = vadd.f32 %v3455, %v3647
        %v3649 = vpop.f32.mrb[0].mxu0
        %v3650 = vadd.f32 %v3457, %v3649
        %v3651 = vpop.f32.mrb[0].mxu0
        %v3652 = vadd.f32 %v3459, %v3651
        %v3653 = vpop.f32.mrb[0].mxu0
        %v3654 = vadd.f32 %v3461, %v3653
        %3655 = vmatprep.mubr.bf16.mxu0 %v2531
        %3656 = vmatmul.mubr.bf16.gmra.mrb[0].mxu0 %v2530
        %v3657 = vpop.f32.mrb[0].mxu0
        %v3658 = vadd.f32 %v3465, %v3657
        %v3659 = vpop.f32.mrb[0].mxu0
        %v3660 = vadd.f32 %v3467, %v3659
        %v3661 = vpop.f32.mrb[0].mxu0
        %v3662 = vadd.f32 %v3469, %v3661
        %v3663 = vpop.f32.mrb[0].mxu0
        %v3664 = vadd.f32 %v3471, %v3663
        %3665 = vmatprep.mubr.bf16.mxu0 %v2539
        %3666 = vmatmul.mubr.bf16.gmra.mrb[0].mxu0 %v2538
        %v3667 = vpop.f32.mrb[0].mxu0
        %v3668 = vadd.f32 %v3475, %v3667
        %v3669 = vpop.f32.mrb[0].mxu0
        %v3670 = vadd.f32 %v3477, %v3669
        %v3671 = vpop.f32.mrb[0].mxu0
        %v3672 = vadd.f32 %v3479, %v3671
        %v3673 = vpop.f32.mrb[0].mxu0
        %v3674 = vadd.f32 %v3481, %v3673
        %3675 = vmatprep.mubr.bf16.mxu0 %v2547
        %3676 = vmatmul.mubr.bf16.gmra.mrb[0].mxu0 %v2546
        %v3677 = vpop.f32.mrb[0].mxu0
        %v3678 = vadd.f32 %v3485, %v3677
        %v3679 = vpop.f32.mrb[0].mxu0
        %v3680 = vadd.f32 %v3487, %v3679
        %v3681 = vpop.f32.mrb[0].mxu0
        %v3682 = vadd.f32 %v3489, %v3681
        %v3683 = vpop.f32.mrb[0].mxu0
        %v3684 = vadd.f32 %v3491, %v3683
        %3685 = vmatprep.mubr.bf16.mxu0 %v2555
        %3686 = vmatmul.mubr.bf16.gmra.mrb[0].mxu0 %v2554
        %v3687 = vpop.f32.mrb[0].mxu0
        %v3688 = vadd.f32 %v3495, %v3687
        %v3689 = vpop.f32.mrb[0].mxu0
        %v3690 = vadd.f32 %v3497, %v3689
        %v3691 = vpop.f32.mrb[0].mxu0
        %v3692 = vadd.f32 %v3499, %v3691
        %v3693 = vpop.f32.mrb[0].mxu0
        %v3694 = vadd.f32 %v3501, %v3693
        %3695 = vmatprep.mubr.bf16.mxu0 %v2563
        %3696 = vmatmul.mubr.bf16.gmra.mrb[0].mxu0 %v2562
        %v3697 = vpop.f32.mrb[0].mxu0
        %v3698 = vadd.f32 %v3505, %v3697
        %v3699 = vpop.f32.mrb[0].mxu0
        %v3700 = vadd.f32 %v3507, %v3699
        %v3701 = vpop.f32.mrb[0].mxu0
        %v3702 = vadd.f32 %v3509, %v3701
        %v3703 = vpop.f32.mrb[0].mxu0
        %v3704 = vadd.f32 %v3511, %v3703
        %3705 = vmatprep.mubr.bf16.mxu0 %v2571
        %3706 = vmatmul.mubr.bf16.gmra.mrb[0].mxu0 %v2570
        %v3707 = vpop.f32.mrb[0].mxu0
        %v3708 = vadd.f32 %v3515, %v3707
        %v3709 = vpop.f32.mrb[0].mxu0
        %v3710 = vadd.f32 %v3517, %v3709
        %v3711 = vpop.f32.mrb[0].mxu0
        %v3712 = vadd.f32 %v3519, %v3711
        %v3713 = vpop.f32.mrb[0].mxu0
        %v3714 = vadd.f32 %v3521, %v3713
        %3715 = vmatprep.mubr.bf16.mxu0 %v2579
        %3716 = vmatmul.mubr.bf16.gmra.mrb[0].mxu0 %v2578
        %v3717 = vpop.f32.mrb[0].mxu0
        %v3718 = vadd.f32 %v3525, %v3717
        %v3719 = vpop.f32.mrb[0].mxu0
        %v3720 = vadd.f32 %v3527, %v3719
        %v3721 = vpop.f32.mrb[0].mxu0
        %v3722 = vadd.f32 %v3529, %v3721
        %v3723 = vpop.f32.mrb[0].mxu0
        %v3724 = vadd.f32 %v3531, %v3723
        %3725 = vmatprep.mubr.bf16.mxu0 %v2587
        %3726 = vmatmul.mubr.bf16.gmra.mrb[0].mxu0 %v2586
        %v3727 = vpop.f32.mrb[0].mxu0
        %v3728 = vadd.f32 %v3535, %v3727
        %v3729 = vpop.f32.mrb[0].mxu0
        %v3730 = vadd.f32 %v3537, %v3729
        %v3731 = vpop.f32.mrb[0].mxu0
        %v3732 = vadd.f32 %v3539, %v3731
        %v3733 = vpop.f32.mrb[0].mxu0
        %v3734 = vadd.f32 %v3541, %v3733
        %3735 = vmatprep.mubr.bf16.mxu0 %v2595
        %3736 = vmatmul.mubr.bf16.gmra.mrb[0].mxu0 %v2594
        %v3737 = vpop.f32.mrb[0].mxu0
        %v3738 = vadd.f32 %v3545, %v3737
        %v3739 = vpop.f32.mrb[0].mxu0
        %v3740 = vadd.f32 %v3547, %v3739
        %v3741 = vpop.f32.mrb[0].mxu0
        %v3742 = vadd.f32 %v3549, %v3741
        %v3743 = vpop.f32.mrb[0].mxu0
        %v3744 = vadd.f32 %v3551, %v3743
        %3745 = vmatprep.mubr.bf16.mxu0 %v2603
        %3746 = vmatmul.mubr.bf16.gmra.mrb[0].mxu0 %v2602
        %v3747 = vpop.f32.mrb[0].mxu0
        %v3748 = vadd.f32 %v3555, %v3747
        %v3749 = vpop.f32.mrb[0].mxu0
        %v3750 = vadd.f32 %v3557, %v3749
        %v3751 = vpop.f32.mrb[0].mxu0
        %v3752 = vadd.f32 %v3559, %v3751
        %v3753 = vpop.f32.mrb[0].mxu0
        %v3754 = vadd.f32 %v3561, %v3753
        %3755 = vmatprep.mubr.bf16.mxu0 %v2611
        %3756 = vmatmul.mubr.bf16.gmra.mrb[0].mxu0 %v2610
        %v3757 = vpop.f32.mrb[0].mxu0
        %v3758 = vadd.f32 %v3565, %v3757
        %v3759 = vpop.f32.mrb[0].mxu0
        %v3760 = vadd.f32 %v3567, %v3759
        %v3761 = vpop.f32.mrb[0].mxu0
        %v3762 = vadd.f32 %v3569, %v3761
        %v3763 = vpop.f32.mrb[0].mxu0
        %v3764 = vadd.f32 %v3571, %v3763
        %3765 = vmatprep.mubr.bf16.mxu0 %v2619
        %3766 = vmatmul.mubr.bf16.gmra.mrb[0].mxu0 %v2618
        %v3767 = vpop.f32.mrb[0].mxu0
        %v3768 = vadd.f32 %v3575, %v3767
        %v3769 = vpop.f32.mrb[0].mxu0
        %v3770 = vadd.f32 %v3577, %v3769
        %v3771 = vpop.f32.mrb[0].mxu0
        %v3772 = vadd.f32 %v3579, %v3771
        %v3773 = vpop.f32.mrb[0].mxu0
        %v3774 = vadd.f32 %v3581, %v3773
        %3775 = vmatprep.mubr.bf16.mxu0 %v2627
        %3776 = vmatmul.mubr.bf16.gmra.mrb[0].mxu0 %v2626
        %v3777 = vpop.f32.mrb[0].mxu0
        %v3778 = vadd.f32 %v3585, %v3777
        %v3779 = vpop.f32.mrb[0].mxu0
        %v3780 = vadd.f32 %v3587, %v3779
        %v3781 = vpop.f32.mrb[0].mxu0
        %v3782 = vadd.f32 %v3589, %v3781
        %v3783 = vpop.f32.mrb[0].mxu0
        %v3784 = vadd.f32 %v3591, %v3783
        %3785 = vdwg.mxu0
        %3786 = vmatprep.subr.bf16.mxu0 %v3209
        %3787 = vmatpush1.bf16.msra.mxu0 %v3208
        %3788 = vmatprep.subr.bf16.mxu0 %v3211
        %3789 = vmatpush1.bf16.msra.mxu0 %v3210
        %3790 = vmatprep.subr.bf16.mxu0 %v3213
        %3791 = vmatpush1.bf16.msra.mxu0 %v3212
        %3792 = vmatprep.subr.bf16.mxu0 %v3215
        %3793 = vmatpush1.bf16.msra.mxu0 %v3214
        %3794 = vmatprep.subr.bf16.mxu0 %v3217
        %3795 = vmatpush1.bf16.msra.mxu0 %v3216
        %3796 = vmatprep.subr.bf16.mxu0 %v3219
        %3797 = vmatpush1.bf16.msra.mxu0 %v3218
        %3798 = vmatprep.subr.bf16.mxu0 %v3221
        %3799 = vmatpush1.bf16.msra.mxu0 %v3220
        %3800 = vmatprep.subr.bf16.mxu0 %v3223
        %3801 = vmatpush1.bf16.msra.mxu0 %v3222
        %3802 = vmatprep.subr.bf16.mxu0 %v3225
        %3803 = vmatpush1.bf16.msra.mxu0 %v3224
        %3804 = vmatprep.subr.bf16.mxu0 %v3227
        %3805 = vmatpush1.bf16.msra.mxu0 %v3226
        %3806 = vmatprep.subr.bf16.mxu0 %v3229
        %3807 = vmatpush1.bf16.msra.mxu0 %v3228
        %3808 = vmatprep.subr.bf16.mxu0 %v3231
        %3809 = vmatpush1.bf16.msra.mxu0 %v3230
        %3810 = vmatprep.subr.bf16.mxu0 %v3233
        %3811 = vmatpush1.bf16.msra.mxu0 %v3232
        %3812 = vmatprep.subr.bf16.mxu0 %v3235
        %3813 = vmatpush1.bf16.msra.mxu0 %v3234
        %3814 = vmatprep.subr.bf16.mxu0 %v3237
        %3815 = vmatpush1.bf16.msra.mxu0 %v3236
        %3816 = vmatprep.subr.bf16.mxu0 %v3239
        %3817 = vmatpush1.bf16.msra.mxu0 %v3238
        %3818 = vmatprep.mubr.bf16.mxu0 %v2509
        %3819 = vmatmul.mubr.bf16.gmra.mrb[0].mxu0 %v2508
        %v3820 = vpop.f32.mrb[0].mxu0
        %v3821 = vadd.f32 %v3628, %v3820
        %v3822 = vpop.f32.mrb[0].mxu0
        %v3823 = vadd.f32 %v3630, %v3822
        %v3824 = vpop.f32.mrb[0].mxu0
        %v3825 = vadd.f32 %v3632, %v3824
        %v3826 = vpop.f32.mrb[0].mxu0
        %v3827 = vadd.f32 %v3634, %v3826
        %3828 = vmatprep.mubr.bf16.mxu0 %v2517
        %3829 = vmatmul.mubr.bf16.gmra.mrb[0].mxu0 %v2516
        %v3830 = vpop.f32.mrb[0].mxu0
        %v3831 = vadd.f32 %v3638, %v3830
        %v3832 = vpop.f32.mrb[0].mxu0
        %v3833 = vadd.f32 %v3640, %v3832
        %v3834 = vpop.f32.mrb[0].mxu0
        %v3835 = vadd.f32 %v3642, %v3834
        %v3836 = vpop.f32.mrb[0].mxu0
        %v3837 = vadd.f32 %v3644, %v3836
        %3838 = vmatprep.mubr.bf16.mxu0 %v2525
        %3839 = vmatmul.mubr.bf16.gmra.mrb[0].mxu0 %v2524
        %v3840 = vpop.f32.mrb[0].mxu0
        %v3841 = vadd.f32 %v3648, %v3840
        %v3842 = vpop.f32.mrb[0].mxu0
        %v3843 = vadd.f32 %v3650, %v3842
        %v3844 = vpop.f32.mrb[0].mxu0
        %v3845 = vadd.f32 %v3652, %v3844
        %v3846 = vpop.f32.mrb[0].mxu0
        %v3847 = vadd.f32 %v3654, %v3846
        %3848 = vmatprep.mubr.bf16.mxu0 %v2533
        %3849 = vmatmul.mubr.bf16.gmra.mrb[0].mxu0 %v2532
        %v3850 = vpop.f32.mrb[0].mxu0
        %v3851 = vadd.f32 %v3658, %v3850
        %v3852 = vpop.f32.mrb[0].mxu0
        %v3853 = vadd.f32 %v3660, %v3852
        %v3854 = vpop.f32.mrb[0].mxu0
        %v3855 = vadd.f32 %v3662, %v3854
        %v3856 = vpop.f32.mrb[0].mxu0
        %v3857 = vadd.f32 %v3664, %v3856
        %3858 = vmatprep.mubr.bf16.mxu0 %v2541
        %3859 = vmatmul.mubr.bf16.gmra.mrb[0].mxu0 %v2540
        %v3860 = vpop.f32.mrb[0].mxu0
        %v3861 = vadd.f32 %v3668, %v3860
        %v3862 = vpop.f32.mrb[0].mxu0
        %v3863 = vadd.f32 %v3670, %v3862
        %v3864 = vpop.f32.mrb[0].mxu0
        %v3865 = vadd.f32 %v3672, %v3864
        %v3866 = vpop.f32.mrb[0].mxu0
        %v3867 = vadd.f32 %v3674, %v3866
        %3868 = vmatprep.mubr.bf16.mxu0 %v2549
        %3869 = vmatmul.mubr.bf16.gmra.mrb[0].mxu0 %v2548
        %v3870 = vpop.f32.mrb[0].mxu0
        %v3871 = vadd.f32 %v3678, %v3870
        %v3872 = vpop.f32.mrb[0].mxu0
        %v3873 = vadd.f32 %v3680, %v3872
        %v3874 = vpop.f32.mrb[0].mxu0
        %v3875 = vadd.f32 %v3682, %v3874
        %v3876 = vpop.f32.mrb[0].mxu0
        %v3877 = vadd.f32 %v3684, %v3876
        %3878 = vmatprep.mubr.bf16.mxu0 %v2557
        %3879 = vmatmul.mubr.bf16.gmra.mrb[0].mxu0 %v2556
        %v3880 = vpop.f32.mrb[0].mxu0
        %v3881 = vadd.f32 %v3688, %v3880
        %v3882 = vpop.f32.mrb[0].mxu0
        %v3883 = vadd.f32 %v3690, %v3882
        %v3884 = vpop.f32.mrb[0].mxu0
        %v3885 = vadd.f32 %v3692, %v3884
        %v3886 = vpop.f32.mrb[0].mxu0
        %v3887 = vadd.f32 %v3694, %v3886
        %3888 = vmatprep.mubr.bf16.mxu0 %v2565
        %3889 = vmatmul.mubr.bf16.gmra.mrb[0].mxu0 %v2564
        %v3890 = vpop.f32.mrb[0].mxu0
        %v3891 = vadd.f32 %v3698, %v3890
        %v3892 = vpop.f32.mrb[0].mxu0
        %v3893 = vadd.f32 %v3700, %v3892
        %v3894 = vpop.f32.mrb[0].mxu0
        %v3895 = vadd.f32 %v3702, %v3894
        %v3896 = vpop.f32.mrb[0].mxu0
        %v3897 = vadd.f32 %v3704, %v3896
        %3898 = vmatprep.mubr.bf16.mxu0 %v2573
        %3899 = vmatmul.mubr.bf16.gmra.mrb[0].mxu0 %v2572
        %v3900 = vpop.f32.mrb[0].mxu0
        %v3901 = vadd.f32 %v3708, %v3900
        %v3902 = vpop.f32.mrb[0].mxu0
        %v3903 = vadd.f32 %v3710, %v3902
        %v3904 = vpop.f32.mrb[0].mxu0
        %v3905 = vadd.f32 %v3712, %v3904
        %v3906 = vpop.f32.mrb[0].mxu0
        %v3907 = vadd.f32 %v3714, %v3906
        %3908 = vmatprep.mubr.bf16.mxu0 %v2581
        %3909 = vmatmul.mubr.bf16.gmra.mrb[0].mxu0 %v2580
        %v3910 = vpop.f32.mrb[0].mxu0
        %v3911 = vadd.f32 %v3718, %v3910
        %v3912 = vpop.f32.mrb[0].mxu0
        %v3913 = vadd.f32 %v3720, %v3912
        %v3914 = vpop.f32.mrb[0].mxu0
        %v3915 = vadd.f32 %v3722, %v3914
        %v3916 = vpop.f32.mrb[0].mxu0
        %v3917 = vadd.f32 %v3724, %v3916
        %3918 = vmatprep.mubr.bf16.mxu0 %v2589
        %3919 = vmatmul.mubr.bf16.gmra.mrb[0].mxu0 %v2588
        %v3920 = vpop.f32.mrb[0].mxu0
        %v3921 = vadd.f32 %v3728, %v3920
        %v3922 = vpop.f32.mrb[0].mxu0
        %v3923 = vadd.f32 %v3730, %v3922
        %v3924 = vpop.f32.mrb[0].mxu0
        %v3925 = vadd.f32 %v3732, %v3924
        %v3926 = vpop.f32.mrb[0].mxu0
        %v3927 = vadd.f32 %v3734, %v3926
        %3928 = vmatprep.mubr.bf16.mxu0 %v2597
        %3929 = vmatmul.mubr.bf16.gmra.mrb[0].mxu0 %v2596
        %v3930 = vpop.f32.mrb[0].mxu0
        %v3931 = vadd.f32 %v3738, %v3930
        %v3932 = vpop.f32.mrb[0].mxu0
        %v3933 = vadd.f32 %v3740, %v3932
        %v3934 = vpop.f32.mrb[0].mxu0
        %v3935 = vadd.f32 %v3742, %v3934
        %v3936 = vpop.f32.mrb[0].mxu0
        %v3937 = vadd.f32 %v3744, %v3936
        %3938 = vmatprep.mubr.bf16.mxu0 %v2605
        %3939 = vmatmul.mubr.bf16.gmra.mrb[0].mxu0 %v2604
        %v3940 = vpop.f32.mrb[0].mxu0
        %v3941 = vadd.f32 %v3748, %v3940
        %v3942 = vpop.f32.mrb[0].mxu0
        %v3943 = vadd.f32 %v3750, %v3942
        %v3944 = vpop.f32.mrb[0].mxu0
        %v3945 = vadd.f32 %v3752, %v3944
        %v3946 = vpop.f32.mrb[0].mxu0
        %v3947 = vadd.f32 %v3754, %v3946
        %3948 = vmatprep.mubr.bf16.mxu0 %v2613
        %3949 = vmatmul.mubr.bf16.gmra.mrb[0].mxu0 %v2612
        %v3950 = vpop.f32.mrb[0].mxu0
        %v3951 = vadd.f32 %v3758, %v3950
        %v3952 = vpop.f32.mrb[0].mxu0
        %v3953 = vadd.f32 %v3760, %v3952
        %v3954 = vpop.f32.mrb[0].mxu0
        %v3955 = vadd.f32 %v3762, %v3954
        %v3956 = vpop.f32.mrb[0].mxu0
        %v3957 = vadd.f32 %v3764, %v3956
        %3958 = vmatprep.mubr.bf16.mxu0 %v2621
        %3959 = vmatmul.mubr.bf16.gmra.mrb[0].mxu0 %v2620
        %v3960 = vpop.f32.mrb[0].mxu0
        %v3961 = vadd.f32 %v3768, %v3960
        %v3962 = vpop.f32.mrb[0].mxu0
        %v3963 = vadd.f32 %v3770, %v3962
        %v3964 = vpop.f32.mrb[0].mxu0
        %v3965 = vadd.f32 %v3772, %v3964
        %v3966 = vpop.f32.mrb[0].mxu0
        %v3967 = vadd.f32 %v3774, %v3966
        %3968 = vmatprep.mubr.bf16.mxu0 %v2629
        %3969 = vmatmul.mubr.bf16.gmra.mrb[0].mxu0 %v2628
        %v3970 = vpop.f32.mrb[0].mxu0
        %v3971 = vadd.f32 %v3778, %v3970
        %v3972 = vpop.f32.mrb[0].mxu0
        %v3973 = vadd.f32 %v3780, %v3972
        %v3974 = vpop.f32.mrb[0].mxu0
        %v3975 = vadd.f32 %v3782, %v3974
        %v3976 = vpop.f32.mrb[0].mxu0
        %v3977 = vadd.f32 %v3784, %v3976
        %3978 = vdwg.mxu0
        %3979 = vmatprep.subr.bf16.mxu0 %v3241
        %3980 = vmatpush1.bf16.msra.mxu0 %v3240
        %3981 = vmatprep.subr.bf16.mxu0 %v3243
        %3982 = vmatpush1.bf16.msra.mxu0 %v3242
        %3983 = vmatprep.subr.bf16.mxu0 %v3245
        %3984 = vmatpush1.bf16.msra.mxu0 %v3244
        %3985 = vmatprep.subr.bf16.mxu0 %v3247
        %3986 = vmatpush1.bf16.msra.mxu0 %v3246
        %3987 = vmatprep.subr.bf16.mxu0 %v3249
        %3988 = vmatpush1.bf16.msra.mxu0 %v3248
        %3989 = vmatprep.subr.bf16.mxu0 %v3251
        %3990 = vmatpush1.bf16.msra.mxu0 %v3250
        %3991 = vmatprep.subr.bf16.mxu0 %v3253
        %3992 = vmatpush1.bf16.msra.mxu0 %v3252
        %3993 = vmatprep.subr.bf16.mxu0 %v3255
        %3994 = vmatpush1.bf16.msra.mxu0 %v3254
        %3995 = vmatprep.subr.bf16.mxu0 %v3257
        %3996 = vmatpush1.bf16.msra.mxu0 %v3256
        %3997 = vmatprep.subr.bf16.mxu0 %v3259
        %3998 = vmatpush1.bf16.msra.mxu0 %v3258
        %3999 = vmatprep.subr.bf16.mxu0 %v3261
        %4000 = vmatpush1.bf16.msra.mxu0 %v3260
        %4001 = vmatprep.subr.bf16.mxu0 %v3263
        %4002 = vmatpush1.bf16.msra.mxu0 %v3262
        %4003 = vmatprep.subr.bf16.mxu0 %v3265
        %4004 = vmatpush1.bf16.msra.mxu0 %v3264
        %4005 = vmatprep.subr.bf16.mxu0 %v3267
        %4006 = vmatpush1.bf16.msra.mxu0 %v3266
        %4007 = vmatprep.subr.bf16.mxu0 %v3269
        %4008 = vmatpush1.bf16.msra.mxu0 %v3268
        %4009 = vmatprep.subr.bf16.mxu0 %v3271
        %4010 = vmatpush1.bf16.msra.mxu0 %v3270
        %4011 = vmatprep.mubr.bf16.mxu0 %v2511
        %4012 = vmatmul.mubr.bf16.gmra.mrb[0].mxu0 %v2510
        %v4013 = vpop.f32.mrb[0].mxu0
        %v4014 = vadd.f32 %v3821, %v4013
        %v4015 = vpop.f32.mrb[0].mxu0
        %v4016 = vadd.f32 %v3823, %v4015
        %v4017 = vpop.f32.mrb[0].mxu0
        %v4018 = vadd.f32 %v3825, %v4017
        %v4019 = vpop.f32.mrb[0].mxu0
        %v4020 = vadd.f32 %v3827, %v4019
        %4021 = vmatprep.mubr.bf16.mxu0 %v2519
        %4022 = vmatmul.mubr.bf16.gmra.mrb[0].mxu0 %v2518
        %v4023 = vpop.f32.mrb[0].mxu0
        %v4024 = vadd.f32 %v3831, %v4023
        %v4025 = vpop.f32.mrb[0].mxu0
        %v4026 = vadd.f32 %v3833, %v4025
        %v4027 = vpop.f32.mrb[0].mxu0
        %v4028 = vadd.f32 %v3835, %v4027
        %v4029 = vpop.f32.mrb[0].mxu0
        %v4030 = vadd.f32 %v3837, %v4029
        %4031 = vmatprep.mubr.bf16.mxu0 %v2527
        %4032 = vmatmul.mubr.bf16.gmra.mrb[0].mxu0 %v2526
        %v4033 = vpop.f32.mrb[0].mxu0
        %v4034 = vadd.f32 %v3841, %v4033
        %v4035 = vpop.f32.mrb[0].mxu0
        %v4036 = vadd.f32 %v3843, %v4035
        %v4037 = vpop.f32.mrb[0].mxu0
        %v4038 = vadd.f32 %v3845, %v4037
        %v4039 = vpop.f32.mrb[0].mxu0
        %v4040 = vadd.f32 %v3847, %v4039
        %4041 = vmatprep.mubr.bf16.mxu0 %v2535
        %4042 = vmatmul.mubr.bf16.gmra.mrb[0].mxu0 %v2534
        %v4043 = vpop.f32.mrb[0].mxu0
        %v4044 = vadd.f32 %v3851, %v4043
        %v4045 = vpop.f32.mrb[0].mxu0
        %v4046 = vadd.f32 %v3853, %v4045
        %v4047 = vpop.f32.mrb[0].mxu0
        %v4048 = vadd.f32 %v3855, %v4047
        %v4049 = vpop.f32.mrb[0].mxu0
        %v4050 = vadd.f32 %v3857, %v4049
        %4051 = vmatprep.mubr.bf16.mxu0 %v2543
        %4052 = vmatmul.mubr.bf16.gmra.mrb[0].mxu0 %v2542
        %v4053 = vpop.f32.mrb[0].mxu0
        %v4054 = vadd.f32 %v3861, %v4053
        %v4055 = vpop.f32.mrb[0].mxu0
        %v4056 = vadd.f32 %v3863, %v4055
        %v4057 = vpop.f32.mrb[0].mxu0
        %v4058 = vadd.f32 %v3865, %v4057
        %v4059 = vpop.f32.mrb[0].mxu0
        %v4060 = vadd.f32 %v3867, %v4059
        %4061 = vmatprep.mubr.bf16.mxu0 %v2551
        %4062 = vmatmul.mubr.bf16.gmra.mrb[0].mxu0 %v2550
        %v4063 = vpop.f32.mrb[0].mxu0
        %v4064 = vadd.f32 %v3871, %v4063
        %v4065 = vpop.f32.mrb[0].mxu0
        %v4066 = vadd.f32 %v3873, %v4065
        %v4067 = vpop.f32.mrb[0].mxu0
        %v4068 = vadd.f32 %v3875, %v4067
        %v4069 = vpop.f32.mrb[0].mxu0
        %v4070 = vadd.f32 %v3877, %v4069
        %4071 = vmatprep.mubr.bf16.mxu0 %v2559
        %4072 = vmatmul.mubr.bf16.gmra.mrb[0].mxu0 %v2558
        %v4073 = vpop.f32.mrb[0].mxu0
        %v4074 = vadd.f32 %v3881, %v4073
        %v4075 = vpop.f32.mrb[0].mxu0
        %v4076 = vadd.f32 %v3883, %v4075
        %v4077 = vpop.f32.mrb[0].mxu0
        %v4078 = vadd.f32 %v3885, %v4077
        %v4079 = vpop.f32.mrb[0].mxu0
        %v4080 = vadd.f32 %v3887, %v4079
        %4081 = vmatprep.mubr.bf16.mxu0 %v2567
        %4082 = vmatmul.mubr.bf16.gmra.mrb[0].mxu0 %v2566
        %v4083 = vpop.f32.mrb[0].mxu0
        %v4084 = vadd.f32 %v3891, %v4083
        %v4085 = vpop.f32.mrb[0].mxu0
        %v4086 = vadd.f32 %v3893, %v4085
        %v4087 = vpop.f32.mrb[0].mxu0
        %v4088 = vadd.f32 %v3895, %v4087
        %v4089 = vpop.f32.mrb[0].mxu0
        %v4090 = vadd.f32 %v3897, %v4089
        %4091 = vmatprep.mubr.bf16.mxu0 %v2575
        %4092 = vmatmul.mubr.bf16.gmra.mrb[0].mxu0 %v2574
        %v4093 = vpop.f32.mrb[0].mxu0
        %v4094 = vadd.f32 %v3901, %v4093
        %v4095 = vpop.f32.mrb[0].mxu0
        %v4096 = vadd.f32 %v3903, %v4095
        %v4097 = vpop.f32.mrb[0].mxu0
        %v4098 = vadd.f32 %v3905, %v4097
        %v4099 = vpop.f32.mrb[0].mxu0
        %v4100 = vadd.f32 %v3907, %v4099
        %4101 = vmatprep.mubr.bf16.mxu0 %v2583
        %4102 = vmatmul.mubr.bf16.gmra.mrb[0].mxu0 %v2582
        %v4103 = vpop.f32.mrb[0].mxu0
        %v4104 = vadd.f32 %v3911, %v4103
        %v4105 = vpop.f32.mrb[0].mxu0
        %v4106 = vadd.f32 %v3913, %v4105
        %v4107 = vpop.f32.mrb[0].mxu0
        %v4108 = vadd.f32 %v3915, %v4107
        %v4109 = vpop.f32.mrb[0].mxu0
        %v4110 = vadd.f32 %v3917, %v4109
        %4111 = vmatprep.mubr.bf16.mxu0 %v2591
        %4112 = vmatmul.mubr.bf16.gmra.mrb[0].mxu0 %v2590
        %v4113 = vpop.f32.mrb[0].mxu0
        %v4114 = vadd.f32 %v3921, %v4113
        %v4115 = vpop.f32.mrb[0].mxu0
        %v4116 = vadd.f32 %v3923, %v4115
        %v4117 = vpop.f32.mrb[0].mxu0
        %v4118 = vadd.f32 %v3925, %v4117
        %v4119 = vpop.f32.mrb[0].mxu0
        %v4120 = vadd.f32 %v3927, %v4119
        %4121 = vmatprep.mubr.bf16.mxu0 %v2599
        %4122 = vmatmul.mubr.bf16.gmra.mrb[0].mxu0 %v2598
        %v4123 = vpop.f32.mrb[0].mxu0
        %v4124 = vadd.f32 %v3931, %v4123
        %v4125 = vpop.f32.mrb[0].mxu0
        %v4126 = vadd.f32 %v3933, %v4125
        %v4127 = vpop.f32.mrb[0].mxu0
        %v4128 = vadd.f32 %v3935, %v4127
        %v4129 = vpop.f32.mrb[0].mxu0
        %v4130 = vadd.f32 %v3937, %v4129
        %4131 = vmatprep.mubr.bf16.mxu0 %v2607
        %4132 = vmatmul.mubr.bf16.gmra.mrb[0].mxu0 %v2606
        %v4133 = vpop.f32.mrb[0].mxu0
        %v4134 = vadd.f32 %v3941, %v4133
        %v4135 = vpop.f32.mrb[0].mxu0
        %v4136 = vadd.f32 %v3943, %v4135
        %v4137 = vpop.f32.mrb[0].mxu0
        %v4138 = vadd.f32 %v3945, %v4137
        %v4139 = vpop.f32.mrb[0].mxu0
        %v4140 = vadd.f32 %v3947, %v4139
        %4141 = vmatprep.mubr.bf16.mxu0 %v2615
        %4142 = vmatmul.mubr.bf16.gmra.mrb[0].mxu0 %v2614
        %v4143 = vpop.f32.mrb[0].mxu0
        %v4144 = vadd.f32 %v3951, %v4143
        %v4145 = vpop.f32.mrb[0].mxu0
        %v4146 = vadd.f32 %v3953, %v4145
        %v4147 = vpop.f32.mrb[0].mxu0
        %v4148 = vadd.f32 %v3955, %v4147
        %v4149 = vpop.f32.mrb[0].mxu0
        %v4150 = vadd.f32 %v3957, %v4149
        %4151 = vmatprep.mubr.bf16.mxu0 %v2623
        %4152 = vmatmul.mubr.bf16.gmra.mrb[0].mxu0 %v2622
        %v4153 = vpop.f32.mrb[0].mxu0
        %v4154 = vadd.f32 %v3961, %v4153
        %v4155 = vpop.f32.mrb[0].mxu0
        %v4156 = vadd.f32 %v3963, %v4155
        %v4157 = vpop.f32.mrb[0].mxu0
        %v4158 = vadd.f32 %v3965, %v4157
        %v4159 = vpop.f32.mrb[0].mxu0
        %v4160 = vadd.f32 %v3967, %v4159
        %4161 = vmatprep.mubr.bf16.mxu0 %v2631
        %4162 = vmatmul.mubr.bf16.gmra.mrb[0].mxu0 %v2630
        %v4163 = vpop.f32.mrb[0].mxu0
        %v4164 = vadd.f32 %v3971, %v4163
        %v4165 = vpop.f32.mrb[0].mxu0
        %v4166 = vadd.f32 %v3973, %v4165
        %v4167 = vpop.f32.mrb[0].mxu0
        %v4168 = vadd.f32 %v3975, %v4167
        %v4169 = vpop.f32.mrb[0].mxu0
        %v4170 = vadd.f32 %v3977, %v4169
        %4171 = vdwg.mxu0
        %v4172 = vadd.f32 %v2440, %v4014
        %v4173 = vadd.f32 %v2441, %v4016
        %v4174 = vadd.f32 %v2442, %v4018
        %v4175 = vadd.f32 %v2443, %v4020
        %v4176 = vadd.f32 %v2444, %v4024
        %v4177 = vadd.f32 %v2445, %v4026
        %v4178 = vadd.f32 %v2446, %v4028
        %v4179 = vadd.f32 %v2447, %v4030
        %v4180 = vadd.f32 %v2448, %v4034
        %v4181 = vadd.f32 %v2449, %v4036
        %v4182 = vadd.f32 %v2450, %v4038
        %v4183 = vadd.f32 %v2451, %v4040
        %v4184 = vadd.f32 %v2452, %v4044
        %v4185 = vadd.f32 %v2453, %v4046
        %v4186 = vadd.f32 %v2454, %v4048
        %v4187 = vadd.f32 %v2455, %v4050
        %v4188 = vadd.f32 %v2456, %v4054
        %v4189 = vadd.f32 %v2457, %v4056
        %v4190 = vadd.f32 %v2458, %v4058
        %v4191 = vadd.f32 %v2459, %v4060
        %v4192 = vadd.f32 %v2460, %v4064
        %v4193 = vadd.f32 %v2461, %v4066
        %v4194 = vadd.f32 %v2462, %v4068
        %v4195 = vadd.f32 %v2463, %v4070
        %v4196 = vadd.f32 %v2464, %v4074
        %v4197 = vadd.f32 %v2465, %v4076
        %v4198 = vadd.f32 %v2466, %v4078
        %v4199 = vadd.f32 %v2467, %v4080
        %v4200 = vadd.f32 %v2468, %v4084
        %v4201 = vadd.f32 %v2469, %v4086
        %v4202 = vadd.f32 %v2470, %v4088
        %v4203 = vadd.f32 %v2471, %v4090
        %v4204 = vadd.f32 %v2472, %v4094
        %v4205 = vadd.f32 %v2473, %v4096
        %v4206 = vadd.f32 %v2474, %v4098
        %v4207 = vadd.f32 %v2475, %v4100
        %v4208 = vadd.f32 %v2476, %v4104
        %v4209 = vadd.f32 %v2477, %v4106
        %v4210 = vadd.f32 %v2478, %v4108
        %v4211 = vadd.f32 %v2479, %v4110
        %v4212 = vadd.f32 %v2480, %v4114
        %v4213 = vadd.f32 %v2481, %v4116
        %v4214 = vadd.f32 %v2482, %v4118
        %v4215 = vadd.f32 %v2483, %v4120
        %v4216 = vadd.f32 %v2484, %v4124
        %v4217 = vadd.f32 %v2485, %v4126
        %v4218 = vadd.f32 %v2486, %v4128
        %v4219 = vadd.f32 %v2487, %v4130
        %v4220 = vadd.f32 %v2488, %v4134
        %v4221 = vadd.f32 %v2489, %v4136
        %v4222 = vadd.f32 %v2490, %v4138
        %v4223 = vadd.f32 %v2491, %v4140
        %v4224 = vadd.f32 %v2492, %v4144
        %v4225 = vadd.f32 %v2493, %v4146
        %v4226 = vadd.f32 %v2494, %v4148
        %v4227 = vadd.f32 %v2495, %v4150
        %v4228 = vadd.f32 %v2496, %v4154
        %v4229 = vadd.f32 %v2497, %v4156
        %v4230 = vadd.f32 %v2498, %v4158
        %v4231 = vadd.f32 %v2499, %v4160
        %v4232 = vadd.f32 %v2500, %v4164
        %v4233 = vadd.f32 %v2501, %v4166
        %v4234 = vadd.f32 %v2502, %v4168
        %v4235 = vadd.f32 %v2503, %v4170
        %4236 = vst [vmem:[#allocation2] sm:$0xff] %v4172
        %4237 = vst [vmem:[#allocation2 + $0x8] sm:$0xff] %v4173
        %4238 = vst [vmem:[#allocation2 + $0x10] sm:$0xff] %v4174
        %4239 = vst [vmem:[#allocation2 + $0x18] sm:$0xff] %v4175
        %4240 = vst [vmem:[#allocation2 + $0x20] sm:$0xff] %v4176
        %4241 = vst [vmem:[#allocation2 + $0x28] sm:$0xff] %v4177
        %4242 = vst [vmem:[#allocation2 + $0x30] sm:$0xff] %v4178
        %4243 = vst [vmem:[#allocation2 + $0x38] sm:$0xff] %v4179
        %4244 = vst [vmem:[#allocation2 + $0x40] sm:$0xff] %v4180
        %4245 = vst [vmem:[#allocation2 + $0x48] sm:$0xff] %v4181
        %4246 = vst [vmem:[#allocation2 + $0x50] sm:$0xff] %v4182
        %4247 = vst [vmem:[#allocation2 + $0x58] sm:$0xff] %v4183
        %4248 = vst [vmem:[#allocation2 + $0x60] sm:$0xff] %v4184
        %4249 = vst [vmem:[#allocation2 + $0x68] sm:$0xff] %v4185
        %4250 = vst [vmem:[#allocation2 + $0x70] sm:$0xff] %v4186
        %4251 = vst [vmem:[#allocation2 + $0x78] sm:$0xff] %v4187
        %4252 = vst [vmem:[#allocation2 + $0x80] sm:$0xff] %v4188
        %4253 = vst [vmem:[#allocation2 + $0x88] sm:$0xff] %v4189
        %4254 = vst [vmem:[#allocation2 + $0x90] sm:$0xff] %v4190
        %4255 = vst [vmem:[#allocation2 + $0x98] sm:$0xff] %v4191
        %4256 = vst [vmem:[#allocation2 + $0xa0] sm:$0xff] %v4192
        %4257 = vst [vmem:[#allocation2 + $0xa8] sm:$0xff] %v4193
        %4258 = vst [vmem:[#allocation2 + $0xb0] sm:$0xff] %v4194
        %4259 = vst [vmem:[#allocation2 + $0xb8] sm:$0xff] %v4195
        %4260 = vst [vmem:[#allocation2 + $0xc0] sm:$0xff] %v4196
        %4261 = vst [vmem:[#allocation2 + $0xc8] sm:$0xff] %v4197
        %4262 = vst [vmem:[#allocation2 + $0xd0] sm:$0xff] %v4198
        %4263 = vst [vmem:[#allocation2 + $0xd8] sm:$0xff] %v4199
        %4264 = vst [vmem:[#allocation2 + $0xe0] sm:$0xff] %v4200
        %4265 = vst [vmem:[#allocation2 + $0xe8] sm:$0xff] %v4201
        %4266 = vst [vmem:[#allocation2 + $0xf0] sm:$0xff] %v4202
        %4267 = vst [vmem:[#allocation2 + $0xf8] sm:$0xff] %v4203
        %4268 = vst [vmem:[#allocation2 + $0x100] sm:$0xff] %v4204
        %4269 = vst [vmem:[#allocation2 + $0x108] sm:$0xff] %v4205
        %4270 = vst [vmem:[#allocation2 + $0x110] sm:$0xff] %v4206
        %4271 = vst [vmem:[#allocation2 + $0x118] sm:$0xff] %v4207
        %4272 = vst [vmem:[#allocation2 + $0x120] sm:$0xff] %v4208
        %4273 = vst [vmem:[#allocation2 + $0x128] sm:$0xff] %v4209
        %4274 = vst [vmem:[#allocation2 + $0x130] sm:$0xff] %v4210
        %4275 = vst [vmem:[#allocation2 + $0x138] sm:$0xff] %v4211
        %4276 = vst [vmem:[#allocation2 + $0x140] sm:$0xff] %v4212
        %4277 = vst [vmem:[#allocation2 + $0x148] sm:$0xff] %v4213
        %4278 = vst [vmem:[#allocation2 + $0x150] sm:$0xff] %v4214
        %4279 = vst [vmem:[#allocation2 + $0x158] sm:$0xff] %v4215
        %4280 = vst [vmem:[#allocation2 + $0x160] sm:$0xff] %v4216
        %4281 = vst [vmem:[#allocation2 + $0x168] sm:$0xff] %v4217
        %4282 = vst [vmem:[#allocation2 + $0x170] sm:$0xff] %v4218
        %4283 = vst [vmem:[#allocation2 + $0x178] sm:$0xff] %v4219
        %4284 = vst [vmem:[#allocation2 + $0x180] sm:$0xff] %v4220
        %4285 = vst [vmem:[#allocation2 + $0x188] sm:$0xff] %v4221
        %4286 = vst [vmem:[#allocation2 + $0x190] sm:$0xff] %v4222
        %4287 = vst [vmem:[#allocation2 + $0x198] sm:$0xff] %v4223
        %4288 = vst [vmem:[#allocation2 + $0x1a0] sm:$0xff] %v4224
        %4289 = vst [vmem:[#allocation2 + $0x1a8] sm:$0xff] %v4225
        %4290 = vst [vmem:[#allocation2 + $0x1b0] sm:$0xff] %v4226
        %4291 = vst [vmem:[#allocation2 + $0x1b8] sm:$0xff] %v4227
        %4292 = vst [vmem:[#allocation2 + $0x1c0] sm:$0xff] %v4228
        %4293 = vst [vmem:[#allocation2 + $0x1c8] sm:$0xff] %v4229
        %4294 = vst [vmem:[#allocation2 + $0x1d0] sm:$0xff] %v4230
        %4295 = vst [vmem:[#allocation2 + $0x1d8] sm:$0xff] %v4231
        %4296 = vst [vmem:[#allocation2 + $0x1e0] sm:$0xff] %v4232
        %4297 = vst [vmem:[#allocation2 + $0x1e8] sm:$0xff] %v4233
        %4298 = vst [vmem:[#allocation2 + $0x1f0] sm:$0xff] %v4234
        %4299 = vst [vmem:[#allocation2 + $0x1f8] sm:$0xff] %v4235
        // Predicated region
        $region57: #{feed_forward.1} parent=39 // pred_check
          %p4300 = pneg %p342
        $region58: #{feed_forward.1} parent=39 // pred_check_branch
          %4302 = sbr.rel (%p4300) target = $region60
        $region59: #{feed_forward.1} parent=39 // pred_region
          %v4303 = vld [vmem:[#allocation2] sm:$0xff]
          %v4304 = vld [vmem:[#allocation2 + $0x8] sm:$0xff]
          %v4305 = vld [vmem:[#allocation2 + $0x10] sm:$0xff]
          %v4306 = vld [vmem:[#allocation2 + $0x18] sm:$0xff]
          %v4307 = vld [vmem:[#allocation2 + $0x20] sm:$0xff]
          %v4308 = vld [vmem:[#allocation2 + $0x28] sm:$0xff]
          %v4309 = vld [vmem:[#allocation2 + $0x30] sm:$0xff]
          %v4310 = vld [vmem:[#allocation2 + $0x38] sm:$0xff]
          %v4311 = vld [vmem:[#allocation2 + $0x40] sm:$0xff]
          %v4312 = vld [vmem:[#allocation2 + $0x48] sm:$0xff]
          %v4313 = vld [vmem:[#allocation2 + $0x50] sm:$0xff]
          %v4314 = vld [vmem:[#allocation2 + $0x58] sm:$0xff]
          %v4315 = vld [vmem:[#allocation2 + $0x60] sm:$0xff]
          %v4316 = vld [vmem:[#allocation2 + $0x68] sm:$0xff]
          %v4317 = vld [vmem:[#allocation2 + $0x70] sm:$0xff]
          %v4318 = vld [vmem:[#allocation2 + $0x78] sm:$0xff]
          %v4319 = vld [vmem:[#allocation2 + $0x80] sm:$0xff]
          %v4320 = vld [vmem:[#allocation2 + $0x88] sm:$0xff]
          %v4321 = vld [vmem:[#allocation2 + $0x90] sm:$0xff]
          %v4322 = vld [vmem:[#allocation2 + $0x98] sm:$0xff]
          %v4323 = vld [vmem:[#allocation2 + $0xa0] sm:$0xff]
          %v4324 = vld [vmem:[#allocation2 + $0xa8] sm:$0xff]
          %v4325 = vld [vmem:[#allocation2 + $0xb0] sm:$0xff]
          %v4326 = vld [vmem:[#allocation2 + $0xb8] sm:$0xff]
          %v4327 = vld [vmem:[#allocation2 + $0xc0] sm:$0xff]
          %v4328 = vld [vmem:[#allocation2 + $0xc8] sm:$0xff]
          %v4329 = vld [vmem:[#allocation2 + $0xd0] sm:$0xff]
          %v4330 = vld [vmem:[#allocation2 + $0xd8] sm:$0xff]
          %v4331 = vld [vmem:[#allocation2 + $0xe0] sm:$0xff]
          %v4332 = vld [vmem:[#allocation2 + $0xe8] sm:$0xff]
          %v4333 = vld [vmem:[#allocation2 + $0xf0] sm:$0xff]
          %v4334 = vld [vmem:[#allocation2 + $0xf8] sm:$0xff]
          %v4335 = vld [vmem:[#allocation2 + $0x100] sm:$0xff]
          %v4336 = vld [vmem:[#allocation2 + $0x108] sm:$0xff]
          %v4337 = vld [vmem:[#allocation2 + $0x110] sm:$0xff]
          %v4338 = vld [vmem:[#allocation2 + $0x118] sm:$0xff]
          %v4339 = vld [vmem:[#allocation2 + $0x120] sm:$0xff]
          %v4340 = vld [vmem:[#allocation2 + $0x128] sm:$0xff]
          %v4341 = vld [vmem:[#allocation2 + $0x130] sm:$0xff]
          %v4342 = vld [vmem:[#allocation2 + $0x138] sm:$0xff]
          %v4343 = vld [vmem:[#allocation2 + $0x140] sm:$0xff]
          %v4344 = vld [vmem:[#allocation2 + $0x148] sm:$0xff]
          %v4345 = vld [vmem:[#allocation2 + $0x150] sm:$0xff]
          %v4346 = vld [vmem:[#allocation2 + $0x158] sm:$0xff]
          %v4347 = vld [vmem:[#allocation2 + $0x160] sm:$0xff]
          %v4348 = vld [vmem:[#allocation2 + $0x168] sm:$0xff]
          %v4349 = vld [vmem:[#allocation2 + $0x170] sm:$0xff]
          %v4350 = vld [vmem:[#allocation2 + $0x178] sm:$0xff]
          %v4351 = vld [vmem:[#allocation2 + $0x180] sm:$0xff]
          %v4352 = vld [vmem:[#allocation2 + $0x188] sm:$0xff]
          %v4353 = vld [vmem:[#allocation2 + $0x190] sm:$0xff]
          %v4354 = vld [vmem:[#allocation2 + $0x198] sm:$0xff]
          %v4355 = vld [vmem:[#allocation2 + $0x1a0] sm:$0xff]
          %v4356 = vld [vmem:[#allocation2 + $0x1a8] sm:$0xff]
          %v4357 = vld [vmem:[#allocation2 + $0x1b0] sm:$0xff]
          %v4358 = vld [vmem:[#allocation2 + $0x1b8] sm:$0xff]
          %v4359 = vld [vmem:[#allocation2 + $0x1c0] sm:$0xff]
          %v4360 = vld [vmem:[#allocation2 + $0x1c8] sm:$0xff]
          %v4361 = vld [vmem:[#allocation2 + $0x1d0] sm:$0xff]
          %v4362 = vld [vmem:[#allocation2 + $0x1d8] sm:$0xff]
          %v4363 = vld [vmem:[#allocation2 + $0x1e0] sm:$0xff]
          %v4364 = vld [vmem:[#allocation2 + $0x1e8] sm:$0xff]
          %v4365 = vld [vmem:[#allocation2 + $0x1f0] sm:$0xff]
          %v4366 = vld [vmem:[#allocation2 + $0x1f8] sm:$0xff]
          %v4367 = vld [vmem:[%s4] sm:$0x3]
          %v4369 = vlaneseq
          %v4370 = vshrl.u32 %v4369, 7
          %v4371 = vsub.s32 0, %v4370
          %v4372 = vrot.slane %v4367, %v4371
          %v4373 = vlaneseq
          %v4374 = vshrl.u32 %v4373, 7
          %v4375 = vsub.s32 1, %v4374
          %v4376 = vrot.slane %v4367, %v4375
          %v4379 = vadd.f32 %v4303, %v4372
          %v4380 = vadd.f32 %v4304, %v4376
          %v4381 = vadd.f32 %v4305, %v4372
          %v4382 = vadd.f32 %v4306, %v4376
          %v4383 = vadd.f32 %v4307, %v4372
          %v4384 = vadd.f32 %v4308, %v4376
          %v4385 = vadd.f32 %v4309, %v4372
          %v4386 = vadd.f32 %v4310, %v4376
          %v4387 = vadd.f32 %v4311, %v4372
          %v4388 = vadd.f32 %v4312, %v4376
          %v4389 = vadd.f32 %v4313, %v4372
          %v4390 = vadd.f32 %v4314, %v4376
          %v4391 = vadd.f32 %v4315, %v4372
          %v4392 = vadd.f32 %v4316, %v4376
          %v4393 = vadd.f32 %v4317, %v4372
          %v4394 = vadd.f32 %v4318, %v4376
          %v4395 = vadd.f32 %v4319, %v4372
          %v4396 = vadd.f32 %v4320, %v4376
          %v4397 = vadd.f32 %v4321, %v4372
          %v4398 = vadd.f32 %v4322, %v4376
          %v4399 = vadd.f32 %v4323, %v4372
          %v4400 = vadd.f32 %v4324, %v4376
          %v4401 = vadd.f32 %v4325, %v4372
          %v4402 = vadd.f32 %v4326, %v4376
          %v4403 = vadd.f32 %v4327, %v4372
          %v4404 = vadd.f32 %v4328, %v4376
          %v4405 = vadd.f32 %v4329, %v4372
          %v4406 = vadd.f32 %v4330, %v4376
          %v4407 = vadd.f32 %v4331, %v4372
          %v4408 = vadd.f32 %v4332, %v4376
          %v4409 = vadd.f32 %v4333, %v4372
          %v4410 = vadd.f32 %v4334, %v4376
          %v4411 = vadd.f32 %v4335, %v4372
          %v4412 = vadd.f32 %v4336, %v4376
          %v4413 = vadd.f32 %v4337, %v4372
          %v4414 = vadd.f32 %v4338, %v4376
          %v4415 = vadd.f32 %v4339, %v4372
          %v4416 = vadd.f32 %v4340, %v4376
          %v4417 = vadd.f32 %v4341, %v4372
          %v4418 = vadd.f32 %v4342, %v4376
          %v4419 = vadd.f32 %v4343, %v4372
          %v4420 = vadd.f32 %v4344, %v4376
          %v4421 = vadd.f32 %v4345, %v4372
          %v4422 = vadd.f32 %v4346, %v4376
          %v4423 = vadd.f32 %v4347, %v4372
          %v4424 = vadd.f32 %v4348, %v4376
          %v4425 = vadd.f32 %v4349, %v4372
          %v4426 = vadd.f32 %v4350, %v4376
          %v4427 = vadd.f32 %v4351, %v4372
          %v4428 = vadd.f32 %v4352, %v4376
          %v4429 = vadd.f32 %v4353, %v4372
          %v4430 = vadd.f32 %v4354, %v4376
          %v4431 = vadd.f32 %v4355, %v4372
          %v4432 = vadd.f32 %v4356, %v4376
          %v4433 = vadd.f32 %v4357, %v4372
          %v4434 = vadd.f32 %v4358, %v4376
          %v4435 = vadd.f32 %v4359, %v4372
          %v4436 = vadd.f32 %v4360, %v4376
          %v4437 = vadd.f32 %v4361, %v4372
          %v4438 = vadd.f32 %v4362, %v4376
          %v4439 = vadd.f32 %v4363, %v4372
          %v4440 = vadd.f32 %v4364, %v4376
          %v4441 = vadd.f32 %v4365, %v4372
          %v4442 = vadd.f32 %v4366, %v4376
          %v4443 = vpack.c.bf16 %v4381, %v4379
          %v4444 = vpack.c.bf16 %v4382, %v4380
          %v4445 = vpack.c.bf16 %v4385, %v4383
          %v4446 = vpack.c.bf16 %v4386, %v4384
          %v4447 = vpack.c.bf16 %v4389, %v4387
          %v4448 = vpack.c.bf16 %v4390, %v4388
          %v4449 = vpack.c.bf16 %v4393, %v4391
          %v4450 = vpack.c.bf16 %v4394, %v4392
          %v4451 = vpack.c.bf16 %v4397, %v4395
          %v4452 = vpack.c.bf16 %v4398, %v4396
          %v4453 = vpack.c.bf16 %v4401, %v4399
          %v4454 = vpack.c.bf16 %v4402, %v4400
          %v4455 = vpack.c.bf16 %v4405, %v4403
          %v4456 = vpack.c.bf16 %v4406, %v4404
          %v4457 = vpack.c.bf16 %v4409, %v4407
          %v4458 = vpack.c.bf16 %v4410, %v4408
          %v4459 = vpack.c.bf16 %v4413, %v4411
          %v4460 = vpack.c.bf16 %v4414, %v4412
          %v4461 = vpack.c.bf16 %v4417, %v4415
          %v4462 = vpack.c.bf16 %v4418, %v4416
          %v4463 = vpack.c.bf16 %v4421, %v4419
          %v4464 = vpack.c.bf16 %v4422, %v4420
          %v4465 = vpack.c.bf16 %v4425, %v4423
          %v4466 = vpack.c.bf16 %v4426, %v4424
          %v4467 = vpack.c.bf16 %v4429, %v4427
          %v4468 = vpack.c.bf16 %v4430, %v4428
          %v4469 = vpack.c.bf16 %v4433, %v4431
          %v4470 = vpack.c.bf16 %v4434, %v4432
          %v4471 = vpack.c.bf16 %v4437, %v4435
          %v4472 = vpack.c.bf16 %v4438, %v4436
          %v4473 = vpack.c.bf16 %v4441, %v4439
          %v4474 = vpack.c.bf16 %v4442, %v4440
          %v4507 = vunpack.c.l.b16 %v4443
          %v4508 = vunpack.c.l.b16 %v4444
          %v4509 = vunpack.c.h.b16 %v4443
          %v4510 = vunpack.c.h.b16 %v4444
          %v4511 = vunpack.c.l.b16 %v4445
          %v4512 = vunpack.c.l.b16 %v4446
          %v4513 = vunpack.c.h.b16 %v4445
          %v4514 = vunpack.c.h.b16 %v4446
          %v4515 = vunpack.c.l.b16 %v4447
          %v4516 = vunpack.c.l.b16 %v4448
          %v4517 = vunpack.c.h.b16 %v4447
          %v4518 = vunpack.c.h.b16 %v4448
          %v4519 = vunpack.c.l.b16 %v4449
          %v4520 = vunpack.c.l.b16 %v4450
          %v4521 = vunpack.c.h.b16 %v4449
          %v4522 = vunpack.c.h.b16 %v4450
          %v4523 = vunpack.c.l.b16 %v4451
          %v4524 = vunpack.c.l.b16 %v4452
          %v4525 = vunpack.c.h.b16 %v4451
          %v4526 = vunpack.c.h.b16 %v4452
          %v4527 = vunpack.c.l.b16 %v4453
          %v4528 = vunpack.c.l.b16 %v4454
          %v4529 = vunpack.c.h.b16 %v4453
          %v4530 = vunpack.c.h.b16 %v4454
          %v4531 = vunpack.c.l.b16 %v4455
          %v4532 = vunpack.c.l.b16 %v4456
          %v4533 = vunpack.c.h.b16 %v4455
          %v4534 = vunpack.c.h.b16 %v4456
          %v4535 = vunpack.c.l.b16 %v4457
          %v4536 = vunpack.c.l.b16 %v4458
          %v4537 = vunpack.c.h.b16 %v4457
          %v4538 = vunpack.c.h.b16 %v4458
          %v4539 = vunpack.c.l.b16 %v4459
          %v4540 = vunpack.c.l.b16 %v4460
          %v4541 = vunpack.c.h.b16 %v4459
          %v4542 = vunpack.c.h.b16 %v4460
          %v4543 = vunpack.c.l.b16 %v4461
          %v4544 = vunpack.c.l.b16 %v4462
          %v4545 = vunpack.c.h.b16 %v4461
          %v4546 = vunpack.c.h.b16 %v4462
          %v4547 = vunpack.c.l.b16 %v4463
          %v4548 = vunpack.c.l.b16 %v4464
          %v4549 = vunpack.c.h.b16 %v4463
          %v4550 = vunpack.c.h.b16 %v4464
          %v4551 = vunpack.c.l.b16 %v4465
          %v4552 = vunpack.c.l.b16 %v4466
          %v4553 = vunpack.c.h.b16 %v4465
          %v4554 = vunpack.c.h.b16 %v4466
          %v4555 = vunpack.c.l.b16 %v4467
          %v4556 = vunpack.c.l.b16 %v4468
          %v4557 = vunpack.c.h.b16 %v4467
          %v4558 = vunpack.c.h.b16 %v4468
          %v4559 = vunpack.c.l.b16 %v4469
          %v4560 = vunpack.c.l.b16 %v4470
          %v4561 = vunpack.c.h.b16 %v4469
          %v4562 = vunpack.c.h.b16 %v4470
          %v4563 = vunpack.c.l.b16 %v4471
          %v4564 = vunpack.c.l.b16 %v4472
          %v4565 = vunpack.c.h.b16 %v4471
          %v4566 = vunpack.c.h.b16 %v4472
          %v4567 = vunpack.c.l.b16 %v4473
          %v4568 = vunpack.c.l.b16 %v4474
          %v4569 = vunpack.c.h.b16 %v4473
          %v4570 = vunpack.c.h.b16 %v4474
          %v4571 = vpack.c.b16 %v4508, %v4507
          %v4572 = vpack.c.b16 %v4510, %v4509
          %v4573 = vpack.c.b16 %v4512, %v4511
          %v4574 = vpack.c.b16 %v4514, %v4513
          %v4575 = vpack.c.b16 %v4516, %v4515
          %v4576 = vpack.c.b16 %v4518, %v4517
          %v4577 = vpack.c.b16 %v4520, %v4519
          %v4578 = vpack.c.b16 %v4522, %v4521
          %v4579 = vpack.c.b16 %v4524, %v4523
          %v4580 = vpack.c.b16 %v4526, %v4525
          %v4581 = vpack.c.b16 %v4528, %v4527
          %v4582 = vpack.c.b16 %v4530, %v4529
          %v4583 = vpack.c.b16 %v4532, %v4531
          %v4584 = vpack.c.b16 %v4534, %v4533
          %v4585 = vpack.c.b16 %v4536, %v4535
          %v4586 = vpack.c.b16 %v4538, %v4537
          %v4587 = vpack.c.b16 %v4540, %v4539
          %v4588 = vpack.c.b16 %v4542, %v4541
          %v4589 = vpack.c.b16 %v4544, %v4543
          %v4590 = vpack.c.b16 %v4546, %v4545
          %v4591 = vpack.c.b16 %v4548, %v4547
          %v4592 = vpack.c.b16 %v4550, %v4549
          %v4593 = vpack.c.b16 %v4552, %v4551
          %v4594 = vpack.c.b16 %v4554, %v4553
          %v4595 = vpack.c.b16 %v4556, %v4555
          %v4596 = vpack.c.b16 %v4558, %v4557
          %v4597 = vpack.c.b16 %v4560, %v4559
          %v4598 = vpack.c.b16 %v4562, %v4561
          %v4599 = vpack.c.b16 %v4564, %v4563
          %v4600 = vpack.c.b16 %v4566, %v4565
          %v4601 = vpack.c.b16 %v4568, %v4567
          %v4602 = vpack.c.b16 %v4570, %v4569
          %4635 = vst [vmem:[%s322] sm:$0xff] %v4571
          %4636 = vst [vmem:[%s322 + $0x8] sm:$0xff] %v4572
          %4637 = vst [vmem:[%s322 + $0x10] sm:$0xff] %v4573
          %4638 = vst [vmem:[%s322 + $0x18] sm:$0xff] %v4574
          %4639 = vst [vmem:[%s322 + $0x20] sm:$0xff] %v4575
          %4640 = vst [vmem:[%s322 + $0x28] sm:$0xff] %v4576
          %4641 = vst [vmem:[%s322 + $0x30] sm:$0xff] %v4577
          %4642 = vst [vmem:[%s322 + $0x38] sm:$0xff] %v4578
          %4643 = vst [vmem:[%s322 + $0x40] sm:$0xff] %v4579
          %4644 = vst [vmem:[%s322 + $0x48] sm:$0xff] %v4580
          %4645 = vst [vmem:[%s322 + $0x50] sm:$0xff] %v4581
          %4646 = vst [vmem:[%s322 + $0x58] sm:$0xff] %v4582
          %4647 = vst [vmem:[%s322 + $0x60] sm:$0xff] %v4583
          %4648 = vst [vmem:[%s322 + $0x68] sm:$0xff] %v4584
          %4649 = vst [vmem:[%s322 + $0x70] sm:$0xff] %v4585
          %4650 = vst [vmem:[%s322 + $0x78] sm:$0xff] %v4586
          %4651 = vst [vmem:[%s322 + $0x80] sm:$0xff] %v4587
          %4652 = vst [vmem:[%s322 + $0x88] sm:$0xff] %v4588
          %4653 = vst [vmem:[%s322 + $0x90] sm:$0xff] %v4589
          %4654 = vst [vmem:[%s322 + $0x98] sm:$0xff] %v4590
          %4655 = vst [vmem:[%s322 + $0xa0] sm:$0xff] %v4591
          %4656 = vst [vmem:[%s322 + $0xa8] sm:$0xff] %v4592
          %4657 = vst [vmem:[%s322 + $0xb0] sm:$0xff] %v4593
          %4658 = vst [vmem:[%s322 + $0xb8] sm:$0xff] %v4594
          %4659 = vst [vmem:[%s322 + $0xc0] sm:$0xff] %v4595
          %4660 = vst [vmem:[%s322 + $0xc8] sm:$0xff] %v4596
          %4661 = vst [vmem:[%s322 + $0xd0] sm:$0xff] %v4597
          %4662 = vst [vmem:[%s322 + $0xd8] sm:$0xff] %v4598
          %4663 = vst [vmem:[%s322 + $0xe0] sm:$0xff] %v4599
          %4664 = vst [vmem:[%s322 + $0xe8] sm:$0xff] %v4600
          %4665 = vst [vmem:[%s322 + $0xf0] sm:$0xff] %v4601
          %4666 = vst [vmem:[%s322 + $0xf8] sm:$0xff] %v4602
        $region60: #{feed_forward.1} parent=39 // pred_fallthru
          _
        %s4667 = sand.u32 %s168, 1
        %s4668 = scalar_lea.sflag [#allocation5], %s4667
        %s4669 = sand.u32 %s168, 1
        %s4670 = smul.addr %s4669, 256
        %s4671 = scalar_lea.vmem [#allocation9], %s4670
        // Predicated region
        $region61: #{feed_forward.1} parent=39 // pred_check
          %p4672 = pneg %p178
        $region62: #{feed_forward.1} parent=39 // pred_check_branch
          %4674 = sbr.rel (%p4672) target = $region64
        $region63: #{feed_forward.1} parent=39 // pred_region
          %s4675 = smul.u32 32, %s27
          %s4676 = ssub.s32 34, %s4675
          %p4677 = scmp.lt.s32.totalorder %s4676, 32
          %s4678 = scalar_select %p4677, %s4676, 32
          %s4679 = smul.u32 64, %s4678
          %s4680 = smul.u32 %s4679, 2
          %s4682 = ssub.s32 4096, %s4680
          %4683 = vsyncadd %s4668, %s4682
          %p4684 = scmp.ne.s32.totalorder 0, %s4680
          %s4685 = smul.addr %s4675, 2
          %s4686 = smul.addr %s4685, 64
          %s4687 = scalar_lea.hbm %s5, %s4686
          %s4688 = smul.u32 8, %s4678
          %s4689 = sshll.u32 %s4671, 4
          %s4690 = int_to_ptr.vmem [resolvable:$true] %s4689
          %s4691 = sshll.u32 %s4688, 4
          %4695 = dma.vmem_to_hbm [thread:$0]  (%p4684), %s4690, %s4691, %s4687, %s4668, 128, 128, 8
        $region64: #{feed_forward.1} parent=39 // pred_fallthru
          _
      $region40: #{feed_forward.1} parent=5 // pred_fallthru
        _
      %p4696 = scmp.le.s32.totalorder 2, %s18
      // Predicated region
      $region65: #{feed_forward.1} parent=5 // pred_check
        %p4697 = pneg %p4696
      $region66: #{feed_forward.1} parent=5 // pred_check_branch
        %4699 = sbr.rel (%p4697) target = $region68
      $region67: #{feed_forward.1} parent=5 // pred_region
        %s4700 = ssub.s32 %s18, 2
        // Predicated region
        $region69: #{feed_forward.1} parent=67 // pred_check
          %p4701 = pneg %p184
        $region70: #{feed_forward.1} parent=67 // pred_check_branch
          %4703 = sbr.rel (%p4701) target = $region72
        $region71: #{feed_forward.1} parent=67 // pred_region
          %s4704 = sand.u32 %s169, 1
          %s4705 = scalar_lea.sflag [#allocation5], %s4704
          %s4706 = sand.u32 %s169, 1
          %s4707 = smul.addr %s4706, 256
          %s4708 = scalar_lea.vmem [#allocation9], %s4707
          %4709 = dma.done %s4705, 4096
        $region72: #{feed_forward.1} parent=67 // pred_fallthru
          _
      $region68: #{feed_forward.1} parent=5 // pred_fallthru
        _
    $region6: #{feed_forward.1} parent=1 // loop_footer
      %s22 = sadd.s32 1, %s18
    $region7: #{feed_forward.1} parent=1 // loop_footer_branch
      %17 = sbr.rel target = $region3
    $region8: #{feed_forward.1} parent=1 // loop_exit
      _
    %4710 = vsyncpa [#allocation4], 1
    %s4711 = scalar_lea.sflag [#allocation4], 1
    %4712 = vsyncpa %s4711, 1
    %4713 = vsyncpa [#allocation7], 1
    %4714 = vsyncpa [#allocation5], 1
    %s4715 = scalar_lea.sflag [#allocation5], 1
    %4716 = vsyncpa %s4715, 1

</llo_original>
